<compile_context>
chip_gen: v6e
topology: v6e:2x2x1
jax: 0.10.0
libtpu: 0.0.40
codegen_flags: <defaults>
</compile_context>

<pallas_src>
import functools
import math

import jax
import jax.numpy as jnp
from jax import lax
from jax.experimental import pallas as pl
from jax.experimental.pallas import tpu as pltpu

_LANE = 128
_SUBLANE = 8


def _round_up(x, m):
    return (x + m - 1) // m * m


# ----------------------------------------------------------------------------
# Kernel
# ----------------------------------------------------------------------------
def _lstm_fc_kernel(num_layers, seq_len, hidden_pad, *args):
    """args = (x_ref,
               [w_ih_T_l, w_hh_T_l, b_l] * num_layers,   # gate-block padded
               fc_wT_ref, fc_b_ref,
               o_ref,
               gx_scratch, hseq_scratch)"""
    x_ref = args[0]
    layer_refs = [args[1 + 3 * l: 1 + 3 * l + 3] for l in range(num_layers)]
    fc_wT_ref = args[1 + 3 * num_layers]
    fc_b_ref = args[2 + 3 * num_layers]
    o_ref = args[3 + 3 * num_layers]
    gx_ref = args[4 + 3 * num_layers]        # (seq, bb, 4*Hp) VMEM scratch
    hseq_ref = args[5 + 3 * num_layers]      # (seq, bb, Hp)   VMEM scratch

    bb = o_ref.shape[0]
    Hp = hidden_pad
    S = seq_len

    h_last = None
    for l in range(num_layers):              # static, small
        w_ih_ref, w_hh_ref, b_ref = layer_refs[l]
        last_layer = (l == num_layers - 1)

        # ---- hoisted input projection for ALL timesteps (one big matmul) ----
        if l == 0:
            xin = x_ref[...]                 # (S, bb, in_pad)
        else:
            xin = hseq_ref[...]              # (S, bb, Hp) output of layer l-1
        in_dim = xin.shape[-1]
        gx = (jnp.dot(xin.reshape(S * bb, in_dim), w_ih_ref[...],
                      preferred_element_type=jnp.float32)
              + b_ref[...])                  # (S*bb, 4*Hp)
        gx_ref[...] = gx.reshape(S, bb, 4 * Hp)

        # ---- serial recurrence: only h @ W_hh^T on the critical path --------
        def step(t, carry, w_hh_ref=w_hh_ref, last_layer=last_layer):
            h, c = carry
            gates = gx_ref[t] + jnp.dot(h, w_hh_ref[...],
                                        preferred_element_type=jnp.float32)
            # PyTorch gate order i, f, g, o; each slice is a full 128-lane vreg
            i_g = jax.nn.sigmoid(gates[:, 0 * Hp:1 * Hp])
            f_g = jax.nn.sigmoid(gates[:, 1 * Hp:2 * Hp])
            g_g = jnp.tanh(gates[:, 2 * Hp:3 * Hp])
            o_g = jax.nn.sigmoid(gates[:, 3 * Hp:4 * Hp])
            c_new = f_g * c + i_g * g_g
            h_new = o_g * jnp.tanh(c_new)
            if not last_layer:               # last layer's per-step h unused
                hseq_ref[t] = h_new
            return h_new, c_new

        h0 = jnp.zeros((bb, Hp), jnp.float32)
        c0 = jnp.zeros((bb, Hp), jnp.float32)
        h_last, _ = lax.fori_loop(0, S, step, (h0, c0), unroll=True)

    out = (jnp.dot(h_last, fc_wT_ref[...], preferred_element_type=jnp.float32)
           + fc_b_ref[...])
    o_ref[...] = out.astype(o_ref.dtype)


# ----------------------------------------------------------------------------
# Parameter padding helpers (gate-block aware)
# ----------------------------------------------------------------------------
def _pad_gate_weight_T(w, in_dim, in_pad, H, Hp):
    """w: (4H, in_dim) PyTorch layout -> (in_pad, 4*Hp), transposed,
    each gate block placed at columns [g*Hp, g*Hp + H)."""
    out = jnp.zeros((in_pad, 4 * Hp), jnp.float32)
    for g in range(4):
        blk = w[g * H:(g + 1) * H, :]                      # (H, in_dim)
        out = out.at[:in_dim, g * Hp:g * Hp + H].set(blk.T)
    return out


def _pad_gate_bias(b, H, Hp):
    """b: (4H,) -> (1, 4*Hp) with gate blocks at [g*Hp, g*Hp + H)."""
    out = jnp.zeros((1, 4 * Hp), jnp.float32)
    for g in range(4):
        out = out.at[0, g * Hp:g * Hp + H].set(b[g * H:(g + 1) * H])
    return out


# ----------------------------------------------------------------------------
# Wrapper
# ----------------------------------------------------------------------------
def lotto_lstm_forward(x, params, *, hidden_size, num_layers, output_size):
    """x: (batch, seq, input_size) float32.  Returns (batch, output_size)."""
    batch, seq, input_size = x.shape

    Hp = _round_up(hidden_size, _LANE)
    in_pad = _round_up(input_size, _LANE)
    out_pad = _round_up(output_size, _LANE)

    Bp = _round_up(batch, _SUBLANE)
    if Bp <= _LANE:
        bb = Bp
    else:
        Bp = _round_up(Bp, _LANE)
        bb = _LANE
    n_blocks = Bp // bb

    # time-major, zero-padded input
    x_tm = jnp.transpose(x, (1, 0, 2))                     # (seq, batch, in)
    x_p = jnp.zeros((seq, Bp, in_pad), jnp.float32)
    x_p = x_p.at[:, :batch, :input_size].set(x_tm)

    flat_w = []
    for l in range(num_layers):
        w_ih, w_hh, b_ih, b_hh = params["lstm"][l]
        in_l = input_size if l == 0 else hidden_size
        in_l_pad = in_pad if l == 0 else Hp
        flat_w.append(_pad_gate_weight_T(w_ih, in_l, in_l_pad, hidden_size, Hp))
        flat_w.append(_pad_gate_weight_T(w_hh, hidden_size, Hp, hidden_size, Hp))
        flat_w.append(_pad_gate_bias(b_ih + b_hh, hidden_size, Hp))
    fc_wT = jnp.zeros((Hp, out_pad), jnp.float32)
    fc_wT = fc_wT.at[:hidden_size, :output_size].set(params["fc_w"].T)
    fc_b = jnp.zeros((1, out_pad), jnp.float32)
    fc_b = fc_b.at[0, :output_size].set(params["fc_b"])
    flat_w += [fc_wT, fc_b]

    # BlockSpecs: x and out are blocked over batch; weights are whole-array.
    x_spec = pl.BlockSpec((seq, bb, in_pad), lambda i: (0, i, 0))
    w_specs = [pl.BlockSpec(a.shape, lambda i: (0, 0)) for a in flat_w]
    out_spec = pl.BlockSpec((bb, out_pad), lambda i: (i, 0))

    # VMEM budget (2x for pipelining buffers + scratch + headroom).
    elem = 4
    io_bytes = (seq * bb * in_pad + bb * out_pad) * elem
    w_bytes = sum(math.prod(a.shape) for a in flat_w) * elem
    scratch_bytes = seq * bb * (4 * Hp + Hp) * elem
    vmem_limit = min(64 << 20,
                     max(32 << 20,
                         2 * (io_bytes + w_bytes) + scratch_bytes + (4 << 20)))

    kernel = functools.partial(_lstm_fc_kernel, num_layers, seq, Hp)

    out_full = pl.pallas_call(
        kernel,
        out_shape=jax.ShapeDtypeStruct((Bp, out_pad), jnp.float32),
        grid=(n_blocks,),
        in_specs=[x_spec] + w_specs,
        out_specs=out_spec,
        scratch_shapes=[
            pltpu.VMEM((seq, bb, 4 * Hp), jnp.float32),    # gates_x per layer
            pltpu.VMEM((seq, bb, Hp), jnp.float32),        # layer hidden seq
        ],
        compiler_params=pltpu.CompilerParams(
            dimension_semantics=("parallel",),
            vmem_limit_bytes=int(vmem_limit)),
    )(x_p, *flat_w)

    return out_full[:batch, :output_size]


# ----------------------------------------------------------------------------
# Init + pure-JAX reference (matches torch.nn.LSTM(batch_first) + Linear)
# ----------------------------------------------------------------------------
def _init_params(key, input_size, hidden_size, num_layers, output_size):
    k = 1.0 / jnp.sqrt(jnp.float32(hidden_size))
    keys = jax.random.split(key, 4 * num_layers + 2)
    lstm = []
    for l in range(num_layers):
        in_l = input_size if l == 0 else hidden_size
        kw = keys[4 * l: 4 * l + 4]
        w_ih = jax.random.uniform(kw[0], (4 * hidden_size, in_l),
                                  jnp.float32, -k, k)
        w_hh = jax.random.uniform(kw[1], (4 * hidden_size, hidden_size),
                                  jnp.float32, -k, k)
        b_ih = jax.random.uniform(kw[2], (4 * hidden_size,), jnp.float32, -k, k)
        b_hh = jax.random.uniform(kw[3], (4 * hidden_size,), jnp.float32, -k, k)
        lstm.append((w_ih, w_hh, b_ih, b_hh))
    fc_w = jax.random.uniform(keys[-2], (output_size, hidden_size),
                              jnp.float32, -k, k)
    fc_b = jax.random.uniform(keys[-1], (output_size,), jnp.float32, -k, k)
    return {"lstm": lstm, "fc_w": fc_w, "fc_b": fc_b}


def _reference_forward(x, params, hidden_size, num_layers):
    batch, seq, _ = x.shape
    layer_in = x
    h_last = None
    for l in range(num_layers):
        w_ih, w_hh, b_ih, b_hh = params["lstm"][l]
        h = jnp.zeros((batch, hidden_size), jnp.float32)
        c = jnp.zeros((batch, hidden_size), jnp.float32)
        outs = []
        for t in range(seq):
            g = layer_in[:, t, :] @ w_ih.T + b_ih + h @ w_hh.T + b_hh
            i_g = jax.nn.sigmoid(g[:, 0 * hidden_size:1 * hidden_size])
            f_g = jax.nn.sigmoid(g[:, 1 * hidden_size:2 * hidden_size])
            g_g = jnp.tanh(g[:, 2 * hidden_size:3 * hidden_size])
            o_g = jax.nn.sigmoid(g[:, 3 * hidden_size:4 * hidden_size])
            c = f_g * c + i_g * g_g
            h = o_g * jnp.tanh(c)
            outs.append(h)
        layer_in = jnp.stack(outs, axis=1)
        h_last = h
    return h_last @ params["fc_w"].T + params["fc_b"]


if __name__ == "__main__":
    INPUT_SIZE = 4
    HIDDEN_SIZE = 32
    NUM_LAYERS = 2
    OUTPUT_SIZE = 6
    BATCH = 2
    SEQ = 8

    key = jax.random.PRNGKey(0)
    kx, kp = jax.random.split(key)
    x = jax.random.normal(kx, (BATCH, SEQ, INPUT_SIZE), jnp.float32)
    params = _init_params(kp, INPUT_SIZE, HIDDEN_SIZE, NUM_LAYERS, OUTPUT_SIZE)

    out = lotto_lstm_forward(x, params, hidden_size=HIDDEN_SIZE,
                             num_layers=NUM_LAYERS, output_size=OUTPUT_SIZE)
    out = jax.block_until_ready(out)

    ref = _reference_forward(x, params, HIDDEN_SIZE, NUM_LAYERS)
    if not bool(jnp.allclose(out, ref, atol=1e-4, rtol=1e-4)):
        raise AssertionError("Pallas LSTM output mismatch vs JAX reference")

    print("KERNEL_OK")
</pallas_src>

<mosaic_0001>
module attributes {stable_mosaic.version = 11 : i64} {
  func.func @_lstm_fc_kernel(%arg0: i32, %arg1: memref<8x8x128xf32, #tpu.memory_space<vmem>>, %arg2: memref<128x512xf32, #tpu.memory_space<vmem>>, %arg3: memref<128x512xf32, #tpu.memory_space<vmem>>, %arg4: memref<1x512xf32, #tpu.memory_space<vmem>>, %arg5: memref<128x512xf32, #tpu.memory_space<vmem>>, %arg6: memref<128x512xf32, #tpu.memory_space<vmem>>, %arg7: memref<1x512xf32, #tpu.memory_space<vmem>>, %arg8: memref<128x128xf32, #tpu.memory_space<vmem>>, %arg9: memref<1x128xf32, #tpu.memory_space<vmem>>, %arg10: memref<8x128xf32, #tpu.memory_space<vmem>>, %arg11: memref<8x8x512xf32, #tpu.memory_space<vmem>>, %arg12: memref<8x8x128xf32, #tpu.memory_space<vmem>>) attributes {dimension_semantics = [#tpu.dimension_semantics<parallel>], iteration_bounds = array<i64: 1>, scalar_prefetch = 0 : i64, scratch_operands = 2 : i64, tpu.core_type = #tpu.core_type<tc>, window_params = [{transform_indices = @transform_0, window_bounds = array<i64: 8, 8, 128>}, {pipeline_mode = #tpu.pipeline_mode<synchronous>, transform_indices = @transform_1, window_bounds = array<i64: 128, 512>}, {pipeline_mode = #tpu.pipeline_mode<synchronous>, transform_indices = @transform_2, window_bounds = array<i64: 128, 512>}, {pipeline_mode = #tpu.pipeline_mode<synchronous>, transform_indices = @transform_3, window_bounds = array<i64: 1, 512>}, {pipeline_mode = #tpu.pipeline_mode<synchronous>, transform_indices = @transform_4, window_bounds = array<i64: 128, 512>}, {pipeline_mode = #tpu.pipeline_mode<synchronous>, transform_indices = @transform_5, window_bounds = array<i64: 128, 512>}, {pipeline_mode = #tpu.pipeline_mode<synchronous>, transform_indices = @transform_6, window_bounds = array<i64: 1, 512>}, {pipeline_mode = #tpu.pipeline_mode<synchronous>, transform_indices = @transform_7, window_bounds = array<i64: 128, 128>}, {pipeline_mode = #tpu.pipeline_mode<synchronous>, transform_indices = @transform_8, window_bounds = array<i64: 1, 128>}, {transform_indices = @transform_9, window_bounds = array<i64: 8, 128>}]} {
    %c0 = arith.constant 0 : index
    %c0_0 = arith.constant 0 : index
    %c0_1 = arith.constant 0 : index
    %0 = vector.load %arg1[%c0, %c0_0, %c0_1] : memref<8x8x128xf32, #tpu.memory_space<vmem>>, vector<8x8x128xf32>
    %1 = vector.shape_cast %0 : vector<8x8x128xf32> to vector<64x128xf32>
    %c0_2 = arith.constant 0 : index
    %c0_3 = arith.constant 0 : index
    %2 = vector.load %arg2[%c0_2, %c0_3] : memref<128x512xf32, #tpu.memory_space<vmem>>, vector<128x512xf32>
    %cst = arith.constant dense<0.000000e+00> : vector<64x512xf32>
    %3 = tpu.matmul %1, %2, %cst {dimension_numbers = #tpu.dot_dimension_numbers<[1], [0], [0], [1], [0, 0, 1, 1], [], []>} : vector<64x128xf32>, vector<128x512xf32>, vector<64x512xf32> -> vector<64x512xf32>
    %c0_4 = arith.constant 0 : index
    %c0_5 = arith.constant 0 : index
    %4 = vector.load %arg4[%c0_4, %c0_5] : memref<1x512xf32, #tpu.memory_space<vmem>>, vector<1x512xf32>
    %5 = vector.broadcast %4 : vector<1x512xf32> to vector<64x512xf32>
    %6 = arith.addf %3, %5 : vector<64x512xf32>
    %7 = vector.shape_cast %6 : vector<64x512xf32> to vector<8x8x512xf32>
    %c0_6 = arith.constant 0 : index
    %c0_7 = arith.constant 0 : index
    %c0_8 = arith.constant 0 : index
    %8 = vector.load %arg11[%c0_6, %c0_7, %c0_8] : memref<8x8x512xf32, #tpu.memory_space<vmem>>, vector<8x8x512xf32>
    tpu.vector_store %arg11[%c0_6, %c0_7, %c0_8], %7 {strides = array<i32>} : memref<8x8x512xf32, #tpu.memory_space<vmem>>, vector<8x8x512xf32>,
    %cst_9 = arith.constant 0.000000e+00 : f32
    %9 = vector.broadcast %cst_9 : f32 to vector<8x128xf32>
    %cst_10 = arith.constant 0.000000e+00 : f32
    %10 = vector.broadcast %cst_10 : f32 to vector<8x128xf32>
    %c0_i32 = arith.constant 0 : i32
    %11 = arith.index_cast %c0_i32 : i32 to index
    %c0_11 = arith.constant 0 : index
    %c0_12 = arith.constant 0 : index
    %12 = vector.load %arg11[%11, %c0_11, %c0_12] : memref<8x8x512xf32, #tpu.memory_space<vmem>>, vector<1x8x512xf32>
    %13 = vector.shape_cast %12 : vector<1x8x512xf32> to vector<8x512xf32>
    %c0_13 = arith.constant 0 : index
    %c0_14 = arith.constant 0 : index
    %14 = vector.load %arg3[%c0_13, %c0_14] : memref<128x512xf32, #tpu.memory_space<vmem>>, vector<128x512xf32>
    %cst_15 = arith.constant dense<0.000000e+00> : vector<8x512xf32>
    %15 = tpu.matmul %9, %14, %cst_15 {dimension_numbers = #tpu.dot_dimension_numbers<[1], [0], [0], [1], [0, 0, 1, 1], [], []>} : vector<8x128xf32>, vector<128x512xf32>, vector<8x512xf32> -> vector<8x512xf32>
    %16 = arith.addf %13, %15 : vector<8x512xf32>
    %17 = vector.extract_strided_slice %16 {offsets = [0, 0], sizes = [8, 128], strides = [1, 1]} : vector<8x512xf32> to vector<8x128xf32>
    %18 = arith.negf %17 : vector<8x128xf32>
    %19 = math.exp %18 : vector<8x128xf32>
    %cst_16 = arith.constant 1.000000e+00 : f32
    %20 = vector.broadcast %cst_16 : f32 to vector<8x128xf32>
    %21 = arith.addf %20, %19 : vector<8x128xf32>
    %22 = arith.divf %20, %21 : vector<8x128xf32>
    %23 = vector.extract_strided_slice %16 {offsets = [0, 128], sizes = [8, 128], strides = [1, 1]} : vector<8x512xf32> to vector<8x128xf32>
    %24 = arith.negf %23 : vector<8x128xf32>
    %25 = math.exp %24 : vector<8x128xf32>
    %cst_17 = arith.constant 1.000000e+00 : f32
    %26 = vector.broadcast %cst_17 : f32 to vector<8x128xf32>
    %27 = arith.addf %26, %25 : vector<8x128xf32>
    %28 = arith.divf %26, %27 : vector<8x128xf32>
    %29 = vector.extract_strided_slice %16 {offsets = [0, 256], sizes = [8, 128], strides = [1, 1]} : vector<8x512xf32> to vector<8x128xf32>
    %30 = math.tanh %29 : vector<8x128xf32>
    %31 = vector.extract_strided_slice %16 {offsets = [0, 384], sizes = [8, 128], strides = [1, 1]} : vector<8x512xf32> to vector<8x128xf32>
    %32 = arith.negf %31 : vector<8x128xf32>
    %33 = math.exp %32 : vector<8x128xf32>
    %cst_18 = arith.constant 1.000000e+00 : f32
    %34 = vector.broadcast %cst_18 : f32 to vector<8x128xf32>
    %35 = arith.addf %34, %33 : vector<8x128xf32>
    %36 = arith.divf %34, %35 : vector<8x128xf32>
    %37 = arith.mulf %28, %10 : vector<8x128xf32>
    %38 = arith.mulf %22, %30 : vector<8x128xf32>
    %39 = arith.addf %37, %38 : vector<8x128xf32>
    %40 = math.tanh %39 : vector<8x128xf32>
    %41 = arith.mulf %36, %40 : vector<8x128xf32>
    %42 = arith.index_cast %c0_i32 : i32 to index
    %c0_19 = arith.constant 0 : index
    %c0_20 = arith.constant 0 : index
    %43 = vector.load %arg12[%42, %c0_19, %c0_20] : memref<8x8x128xf32, #tpu.memory_space<vmem>>, vector<1x8x128xf32>
    %44 = vector.shape_cast %43 : vector<1x8x128xf32> to vector<8x128xf32>
    %45 = vector.shape_cast %41 : vector<8x128xf32> to vector<1x8x128xf32>
    tpu.vector_store %arg12[%42, %c0_19, %c0_20], %45 {strides = array<i32>} : memref<8x8x128xf32, #tpu.memory_space<vmem>>, vector<1x8x128xf32>,
    %c1_i32 = arith.constant 1 : i32
    %46 = arith.index_cast %c1_i32 : i32 to index
    %c0_21 = arith.constant 0 : index
    %c0_22 = arith.constant 0 : index
    %47 = vector.load %arg11[%46, %c0_21, %c0_22] : memref<8x8x512xf32, #tpu.memory_space<vmem>>, vector<1x8x512xf32>
    %48 = vector.shape_cast %47 : vector<1x8x512xf32> to vector<8x512xf32>
    %c0_23 = arith.constant 0 : index
    %c0_24 = arith.constant 0 : index
    %49 = vector.load %arg3[%c0_23, %c0_24] : memref<128x512xf32, #tpu.memory_space<vmem>>, vector<128x512xf32>
    %cst_25 = arith.constant dense<0.000000e+00> : vector<8x512xf32>
    %50 = tpu.matmul %41, %49, %cst_25 {dimension_numbers = #tpu.dot_dimension_numbers<[1], [0], [0], [1], [0, 0, 1, 1], [], []>} : vector<8x128xf32>, vector<128x512xf32>, vector<8x512xf32> -> vector<8x512xf32>
    %51 = arith.addf %48, %50 : vector<8x512xf32>
    %52 = vector.extract_strided_slice %51 {offsets = [0, 0], sizes = [8, 128], strides = [1, 1]} : vector<8x512xf32> to vector<8x128xf32>
    %53 = arith.negf %52 : vector<8x128xf32>
    %54 = math.exp %53 : vector<8x128xf32>
    %cst_26 = arith.constant 1.000000e+00 : f32
    %55 = vector.broadcast %cst_26 : f32 to vector<8x128xf32>
    %56 = arith.addf %55, %54 : vector<8x128xf32>
    %57 = arith.divf %55, %56 : vector<8x128xf32>
    %58 = vector.extract_strided_slice %51 {offsets = [0, 128], sizes = [8, 128], strides = [1, 1]} : vector<8x512xf32> to vector<8x128xf32>
    %59 = arith.negf %58 : vector<8x128xf32>
    %60 = math.exp %59 : vector<8x128xf32>
    %cst_27 = arith.constant 1.000000e+00 : f32
    %61 = vector.broadcast %cst_27 : f32 to vector<8x128xf32>
    %62 = arith.addf %61, %60 : vector<8x128xf32>
    %63 = arith.divf %61, %62 : vector<8x128xf32>
    %64 = vector.extract_strided_slice %51 {offsets = [0, 256], sizes = [8, 128], strides = [1, 1]} : vector<8x512xf32> to vector<8x128xf32>
    %65 = math.tanh %64 : vector<8x128xf32>
    %66 = vector.extract_strided_slice %51 {offsets = [0, 384], sizes = [8, 128], strides = [1, 1]} : vector<8x512xf32> to vector<8x128xf32>
    %67 = arith.negf %66 : vector<8x128xf32>
    %68 = math.exp %67 : vector<8x128xf32>
    %cst_28 = arith.constant 1.000000e+00 : f32
    %69 = vector.broadcast %cst_28 : f32 to vector<8x128xf32>
    %70 = arith.addf %69, %68 : vector<8x128xf32>
    %71 = arith.divf %69, %70 : vector<8x128xf32>
    %72 = arith.mulf %63, %39 : vector<8x128xf32>
    %73 = arith.mulf %57, %65 : vector<8x128xf32>
    %74 = arith.addf %72, %73 : vector<8x128xf32>
    %75 = math.tanh %74 : vector<8x128xf32>
    %76 = arith.mulf %71, %75 : vector<8x128xf32>
    %77 = arith.index_cast %c1_i32 : i32 to index
    %c0_29 = arith.constant 0 : index
    %c0_30 = arith.constant 0 : index
    %78 = vector.load %arg12[%77, %c0_29, %c0_30] : memref<8x8x128xf32, #tpu.memory_space<vmem>>, vector<1x8x128xf32>
    %79 = vector.shape_cast %78 : vector<1x8x128xf32> to vector<8x128xf32>
    %80 = vector.shape_cast %76 : vector<8x128xf32> to vector<1x8x128xf32>
    tpu.vector_store %arg12[%77, %c0_29, %c0_30], %80 {strides = array<i32>} : memref<8x8x128xf32, #tpu.memory_space<vmem>>, vector<1x8x128xf32>,
    %c2_i32 = arith.constant 2 : i32
    %81 = arith.index_cast %c2_i32 : i32 to index
    %c0_31 = arith.constant 0 : index
    %c0_32 = arith.constant 0 : index
    %82 = vector.load %arg11[%81, %c0_31, %c0_32] : memref<8x8x512xf32, #tpu.memory_space<vmem>>, vector<1x8x512xf32>
    %83 = vector.shape_cast %82 : vector<1x8x512xf32> to vector<8x512xf32>
    %c0_33 = arith.constant 0 : index
    %c0_34 = arith.constant 0 : index
    %84 = vector.load %arg3[%c0_33, %c0_34] : memref<128x512xf32, #tpu.memory_space<vmem>>, vector<128x512xf32>
    %cst_35 = arith.constant dense<0.000000e+00> : vector<8x512xf32>
    %85 = tpu.matmul %76, %84, %cst_35 {dimension_numbers = #tpu.dot_dimension_numbers<[1], [0], [0], [1], [0, 0, 1, 1], [], []>} : vector<8x128xf32>, vector<128x512xf32>, vector<8x512xf32> -> vector<8x512xf32>
    %86 = arith.addf %83, %85 : vector<8x512xf32>
    %87 = vector.extract_strided_slice %86 {offsets = [0, 0], sizes = [8, 128], strides = [1, 1]} : vector<8x512xf32> to vector<8x128xf32>
    %88 = arith.negf %87 : vector<8x128xf32>
    %89 = math.exp %88 : vector<8x128xf32>
    %cst_36 = arith.constant 1.000000e+00 : f32
    %90 = vector.broadcast %cst_36 : f32 to vector<8x128xf32>
    %91 = arith.addf %90, %89 : vector<8x128xf32>
    %92 = arith.divf %90, %91 : vector<8x128xf32>
    %93 = vector.extract_strided_slice %86 {offsets = [0, 128], sizes = [8, 128], strides = [1, 1]} : vector<8x512xf32> to vector<8x128xf32>
    %94 = arith.negf %93 : vector<8x128xf32>
    %95 = math.exp %94 : vector<8x128xf32>
    %cst_37 = arith.constant 1.000000e+00 : f32
    %96 = vector.broadcast %cst_37 : f32 to vector<8x128xf32>
    %97 = arith.addf %96, %95 : vector<8x128xf32>
    %98 = arith.divf %96, %97 : vector<8x128xf32>
    %99 = vector.extract_strided_slice %86 {offsets = [0, 256], sizes = [8, 128], strides = [1, 1]} : vector<8x512xf32> to vector<8x128xf32>
    %100 = math.tanh %99 : vector<8x128xf32>
    %101 = vector.extract_strided_slice %86 {offsets = [0, 384], sizes = [8, 128], strides = [1, 1]} : vector<8x512xf32> to vector<8x128xf32>
    %102 = arith.negf %101 : vector<8x128xf32>
    %103 = math.exp %102 : vector<8x128xf32>
    %cst_38 = arith.constant 1.000000e+00 : f32
    %104 = vector.broadcast %cst_38 : f32 to vector<8x128xf32>
    %105 = arith.addf %104, %103 : vector<8x128xf32>
    %106 = arith.divf %104, %105 : vector<8x128xf32>
    %107 = arith.mulf %98, %74 : vector<8x128xf32>
    %108 = arith.mulf %92, %100 : vector<8x128xf32>
    %109 = arith.addf %107, %108 : vector<8x128xf32>
    %110 = math.tanh %109 : vector<8x128xf32>
    %111 = arith.mulf %106, %110 : vector<8x128xf32>
    %112 = arith.index_cast %c2_i32 : i32 to index
    %c0_39 = arith.constant 0 : index
    %c0_40 = arith.constant 0 : index
    %113 = vector.load %arg12[%112, %c0_39, %c0_40] : memref<8x8x128xf32, #tpu.memory_space<vmem>>, vector<1x8x128xf32>
    %114 = vector.shape_cast %113 : vector<1x8x128xf32> to vector<8x128xf32>
    %115 = vector.shape_cast %111 : vector<8x128xf32> to vector<1x8x128xf32>
    tpu.vector_store %arg12[%112, %c0_39, %c0_40], %115 {strides = array<i32>} : memref<8x8x128xf32, #tpu.memory_space<vmem>>, vector<1x8x128xf32>,
    %c3_i32 = arith.constant 3 : i32
    %116 = arith.index_cast %c3_i32 : i32 to index
    %c0_41 = arith.constant 0 : index
    %c0_42 = arith.constant 0 : index
    %117 = vector.load %arg11[%116, %c0_41, %c0_42] : memref<8x8x512xf32, #tpu.memory_space<vmem>>, vector<1x8x512xf32>
    %118 = vector.shape_cast %117 : vector<1x8x512xf32> to vector<8x512xf32>
    %c0_43 = arith.constant 0 : index
    %c0_44 = arith.constant 0 : index
    %119 = vector.load %arg3[%c0_43, %c0_44] : memref<128x512xf32, #tpu.memory_space<vmem>>, vector<128x512xf32>
    %cst_45 = arith.constant dense<0.000000e+00> : vector<8x512xf32>
    %120 = tpu.matmul %111, %119, %cst_45 {dimension_numbers = #tpu.dot_dimension_numbers<[1], [0], [0], [1], [0, 0, 1, 1], [], []>} : vector<8x128xf32>, vector<128x512xf32>, vector<8x512xf32> -> vector<8x512xf32>
    %121 = arith.addf %118, %120 : vector<8x512xf32>
    %122 = vector.extract_strided_slice %121 {offsets = [0, 0], sizes = [8, 128], strides = [1, 1]} : vector<8x512xf32> to vector<8x128xf32>
    %123 = arith.negf %122 : vector<8x128xf32>
    %124 = math.exp %123 : vector<8x128xf32>
    %cst_46 = arith.constant 1.000000e+00 : f32
    %125 = vector.broadcast %cst_46 : f32 to vector<8x128xf32>
    %126 = arith.addf %125, %124 : vector<8x128xf32>
    %127 = arith.divf %125, %126 : vector<8x128xf32>
    %128 = vector.extract_strided_slice %121 {offsets = [0, 128], sizes = [8, 128], strides = [1, 1]} : vector<8x512xf32> to vector<8x128xf32>
    %129 = arith.negf %128 : vector<8x128xf32>
    %130 = math.exp %129 : vector<8x128xf32>
    %cst_47 = arith.constant 1.000000e+00 : f32
    %131 = vector.broadcast %cst_47 : f32 to vector<8x128xf32>
    %132 = arith.addf %131, %130 : vector<8x128xf32>
    %133 = arith.divf %131, %132 : vector<8x128xf32>
    %134 = vector.extract_strided_slice %121 {offsets = [0, 256], sizes = [8, 128], strides = [1, 1]} : vector<8x512xf32> to vector<8x128xf32>
    %135 = math.tanh %134 : vector<8x128xf32>
    %136 = vector.extract_strided_slice %121 {offsets = [0, 384], sizes = [8, 128], strides = [1, 1]} : vector<8x512xf32> to vector<8x128xf32>
    %137 = arith.negf %136 : vector<8x128xf32>
    %138 = math.exp %137 : vector<8x128xf32>
    %cst_48 = arith.constant 1.000000e+00 : f32
    %139 = vector.broadcast %cst_48 : f32 to vector<8x128xf32>
    %140 = arith.addf %139, %138 : vector<8x128xf32>
    %141 = arith.divf %139, %140 : vector<8x128xf32>
    %142 = arith.mulf %133, %109 : vector<8x128xf32>
    %143 = arith.mulf %127, %135 : vector<8x128xf32>
    %144 = arith.addf %142, %143 : vector<8x128xf32>
    %145 = math.tanh %144 : vector<8x128xf32>
    %146 = arith.mulf %141, %145 : vector<8x128xf32>
    %147 = arith.index_cast %c3_i32 : i32 to index
    %c0_49 = arith.constant 0 : index
    %c0_50 = arith.constant 0 : index
    %148 = vector.load %arg12[%147, %c0_49, %c0_50] : memref<8x8x128xf32, #tpu.memory_space<vmem>>, vector<1x8x128xf32>
    %149 = vector.shape_cast %148 : vector<1x8x128xf32> to vector<8x128xf32>
    %150 = vector.shape_cast %146 : vector<8x128xf32> to vector<1x8x128xf32>
    tpu.vector_store %arg12[%147, %c0_49, %c0_50], %150 {strides = array<i32>} : memref<8x8x128xf32, #tpu.memory_space<vmem>>, vector<1x8x128xf32>,
    %c4_i32 = arith.constant 4 : i32
    %151 = arith.index_cast %c4_i32 : i32 to index
    %c0_51 = arith.constant 0 : index
    %c0_52 = arith.constant 0 : index
    %152 = vector.load %arg11[%151, %c0_51, %c0_52] : memref<8x8x512xf32, #tpu.memory_space<vmem>>, vector<1x8x512xf32>
    %153 = vector.shape_cast %152 : vector<1x8x512xf32> to vector<8x512xf32>
    %c0_53 = arith.constant 0 : index
    %c0_54 = arith.constant 0 : index
    %154 = vector.load %arg3[%c0_53, %c0_54] : memref<128x512xf32, #tpu.memory_space<vmem>>, vector<128x512xf32>
    %cst_55 = arith.constant dense<0.000000e+00> : vector<8x512xf32>
    %155 = tpu.matmul %146, %154, %cst_55 {dimension_numbers = #tpu.dot_dimension_numbers<[1], [0], [0], [1], [0, 0, 1, 1], [], []>} : vector<8x128xf32>, vector<128x512xf32>, vector<8x512xf32> -> vector<8x512xf32>
    %156 = arith.addf %153, %155 : vector<8x512xf32>
    %157 = vector.extract_strided_slice %156 {offsets = [0, 0], sizes = [8, 128], strides = [1, 1]} : vector<8x512xf32> to vector<8x128xf32>
    %158 = arith.negf %157 : vector<8x128xf32>
    %159 = math.exp %158 : vector<8x128xf32>
    %cst_56 = arith.constant 1.000000e+00 : f32
    %160 = vector.broadcast %cst_56 : f32 to vector<8x128xf32>
    %161 = arith.addf %160, %159 : vector<8x128xf32>
    %162 = arith.divf %160, %161 : vector<8x128xf32>
    %163 = vector.extract_strided_slice %156 {offsets = [0, 128], sizes = [8, 128], strides = [1, 1]} : vector<8x512xf32> to vector<8x128xf32>
    %164 = arith.negf %163 : vector<8x128xf32>
    %165 = math.exp %164 : vector<8x128xf32>
    %cst_57 = arith.constant 1.000000e+00 : f32
    %166 = vector.broadcast %cst_57 : f32 to vector<8x128xf32>
    %167 = arith.addf %166, %165 : vector<8x128xf32>
    %168 = arith.divf %166, %167 : vector<8x128xf32>
    %169 = vector.extract_strided_slice %156 {offsets = [0, 256], sizes = [8, 128], strides = [1, 1]} : vector<8x512xf32> to vector<8x128xf32>
    %170 = math.tanh %169 : vector<8x128xf32>
    %171 = vector.extract_strided_slice %156 {offsets = [0, 384], sizes = [8, 128], strides = [1, 1]} : vector<8x512xf32> to vector<8x128xf32>
    %172 = arith.negf %171 : vector<8x128xf32>
    %173 = math.exp %172 : vector<8x128xf32>
    %cst_58 = arith.constant 1.000000e+00 : f32
    %174 = vector.broadcast %cst_58 : f32 to vector<8x128xf32>
    %175 = arith.addf %174, %173 : vector<8x128xf32>
    %176 = arith.divf %174, %175 : vector<8x128xf32>
    %177 = arith.mulf %168, %144 : vector<8x128xf32>
    %178 = arith.mulf %162, %170 : vector<8x128xf32>
    %179 = arith.addf %177, %178 : vector<8x128xf32>
    %180 = math.tanh %179 : vector<8x128xf32>
    %181 = arith.mulf %176, %180 : vector<8x128xf32>
    %182 = arith.index_cast %c4_i32 : i32 to index
    %c0_59 = arith.constant 0 : index
    %c0_60 = arith.constant 0 : index
    %183 = vector.load %arg12[%182, %c0_59, %c0_60] : memref<8x8x128xf32, #tpu.memory_space<vmem>>, vector<1x8x128xf32>
    %184 = vector.shape_cast %183 : vector<1x8x128xf32> to vector<8x128xf32>
    %185 = vector.shape_cast %181 : vector<8x128xf32> to vector<1x8x128xf32>
    tpu.vector_store %arg12[%182, %c0_59, %c0_60], %185 {strides = array<i32>} : memref<8x8x128xf32, #tpu.memory_space<vmem>>, vector<1x8x128xf32>,
    %c5_i32 = arith.constant 5 : i32
    %186 = arith.index_cast %c5_i32 : i32 to index
    %c0_61 = arith.constant 0 : index
    %c0_62 = arith.constant 0 : index
    %187 = vector.load %arg11[%186, %c0_61, %c0_62] : memref<8x8x512xf32, #tpu.memory_space<vmem>>, vector<1x8x512xf32>
    %188 = vector.shape_cast %187 : vector<1x8x512xf32> to vector<8x512xf32>
    %c0_63 = arith.constant 0 : index
    %c0_64 = arith.constant 0 : index
    %189 = vector.load %arg3[%c0_63, %c0_64] : memref<128x512xf32, #tpu.memory_space<vmem>>, vector<128x512xf32>
    %cst_65 = arith.constant dense<0.000000e+00> : vector<8x512xf32>
    %190 = tpu.matmul %181, %189, %cst_65 {dimension_numbers = #tpu.dot_dimension_numbers<[1], [0], [0], [1], [0, 0, 1, 1], [], []>} : vector<8x128xf32>, vector<128x512xf32>, vector<8x512xf32> -> vector<8x512xf32>
    %191 = arith.addf %188, %190 : vector<8x512xf32>
    %192 = vector.extract_strided_slice %191 {offsets = [0, 0], sizes = [8, 128], strides = [1, 1]} : vector<8x512xf32> to vector<8x128xf32>
    %193 = arith.negf %192 : vector<8x128xf32>
    %194 = math.exp %193 : vector<8x128xf32>
    %cst_66 = arith.constant 1.000000e+00 : f32
    %195 = vector.broadcast %cst_66 : f32 to vector<8x128xf32>
    %196 = arith.addf %195, %194 : vector<8x128xf32>
    %197 = arith.divf %195, %196 : vector<8x128xf32>
    %198 = vector.extract_strided_slice %191 {offsets = [0, 128], sizes = [8, 128], strides = [1, 1]} : vector<8x512xf32> to vector<8x128xf32>
    %199 = arith.negf %198 : vector<8x128xf32>
    %200 = math.exp %199 : vector<8x128xf32>
    %cst_67 = arith.constant 1.000000e+00 : f32
    %201 = vector.broadcast %cst_67 : f32 to vector<8x128xf32>
    %202 = arith.addf %201, %200 : vector<8x128xf32>
    %203 = arith.divf %201, %202 : vector<8x128xf32>
    %204 = vector.extract_strided_slice %191 {offsets = [0, 256], sizes = [8, 128], strides = [1, 1]} : vector<8x512xf32> to vector<8x128xf32>
    %205 = math.tanh %204 : vector<8x128xf32>
    %206 = vector.extract_strided_slice %191 {offsets = [0, 384], sizes = [8, 128], strides = [1, 1]} : vector<8x512xf32> to vector<8x128xf32>
    %207 = arith.negf %206 : vector<8x128xf32>
    %208 = math.exp %207 : vector<8x128xf32>
    %cst_68 = arith.constant 1.000000e+00 : f32
    %209 = vector.broadcast %cst_68 : f32 to vector<8x128xf32>
    %210 = arith.addf %209, %208 : vector<8x128xf32>
    %211 = arith.divf %209, %210 : vector<8x128xf32>
    %212 = arith.mulf %203, %179 : vector<8x128xf32>
    %213 = arith.mulf %197, %205 : vector<8x128xf32>
    %214 = arith.addf %212, %213 : vector<8x128xf32>
    %215 = math.tanh %214 : vector<8x128xf32>
    %216 = arith.mulf %211, %215 : vector<8x128xf32>
    %217 = arith.index_cast %c5_i32 : i32 to index
    %c0_69 = arith.constant 0 : index
    %c0_70 = arith.constant 0 : index
    %218 = vector.load %arg12[%217, %c0_69, %c0_70] : memref<8x8x128xf32, #tpu.memory_space<vmem>>, vector<1x8x128xf32>
    %219 = vector.shape_cast %218 : vector<1x8x128xf32> to vector<8x128xf32>
    %220 = vector.shape_cast %216 : vector<8x128xf32> to vector<1x8x128xf32>
    tpu.vector_store %arg12[%217, %c0_69, %c0_70], %220 {strides = array<i32>} : memref<8x8x128xf32, #tpu.memory_space<vmem>>, vector<1x8x128xf32>,
    %c6_i32 = arith.constant 6 : i32
    %221 = arith.index_cast %c6_i32 : i32 to index
    %c0_71 = arith.constant 0 : index
    %c0_72 = arith.constant 0 : index
    %222 = vector.load %arg11[%221, %c0_71, %c0_72] : memref<8x8x512xf32, #tpu.memory_space<vmem>>, vector<1x8x512xf32>
    %223 = vector.shape_cast %222 : vector<1x8x512xf32> to vector<8x512xf32>
    %c0_73 = arith.constant 0 : index
    %c0_74 = arith.constant 0 : index
    %224 = vector.load %arg3[%c0_73, %c0_74] : memref<128x512xf32, #tpu.memory_space<vmem>>, vector<128x512xf32>
    %cst_75 = arith.constant dense<0.000000e+00> : vector<8x512xf32>
    %225 = tpu.matmul %216, %224, %cst_75 {dimension_numbers = #tpu.dot_dimension_numbers<[1], [0], [0], [1], [0, 0, 1, 1], [], []>} : vector<8x128xf32>, vector<128x512xf32>, vector<8x512xf32> -> vector<8x512xf32>
    %226 = arith.addf %223, %225 : vector<8x512xf32>
    %227 = vector.extract_strided_slice %226 {offsets = [0, 0], sizes = [8, 128], strides = [1, 1]} : vector<8x512xf32> to vector<8x128xf32>
    %228 = arith.negf %227 : vector<8x128xf32>
    %229 = math.exp %228 : vector<8x128xf32>
    %cst_76 = arith.constant 1.000000e+00 : f32
    %230 = vector.broadcast %cst_76 : f32 to vector<8x128xf32>
    %231 = arith.addf %230, %229 : vector<8x128xf32>
    %232 = arith.divf %230, %231 : vector<8x128xf32>
    %233 = vector.extract_strided_slice %226 {offsets = [0, 128], sizes = [8, 128], strides = [1, 1]} : vector<8x512xf32> to vector<8x128xf32>
    %234 = arith.negf %233 : vector<8x128xf32>
    %235 = math.exp %234 : vector<8x128xf32>
    %cst_77 = arith.constant 1.000000e+00 : f32
    %236 = vector.broadcast %cst_77 : f32 to vector<8x128xf32>
    %237 = arith.addf %236, %235 : vector<8x128xf32>
    %238 = arith.divf %236, %237 : vector<8x128xf32>
    %239 = vector.extract_strided_slice %226 {offsets = [0, 256], sizes = [8, 128], strides = [1, 1]} : vector<8x512xf32> to vector<8x128xf32>
    %240 = math.tanh %239 : vector<8x128xf32>
    %241 = vector.extract_strided_slice %226 {offsets = [0, 384], sizes = [8, 128], strides = [1, 1]} : vector<8x512xf32> to vector<8x128xf32>
    %242 = arith.negf %241 : vector<8x128xf32>
    %243 = math.exp %242 : vector<8x128xf32>
    %cst_78 = arith.constant 1.000000e+00 : f32
    %244 = vector.broadcast %cst_78 : f32 to vector<8x128xf32>
    %245 = arith.addf %244, %243 : vector<8x128xf32>
    %246 = arith.divf %244, %245 : vector<8x128xf32>
    %247 = arith.mulf %238, %214 : vector<8x128xf32>
    %248 = arith.mulf %232, %240 : vector<8x128xf32>
    %249 = arith.addf %247, %248 : vector<8x128xf32>
    %250 = math.tanh %249 : vector<8x128xf32>
    %251 = arith.mulf %246, %250 : vector<8x128xf32>
    %252 = arith.index_cast %c6_i32 : i32 to index
    %c0_79 = arith.constant 0 : index
    %c0_80 = arith.constant 0 : index
    %253 = vector.load %arg12[%252, %c0_79, %c0_80] : memref<8x8x128xf32, #tpu.memory_space<vmem>>, vector<1x8x128xf32>
    %254 = vector.shape_cast %253 : vector<1x8x128xf32> to vector<8x128xf32>
    %255 = vector.shape_cast %251 : vector<8x128xf32> to vector<1x8x128xf32>
    tpu.vector_store %arg12[%252, %c0_79, %c0_80], %255 {strides = array<i32>} : memref<8x8x128xf32, #tpu.memory_space<vmem>>, vector<1x8x128xf32>,
    %c7_i32 = arith.constant 7 : i32
    %256 = arith.index_cast %c7_i32 : i32 to index
    %c0_81 = arith.constant 0 : index
    %c0_82 = arith.constant 0 : index
    %257 = vector.load %arg11[%256, %c0_81, %c0_82] : memref<8x8x512xf32, #tpu.memory_space<vmem>>, vector<1x8x512xf32>
    %258 = vector.shape_cast %257 : vector<1x8x512xf32> to vector<8x512xf32>
    %c0_83 = arith.constant 0 : index
    %c0_84 = arith.constant 0 : index
    %259 = vector.load %arg3[%c0_83, %c0_84] : memref<128x512xf32, #tpu.memory_space<vmem>>, vector<128x512xf32>
    %cst_85 = arith.constant dense<0.000000e+00> : vector<8x512xf32>
    %260 = tpu.matmul %251, %259, %cst_85 {dimension_numbers = #tpu.dot_dimension_numbers<[1], [0], [0], [1], [0, 0, 1, 1], [], []>} : vector<8x128xf32>, vector<128x512xf32>, vector<8x512xf32> -> vector<8x512xf32>
    %261 = arith.addf %258, %260 : vector<8x512xf32>
    %262 = vector.extract_strided_slice %261 {offsets = [0, 0], sizes = [8, 128], strides = [1, 1]} : vector<8x512xf32> to vector<8x128xf32>
    %263 = arith.negf %262 : vector<8x128xf32>
    %264 = math.exp %263 : vector<8x128xf32>
    %cst_86 = arith.constant 1.000000e+00 : f32
    %265 = vector.broadcast %cst_86 : f32 to vector<8x128xf32>
    %266 = arith.addf %265, %264 : vector<8x128xf32>
    %267 = arith.divf %265, %266 : vector<8x128xf32>
    %268 = vector.extract_strided_slice %261 {offsets = [0, 128], sizes = [8, 128], strides = [1, 1]} : vector<8x512xf32> to vector<8x128xf32>
    %269 = arith.negf %268 : vector<8x128xf32>
    %270 = math.exp %269 : vector<8x128xf32>
    %cst_87 = arith.constant 1.000000e+00 : f32
    %271 = vector.broadcast %cst_87 : f32 to vector<8x128xf32>
    %272 = arith.addf %271, %270 : vector<8x128xf32>
    %273 = arith.divf %271, %272 : vector<8x128xf32>
    %274 = vector.extract_strided_slice %261 {offsets = [0, 256], sizes = [8, 128], strides = [1, 1]} : vector<8x512xf32> to vector<8x128xf32>
    %275 = math.tanh %274 : vector<8x128xf32>
    %276 = vector.extract_strided_slice %261 {offsets = [0, 384], sizes = [8, 128], strides = [1, 1]} : vector<8x512xf32> to vector<8x128xf32>
    %277 = arith.negf %276 : vector<8x128xf32>
    %278 = math.exp %277 : vector<8x128xf32>
    %cst_88 = arith.constant 1.000000e+00 : f32
    %279 = vector.broadcast %cst_88 : f32 to vector<8x128xf32>
    %280 = arith.addf %279, %278 : vector<8x128xf32>
    %281 = arith.divf %279, %280 : vector<8x128xf32>
    %282 = arith.mulf %273, %249 : vector<8x128xf32>
    %283 = arith.mulf %267, %275 : vector<8x128xf32>
    %284 = arith.addf %282, %283 : vector<8x128xf32>
    %285 = math.tanh %284 : vector<8x128xf32>
    %286 = arith.mulf %281, %285 : vector<8x128xf32>
    %287 = arith.index_cast %c7_i32 : i32 to index
    %c0_89 = arith.constant 0 : index
    %c0_90 = arith.constant 0 : index
    %288 = vector.load %arg12[%287, %c0_89, %c0_90] : memref<8x8x128xf32, #tpu.memory_space<vmem>>, vector<1x8x128xf32>
    %289 = vector.shape_cast %288 : vector<1x8x128xf32> to vector<8x128xf32>
    %290 = vector.shape_cast %286 : vector<8x128xf32> to vector<1x8x128xf32>
    tpu.vector_store %arg12[%287, %c0_89, %c0_90], %290 {strides = array<i32>} : memref<8x8x128xf32, #tpu.memory_space<vmem>>, vector<1x8x128xf32>,
    %c8_i32 = arith.constant 8 : i32
    %c0_91 = arith.constant 0 : index
    %c0_92 = arith.constant 0 : index
    %c0_93 = arith.constant 0 : index
    %291 = vector.load %arg12[%c0_91, %c0_92, %c0_93] : memref<8x8x128xf32, #tpu.memory_space<vmem>>, vector<8x8x128xf32>
    %292 = vector.shape_cast %291 : vector<8x8x128xf32> to vector<64x128xf32>
    %c0_94 = arith.constant 0 : index
    %c0_95 = arith.constant 0 : index
    %293 = vector.load %arg5[%c0_94, %c0_95] : memref<128x512xf32, #tpu.memory_space<vmem>>, vector<128x512xf32>
    %cst_96 = arith.constant dense<0.000000e+00> : vector<64x512xf32>
    %294 = tpu.matmul %292, %293, %cst_96 {dimension_numbers = #tpu.dot_dimension_numbers<[1], [0], [0], [1], [0, 0, 1, 1], [], []>} : vector<64x128xf32>, vector<128x512xf32>, vector<64x512xf32> -> vector<64x512xf32>
    %c0_97 = arith.constant 0 : index
    %c0_98 = arith.constant 0 : index
    %295 = vector.load %arg7[%c0_97, %c0_98] : memref<1x512xf32, #tpu.memory_space<vmem>>, vector<1x512xf32>
    %296 = vector.broadcast %295 : vector<1x512xf32> to vector<64x512xf32>
    %297 = arith.addf %294, %296 : vector<64x512xf32>
    %298 = vector.shape_cast %297 : vector<64x512xf32> to vector<8x8x512xf32>
    %c0_99 = arith.constant 0 : index
    %c0_100 = arith.constant 0 : index
    %c0_101 = arith.constant 0 : index
    %299 = vector.load %arg11[%c0_99, %c0_100, %c0_101] : memref<8x8x512xf32, #tpu.memory_space<vmem>>, vector<8x8x512xf32>
    tpu.vector_store %arg11[%c0_99, %c0_100, %c0_101], %298 {strides = array<i32>} : memref<8x8x512xf32, #tpu.memory_space<vmem>>, vector<8x8x512xf32>,
    %cst_102 = arith.constant 0.000000e+00 : f32
    %300 = vector.broadcast %cst_102 : f32 to vector<8x128xf32>
    %cst_103 = arith.constant 0.000000e+00 : f32
    %301 = vector.broadcast %cst_103 : f32 to vector<8x128xf32>
    %c0_i32_104 = arith.constant 0 : i32
    %302 = arith.index_cast %c0_i32_104 : i32 to index
    %c0_105 = arith.constant 0 : index
    %c0_106 = arith.constant 0 : index
    %303 = vector.load %arg11[%302, %c0_105, %c0_106] : memref<8x8x512xf32, #tpu.memory_space<vmem>>, vector<1x8x512xf32>
    %304 = vector.shape_cast %303 : vector<1x8x512xf32> to vector<8x512xf32>
    %c0_107 = arith.constant 0 : index
    %c0_108 = arith.constant 0 : index
    %305 = vector.load %arg6[%c0_107, %c0_108] : memref<128x512xf32, #tpu.memory_space<vmem>>, vector<128x512xf32>
    %cst_109 = arith.constant dense<0.000000e+00> : vector<8x512xf32>
    %306 = tpu.matmul %300, %305, %cst_109 {dimension_numbers = #tpu.dot_dimension_numbers<[1], [0], [0], [1], [0, 0, 1, 1], [], []>} : vector<8x128xf32>, vector<128x512xf32>, vector<8x512xf32> -> vector<8x512xf32>
    %307 = arith.addf %304, %306 : vector<8x512xf32>
    %308 = vector.extract_strided_slice %307 {offsets = [0, 0], sizes = [8, 128], strides = [1, 1]} : vector<8x512xf32> to vector<8x128xf32>
    %309 = arith.negf %308 : vector<8x128xf32>
    %310 = math.exp %309 : vector<8x128xf32>
    %cst_110 = arith.constant 1.000000e+00 : f32
    %311 = vector.broadcast %cst_110 : f32 to vector<8x128xf32>
    %312 = arith.addf %311, %310 : vector<8x128xf32>
    %313 = arith.divf %311, %312 : vector<8x128xf32>
    %314 = vector.extract_strided_slice %307 {offsets = [0, 128], sizes = [8, 128], strides = [1, 1]} : vector<8x512xf32> to vector<8x128xf32>
    %315 = arith.negf %314 : vector<8x128xf32>
    %316 = math.exp %315 : vector<8x128xf32>
    %cst_111 = arith.constant 1.000000e+00 : f32
    %317 = vector.broadcast %cst_111 : f32 to vector<8x128xf32>
    %318 = arith.addf %317, %316 : vector<8x128xf32>
    %319 = arith.divf %317, %318 : vector<8x128xf32>
    %320 = vector.extract_strided_slice %307 {offsets = [0, 256], sizes = [8, 128], strides = [1, 1]} : vector<8x512xf32> to vector<8x128xf32>
    %321 = math.tanh %320 : vector<8x128xf32>
    %322 = vector.extract_strided_slice %307 {offsets = [0, 384], sizes = [8, 128], strides = [1, 1]} : vector<8x512xf32> to vector<8x128xf32>
    %323 = arith.negf %322 : vector<8x128xf32>
    %324 = math.exp %323 : vector<8x128xf32>
    %cst_112 = arith.constant 1.000000e+00 : f32
    %325 = vector.broadcast %cst_112 : f32 to vector<8x128xf32>
    %326 = arith.addf %325, %324 : vector<8x128xf32>
    %327 = arith.divf %325, %326 : vector<8x128xf32>
    %328 = arith.mulf %319, %301 : vector<8x128xf32>
    %329 = arith.mulf %313, %321 : vector<8x128xf32>
    %330 = arith.addf %328, %329 : vector<8x128xf32>
    %331 = math.tanh %330 : vector<8x128xf32>
    %332 = arith.mulf %327, %331 : vector<8x128xf32>
    %c1_i32_113 = arith.constant 1 : i32
    %333 = arith.index_cast %c1_i32_113 : i32 to index
    %c0_114 = arith.constant 0 : index
    %c0_115 = arith.constant 0 : index
    %334 = vector.load %arg11[%333, %c0_114, %c0_115] : memref<8x8x512xf32, #tpu.memory_space<vmem>>, vector<1x8x512xf32>
    %335 = vector.shape_cast %334 : vector<1x8x512xf32> to vector<8x512xf32>
    %c0_116 = arith.constant 0 : index
    %c0_117 = arith.constant 0 : index
    %336 = vector.load %arg6[%c0_116, %c0_117] : memref<128x512xf32, #tpu.memory_space<vmem>>, vector<128x512xf32>
    %cst_118 = arith.constant dense<0.000000e+00> : vector<8x512xf32>
    %337 = tpu.matmul %332, %336, %cst_118 {dimension_numbers = #tpu.dot_dimension_numbers<[1], [0], [0], [1], [0, 0, 1, 1], [], []>} : vector<8x128xf32>, vector<128x512xf32>, vector<8x512xf32> -> vector<8x512xf32>
    %338 = arith.addf %335, %337 : vector<8x512xf32>
    %339 = vector.extract_strided_slice %338 {offsets = [0, 0], sizes = [8, 128], strides = [1, 1]} : vector<8x512xf32> to vector<8x128xf32>
    %340 = arith.negf %339 : vector<8x128xf32>
    %341 = math.exp %340 : vector<8x128xf32>
    %cst_119 = arith.constant 1.000000e+00 : f32
    %342 = vector.broadcast %cst_119 : f32 to vector<8x128xf32>
    %343 = arith.addf %342, %341 : vector<8x128xf32>
    %344 = arith.divf %342, %343 : vector<8x128xf32>
    %345 = vector.extract_strided_slice %338 {offsets = [0, 128], sizes = [8, 128], strides = [1, 1]} : vector<8x512xf32> to vector<8x128xf32>
    %346 = arith.negf %345 : vector<8x128xf32>
    %347 = math.exp %346 : vector<8x128xf32>
    %cst_120 = arith.constant 1.000000e+00 : f32
    %348 = vector.broadcast %cst_120 : f32 to vector<8x128xf32>
    %349 = arith.addf %348, %347 : vector<8x128xf32>
    %350 = arith.divf %348, %349 : vector<8x128xf32>
    %351 = vector.extract_strided_slice %338 {offsets = [0, 256], sizes = [8, 128], strides = [1, 1]} : vector<8x512xf32> to vector<8x128xf32>
    %352 = math.tanh %351 : vector<8x128xf32>
    %353 = vector.extract_strided_slice %338 {offsets = [0, 384], sizes = [8, 128], strides = [1, 1]} : vector<8x512xf32> to vector<8x128xf32>
    %354 = arith.negf %353 : vector<8x128xf32>
    %355 = math.exp %354 : vector<8x128xf32>
    %cst_121 = arith.constant 1.000000e+00 : f32
    %356 = vector.broadcast %cst_121 : f32 to vector<8x128xf32>
    %357 = arith.addf %356, %355 : vector<8x128xf32>
    %358 = arith.divf %356, %357 : vector<8x128xf32>
    %359 = arith.mulf %350, %330 : vector<8x128xf32>
    %360 = arith.mulf %344, %352 : vector<8x128xf32>
    %361 = arith.addf %359, %360 : vector<8x128xf32>
    %362 = math.tanh %361 : vector<8x128xf32>
    %363 = arith.mulf %358, %362 : vector<8x128xf32>
    %c2_i32_122 = arith.constant 2 : i32
    %364 = arith.index_cast %c2_i32_122 : i32 to index
    %c0_123 = arith.constant 0 : index
    %c0_124 = arith.constant 0 : index
    %365 = vector.load %arg11[%364, %c0_123, %c0_124] : memref<8x8x512xf32, #tpu.memory_space<vmem>>, vector<1x8x512xf32>
    %366 = vector.shape_cast %365 : vector<1x8x512xf32> to vector<8x512xf32>
    %c0_125 = arith.constant 0 : index
    %c0_126 = arith.constant 0 : index
    %367 = vector.load %arg6[%c0_125, %c0_126] : memref<128x512xf32, #tpu.memory_space<vmem>>, vector<128x512xf32>
    %cst_127 = arith.constant dense<0.000000e+00> : vector<8x512xf32>
    %368 = tpu.matmul %363, %367, %cst_127 {dimension_numbers = #tpu.dot_dimension_numbers<[1], [0], [0], [1], [0, 0, 1, 1], [], []>} : vector<8x128xf32>, vector<128x512xf32>, vector<8x512xf32> -> vector<8x512xf32>
    %369 = arith.addf %366, %368 : vector<8x512xf32>
    %370 = vector.extract_strided_slice %369 {offsets = [0, 0], sizes = [8, 128], strides = [1, 1]} : vector<8x512xf32> to vector<8x128xf32>
    %371 = arith.negf %370 : vector<8x128xf32>
    %372 = math.exp %371 : vector<8x128xf32>
    %cst_128 = arith.constant 1.000000e+00 : f32
    %373 = vector.broadcast %cst_128 : f32 to vector<8x128xf32>
    %374 = arith.addf %373, %372 : vector<8x128xf32>
    %375 = arith.divf %373, %374 : vector<8x128xf32>
    %376 = vector.extract_strided_slice %369 {offsets = [0, 128], sizes = [8, 128], strides = [1, 1]} : vector<8x512xf32> to vector<8x128xf32>
    %377 = arith.negf %376 : vector<8x128xf32>
    %378 = math.exp %377 : vector<8x128xf32>
    %cst_129 = arith.constant 1.000000e+00 : f32
    %379 = vector.broadcast %cst_129 : f32 to vector<8x128xf32>
    %380 = arith.addf %379, %378 : vector<8x128xf32>
    %381 = arith.divf %379, %380 : vector<8x128xf32>
    %382 = vector.extract_strided_slice %369 {offsets = [0, 256], sizes = [8, 128], strides = [1, 1]} : vector<8x512xf32> to vector<8x128xf32>
    %383 = math.tanh %382 : vector<8x128xf32>
    %384 = vector.extract_strided_slice %369 {offsets = [0, 384], sizes = [8, 128], strides = [1, 1]} : vector<8x512xf32> to vector<8x128xf32>
    %385 = arith.negf %384 : vector<8x128xf32>
    %386 = math.exp %385 : vector<8x128xf32>
    %cst_130 = arith.constant 1.000000e+00 : f32
    %387 = vector.broadcast %cst_130 : f32 to vector<8x128xf32>
    %388 = arith.addf %387, %386 : vector<8x128xf32>
    %389 = arith.divf %387, %388 : vector<8x128xf32>
    %390 = arith.mulf %381, %361 : vector<8x128xf32>
    %391 = arith.mulf %375, %383 : vector<8x128xf32>
    %392 = arith.addf %390, %391 : vector<8x128xf32>
    %393 = math.tanh %392 : vector<8x128xf32>
    %394 = arith.mulf %389, %393 : vector<8x128xf32>
    %c3_i32_131 = arith.constant 3 : i32
    %395 = arith.index_cast %c3_i32_131 : i32 to index
    %c0_132 = arith.constant 0 : index
    %c0_133 = arith.constant 0 : index
    %396 = vector.load %arg11[%395, %c0_132, %c0_133] : memref<8x8x512xf32, #tpu.memory_space<vmem>>, vector<1x8x512xf32>
    %397 = vector.shape_cast %396 : vector<1x8x512xf32> to vector<8x512xf32>
    %c0_134 = arith.constant 0 : index
    %c0_135 = arith.constant 0 : index
    %398 = vector.load %arg6[%c0_134, %c0_135] : memref<128x512xf32, #tpu.memory_space<vmem>>, vector<128x512xf32>
    %cst_136 = arith.constant dense<0.000000e+00> : vector<8x512xf32>
    %399 = tpu.matmul %394, %398, %cst_136 {dimension_numbers = #tpu.dot_dimension_numbers<[1], [0], [0], [1], [0, 0, 1, 1], [], []>} : vector<8x128xf32>, vector<128x512xf32>, vector<8x512xf32> -> vector<8x512xf32>
    %400 = arith.addf %397, %399 : vector<8x512xf32>
    %401 = vector.extract_strided_slice %400 {offsets = [0, 0], sizes = [8, 128], strides = [1, 1]} : vector<8x512xf32> to vector<8x128xf32>
    %402 = arith.negf %401 : vector<8x128xf32>
    %403 = math.exp %402 : vector<8x128xf32>
    %cst_137 = arith.constant 1.000000e+00 : f32
    %404 = vector.broadcast %cst_137 : f32 to vector<8x128xf32>
    %405 = arith.addf %404, %403 : vector<8x128xf32>
    %406 = arith.divf %404, %405 : vector<8x128xf32>
    %407 = vector.extract_strided_slice %400 {offsets = [0, 128], sizes = [8, 128], strides = [1, 1]} : vector<8x512xf32> to vector<8x128xf32>
    %408 = arith.negf %407 : vector<8x128xf32>
    %409 = math.exp %408 : vector<8x128xf32>
    %cst_138 = arith.constant 1.000000e+00 : f32
    %410 = vector.broadcast %cst_138 : f32 to vector<8x128xf32>
    %411 = arith.addf %410, %409 : vector<8x128xf32>
    %412 = arith.divf %410, %411 : vector<8x128xf32>
    %413 = vector.extract_strided_slice %400 {offsets = [0, 256], sizes = [8, 128], strides = [1, 1]} : vector<8x512xf32> to vector<8x128xf32>
    %414 = math.tanh %413 : vector<8x128xf32>
    %415 = vector.extract_strided_slice %400 {offsets = [0, 384], sizes = [8, 128], strides = [1, 1]} : vector<8x512xf32> to vector<8x128xf32>
    %416 = arith.negf %415 : vector<8x128xf32>
    %417 = math.exp %416 : vector<8x128xf32>
    %cst_139 = arith.constant 1.000000e+00 : f32
    %418 = vector.broadcast %cst_139 : f32 to vector<8x128xf32>
    %419 = arith.addf %418, %417 : vector<8x128xf32>
    %420 = arith.divf %418, %419 : vector<8x128xf32>
    %421 = arith.mulf %412, %392 : vector<8x128xf32>
    %422 = arith.mulf %406, %414 : vector<8x128xf32>
    %423 = arith.addf %421, %422 : vector<8x128xf32>
    %424 = math.tanh %423 : vector<8x128xf32>
    %425 = arith.mulf %420, %424 : vector<8x128xf32>
    %c4_i32_140 = arith.constant 4 : i32
    %426 = arith.index_cast %c4_i32_140 : i32 to index
    %c0_141 = arith.constant 0 : index
    %c0_142 = arith.constant 0 : index
    %427 = vector.load %arg11[%426, %c0_141, %c0_142] : memref<8x8x512xf32, #tpu.memory_space<vmem>>, vector<1x8x512xf32>
    %428 = vector.shape_cast %427 : vector<1x8x512xf32> to vector<8x512xf32>
    %c0_143 = arith.constant 0 : index
    %c0_144 = arith.constant 0 : index
    %429 = vector.load %arg6[%c0_143, %c0_144] : memref<128x512xf32, #tpu.memory_space<vmem>>, vector<128x512xf32>
    %cst_145 = arith.constant dense<0.000000e+00> : vector<8x512xf32>
    %430 = tpu.matmul %425, %429, %cst_145 {dimension_numbers = #tpu.dot_dimension_numbers<[1], [0], [0], [1], [0, 0, 1, 1], [], []>} : vector<8x128xf32>, vector<128x512xf32>, vector<8x512xf32> -> vector<8x512xf32>
    %431 = arith.addf %428, %430 : vector<8x512xf32>
    %432 = vector.extract_strided_slice %431 {offsets = [0, 0], sizes = [8, 128], strides = [1, 1]} : vector<8x512xf32> to vector<8x128xf32>
    %433 = arith.negf %432 : vector<8x128xf32>
    %434 = math.exp %433 : vector<8x128xf32>
    %cst_146 = arith.constant 1.000000e+00 : f32
    %435 = vector.broadcast %cst_146 : f32 to vector<8x128xf32>
    %436 = arith.addf %435, %434 : vector<8x128xf32>
    %437 = arith.divf %435, %436 : vector<8x128xf32>
    %438 = vector.extract_strided_slice %431 {offsets = [0, 128], sizes = [8, 128], strides = [1, 1]} : vector<8x512xf32> to vector<8x128xf32>
    %439 = arith.negf %438 : vector<8x128xf32>
    %440 = math.exp %439 : vector<8x128xf32>
    %cst_147 = arith.constant 1.000000e+00 : f32
    %441 = vector.broadcast %cst_147 : f32 to vector<8x128xf32>
    %442 = arith.addf %441, %440 : vector<8x128xf32>
    %443 = arith.divf %441, %442 : vector<8x128xf32>
    %444 = vector.extract_strided_slice %431 {offsets = [0, 256], sizes = [8, 128], strides = [1, 1]} : vector<8x512xf32> to vector<8x128xf32>
    %445 = math.tanh %444 : vector<8x128xf32>
    %446 = vector.extract_strided_slice %431 {offsets = [0, 384], sizes = [8, 128], strides = [1, 1]} : vector<8x512xf32> to vector<8x128xf32>
    %447 = arith.negf %446 : vector<8x128xf32>
    %448 = math.exp %447 : vector<8x128xf32>
    %cst_148 = arith.constant 1.000000e+00 : f32
    %449 = vector.broadcast %cst_148 : f32 to vector<8x128xf32>
    %450 = arith.addf %449, %448 : vector<8x128xf32>
    %451 = arith.divf %449, %450 : vector<8x128xf32>
    %452 = arith.mulf %443, %423 : vector<8x128xf32>
    %453 = arith.mulf %437, %445 : vector<8x128xf32>
    %454 = arith.addf %452, %453 : vector<8x128xf32>
    %455 = math.tanh %454 : vector<8x128xf32>
    %456 = arith.mulf %451, %455 : vector<8x128xf32>
    %c5_i32_149 = arith.constant 5 : i32
    %457 = arith.index_cast %c5_i32_149 : i32 to index
    %c0_150 = arith.constant 0 : index
    %c0_151 = arith.constant 0 : index
    %458 = vector.load %arg11[%457, %c0_150, %c0_151] : memref<8x8x512xf32, #tpu.memory_space<vmem>>, vector<1x8x512xf32>
    %459 = vector.shape_cast %458 : vector<1x8x512xf32> to vector<8x512xf32>
    %c0_152 = arith.constant 0 : index
    %c0_153 = arith.constant 0 : index
    %460 = vector.load %arg6[%c0_152, %c0_153] : memref<128x512xf32, #tpu.memory_space<vmem>>, vector<128x512xf32>
    %cst_154 = arith.constant dense<0.000000e+00> : vector<8x512xf32>
    %461 = tpu.matmul %456, %460, %cst_154 {dimension_numbers = #tpu.dot_dimension_numbers<[1], [0], [0], [1], [0, 0, 1, 1], [], []>} : vector<8x128xf32>, vector<128x512xf32>, vector<8x512xf32> -> vector<8x512xf32>
    %462 = arith.addf %459, %461 : vector<8x512xf32>
    %463 = vector.extract_strided_slice %462 {offsets = [0, 0], sizes = [8, 128], strides = [1, 1]} : vector<8x512xf32> to vector<8x128xf32>
    %464 = arith.negf %463 : vector<8x128xf32>
    %465 = math.exp %464 : vector<8x128xf32>
    %cst_155 = arith.constant 1.000000e+00 : f32
    %466 = vector.broadcast %cst_155 : f32 to vector<8x128xf32>
    %467 = arith.addf %466, %465 : vector<8x128xf32>
    %468 = arith.divf %466, %467 : vector<8x128xf32>
    %469 = vector.extract_strided_slice %462 {offsets = [0, 128], sizes = [8, 128], strides = [1, 1]} : vector<8x512xf32> to vector<8x128xf32>
    %470 = arith.negf %469 : vector<8x128xf32>
    %471 = math.exp %470 : vector<8x128xf32>
    %cst_156 = arith.constant 1.000000e+00 : f32
    %472 = vector.broadcast %cst_156 : f32 to vector<8x128xf32>
    %473 = arith.addf %472, %471 : vector<8x128xf32>
    %474 = arith.divf %472, %473 : vector<8x128xf32>
    %475 = vector.extract_strided_slice %462 {offsets = [0, 256], sizes = [8, 128], strides = [1, 1]} : vector<8x512xf32> to vector<8x128xf32>
    %476 = math.tanh %475 : vector<8x128xf32>
    %477 = vector.extract_strided_slice %462 {offsets = [0, 384], sizes = [8, 128], strides = [1, 1]} : vector<8x512xf32> to vector<8x128xf32>
    %478 = arith.negf %477 : vector<8x128xf32>
    %479 = math.exp %478 : vector<8x128xf32>
    %cst_157 = arith.constant 1.000000e+00 : f32
    %480 = vector.broadcast %cst_157 : f32 to vector<8x128xf32>
    %481 = arith.addf %480, %479 : vector<8x128xf32>
    %482 = arith.divf %480, %481 : vector<8x128xf32>
    %483 = arith.mulf %474, %454 : vector<8x128xf32>
    %484 = arith.mulf %468, %476 : vector<8x128xf32>
    %485 = arith.addf %483, %484 : vector<8x128xf32>
    %486 = math.tanh %485 : vector<8x128xf32>
    %487 = arith.mulf %482, %486 : vector<8x128xf32>
    %c6_i32_158 = arith.constant 6 : i32
    %488 = arith.index_cast %c6_i32_158 : i32 to index
    %c0_159 = arith.constant 0 : index
    %c0_160 = arith.constant 0 : index
    %489 = vector.load %arg11[%488, %c0_159, %c0_160] : memref<8x8x512xf32, #tpu.memory_space<vmem>>, vector<1x8x512xf32>
    %490 = vector.shape_cast %489 : vector<1x8x512xf32> to vector<8x512xf32>
    %c0_161 = arith.constant 0 : index
    %c0_162 = arith.constant 0 : index
    %491 = vector.load %arg6[%c0_161, %c0_162] : memref<128x512xf32, #tpu.memory_space<vmem>>, vector<128x512xf32>
    %cst_163 = arith.constant dense<0.000000e+00> : vector<8x512xf32>
    %492 = tpu.matmul %487, %491, %cst_163 {dimension_numbers = #tpu.dot_dimension_numbers<[1], [0], [0], [1], [0, 0, 1, 1], [], []>} : vector<8x128xf32>, vector<128x512xf32>, vector<8x512xf32> -> vector<8x512xf32>
    %493 = arith.addf %490, %492 : vector<8x512xf32>
    %494 = vector.extract_strided_slice %493 {offsets = [0, 0], sizes = [8, 128], strides = [1, 1]} : vector<8x512xf32> to vector<8x128xf32>
    %495 = arith.negf %494 : vector<8x128xf32>
    %496 = math.exp %495 : vector<8x128xf32>
    %cst_164 = arith.constant 1.000000e+00 : f32
    %497 = vector.broadcast %cst_164 : f32 to vector<8x128xf32>
    %498 = arith.addf %497, %496 : vector<8x128xf32>
    %499 = arith.divf %497, %498 : vector<8x128xf32>
    %500 = vector.extract_strided_slice %493 {offsets = [0, 128], sizes = [8, 128], strides = [1, 1]} : vector<8x512xf32> to vector<8x128xf32>
    %501 = arith.negf %500 : vector<8x128xf32>
    %502 = math.exp %501 : vector<8x128xf32>
    %cst_165 = arith.constant 1.000000e+00 : f32
    %503 = vector.broadcast %cst_165 : f32 to vector<8x128xf32>
    %504 = arith.addf %503, %502 : vector<8x128xf32>
    %505 = arith.divf %503, %504 : vector<8x128xf32>
    %506 = vector.extract_strided_slice %493 {offsets = [0, 256], sizes = [8, 128], strides = [1, 1]} : vector<8x512xf32> to vector<8x128xf32>
    %507 = math.tanh %506 : vector<8x128xf32>
    %508 = vector.extract_strided_slice %493 {offsets = [0, 384], sizes = [8, 128], strides = [1, 1]} : vector<8x512xf32> to vector<8x128xf32>
    %509 = arith.negf %508 : vector<8x128xf32>
    %510 = math.exp %509 : vector<8x128xf32>
    %cst_166 = arith.constant 1.000000e+00 : f32
    %511 = vector.broadcast %cst_166 : f32 to vector<8x128xf32>
    %512 = arith.addf %511, %510 : vector<8x128xf32>
    %513 = arith.divf %511, %512 : vector<8x128xf32>
    %514 = arith.mulf %505, %485 : vector<8x128xf32>
    %515 = arith.mulf %499, %507 : vector<8x128xf32>
    %516 = arith.addf %514, %515 : vector<8x128xf32>
    %517 = math.tanh %516 : vector<8x128xf32>
    %518 = arith.mulf %513, %517 : vector<8x128xf32>
    %c7_i32_167 = arith.constant 7 : i32
    %519 = arith.index_cast %c7_i32_167 : i32 to index
    %c0_168 = arith.constant 0 : index
    %c0_169 = arith.constant 0 : index
    %520 = vector.load %arg11[%519, %c0_168, %c0_169] : memref<8x8x512xf32, #tpu.memory_space<vmem>>, vector<1x8x512xf32>
    %521 = vector.shape_cast %520 : vector<1x8x512xf32> to vector<8x512xf32>
    %c0_170 = arith.constant 0 : index
    %c0_171 = arith.constant 0 : index
    %522 = vector.load %arg6[%c0_170, %c0_171] : memref<128x512xf32, #tpu.memory_space<vmem>>, vector<128x512xf32>
    %cst_172 = arith.constant dense<0.000000e+00> : vector<8x512xf32>
    %523 = tpu.matmul %518, %522, %cst_172 {dimension_numbers = #tpu.dot_dimension_numbers<[1], [0], [0], [1], [0, 0, 1, 1], [], []>} : vector<8x128xf32>, vector<128x512xf32>, vector<8x512xf32> -> vector<8x512xf32>
    %524 = arith.addf %521, %523 : vector<8x512xf32>
    %525 = vector.extract_strided_slice %524 {offsets = [0, 0], sizes = [8, 128], strides = [1, 1]} : vector<8x512xf32> to vector<8x128xf32>
    %526 = arith.negf %525 : vector<8x128xf32>
    %527 = math.exp %526 : vector<8x128xf32>
    %cst_173 = arith.constant 1.000000e+00 : f32
    %528 = vector.broadcast %cst_173 : f32 to vector<8x128xf32>
    %529 = arith.addf %528, %527 : vector<8x128xf32>
    %530 = arith.divf %528, %529 : vector<8x128xf32>
    %531 = vector.extract_strided_slice %524 {offsets = [0, 128], sizes = [8, 128], strides = [1, 1]} : vector<8x512xf32> to vector<8x128xf32>
    %532 = arith.negf %531 : vector<8x128xf32>
    %533 = math.exp %532 : vector<8x128xf32>
    %cst_174 = arith.constant 1.000000e+00 : f32
    %534 = vector.broadcast %cst_174 : f32 to vector<8x128xf32>
    %535 = arith.addf %534, %533 : vector<8x128xf32>
    %536 = arith.divf %534, %535 : vector<8x128xf32>
    %537 = vector.extract_strided_slice %524 {offsets = [0, 256], sizes = [8, 128], strides = [1, 1]} : vector<8x512xf32> to vector<8x128xf32>
    %538 = math.tanh %537 : vector<8x128xf32>
    %539 = vector.extract_strided_slice %524 {offsets = [0, 384], sizes = [8, 128], strides = [1, 1]} : vector<8x512xf32> to vector<8x128xf32>
    %540 = arith.negf %539 : vector<8x128xf32>
    %541 = math.exp %540 : vector<8x128xf32>
    %cst_175 = arith.constant 1.000000e+00 : f32
    %542 = vector.broadcast %cst_175 : f32 to vector<8x128xf32>
    %543 = arith.addf %542, %541 : vector<8x128xf32>
    %544 = arith.divf %542, %543 : vector<8x128xf32>
    %545 = arith.mulf %536, %516 : vector<8x128xf32>
    %546 = arith.mulf %530, %538 : vector<8x128xf32>
    %547 = arith.addf %545, %546 : vector<8x128xf32>
    %548 = math.tanh %547 : vector<8x128xf32>
    %549 = arith.mulf %544, %548 : vector<8x128xf32>
    %c8_i32_176 = arith.constant 8 : i32
    %c0_177 = arith.constant 0 : index
    %c0_178 = arith.constant 0 : index
    %550 = vector.load %arg8[%c0_177, %c0_178] : memref<128x128xf32, #tpu.memory_space<vmem>>, vector<128x128xf32>
    %cst_179 = arith.constant dense<0.000000e+00> : vector<8x128xf32>
    %551 = tpu.matmul %549, %550, %cst_179 {dimension_numbers = #tpu.dot_dimension_numbers<[1], [0], [0], [1], [0, 0, 1, 1], [], []>} : vector<8x128xf32>, vector<128x128xf32>, vector<8x128xf32> -> vector<8x128xf32>
    %c0_180 = arith.constant 0 : index
    %c0_181 = arith.constant 0 : index
    %552 = vector.load %arg9[%c0_180, %c0_181] : memref<1x128xf32, #tpu.memory_space<vmem>>, vector<1x128xf32>
    %553 = vector.broadcast %552 : vector<1x128xf32> to vector<8x128xf32>
    %554 = arith.addf %551, %553 : vector<8x128xf32>
    %c0_182 = arith.constant 0 : index
    %c0_183 = arith.constant 0 : index
    %555 = vector.load %arg10[%c0_182, %c0_183] : memref<8x128xf32, #tpu.memory_space<vmem>>, vector<8x128xf32>
    tpu.vector_store %arg10[%c0_182, %c0_183], %554 {strides = array<i32>} : memref<8x128xf32, #tpu.memory_space<vmem>>, vector<8x128xf32>,
    return
  }
  func.func @transform_0(%arg0: i32) -> (i32, i32, i32) {
    %c0_i32 = arith.constant 0 : i32
    %c0_i32_0 = arith.constant 0 : i32
    %c0_i32_1 = arith.constant 0 : i32
    return %c0_i32, %arg0, %c0_i32_0 : i32, i32, i32
  }
  func.func @transform_1(%arg0: i32) -> (i32, i32) {
    %c0_i32 = arith.constant 0 : i32
    %c0_i32_0 = arith.constant 0 : i32
    %c0_i32_1 = arith.constant 0 : i32
    return %c0_i32, %c0_i32_0 : i32, i32
  }
  func.func @transform_2(%arg0: i32) -> (i32, i32) {
    %c0_i32 = arith.constant 0 : i32
    %c0_i32_0 = arith.constant 0 : i32
    %c0_i32_1 = arith.constant 0 : i32
    return %c0_i32, %c0_i32_0 : i32, i32
  }
  func.func @transform_3(%arg0: i32) -> (i32, i32) {
    %c0_i32 = arith.constant 0 : i32
    %c0_i32_0 = arith.constant 0 : i32
    %c0_i32_1 = arith.constant 0 : i32
    return %c0_i32, %c0_i32_0 : i32, i32
  }
  func.func @transform_4(%arg0: i32) -> (i32, i32) {
    %c0_i32 = arith.constant 0 : i32
    %c0_i32_0 = arith.constant 0 : i32
    %c0_i32_1 = arith.constant 0 : i32
    return %c0_i32, %c0_i32_0 : i32, i32
  }
  func.func @transform_5(%arg0: i32) -> (i32, i32) {
    %c0_i32 = arith.constant 0 : i32
    %c0_i32_0 = arith.constant 0 : i32
    %c0_i32_1 = arith.constant 0 : i32
    return %c0_i32, %c0_i32_0 : i32, i32
  }
  func.func @transform_6(%arg0: i32) -> (i32, i32) {
    %c0_i32 = arith.constant 0 : i32
    %c0_i32_0 = arith.constant 0 : i32
    %c0_i32_1 = arith.constant 0 : i32
    return %c0_i32, %c0_i32_0 : i32, i32
  }
  func.func @transform_7(%arg0: i32) -> (i32, i32) {
    %c0_i32 = arith.constant 0 : i32
    %c0_i32_0 = arith.constant 0 : i32
    %c0_i32_1 = arith.constant 0 : i32
    return %c0_i32, %c0_i32_0 : i32, i32
  }
  func.func @transform_8(%arg0: i32) -> (i32, i32) {
    %c0_i32 = arith.constant 0 : i32
    %c0_i32_0 = arith.constant 0 : i32
    %c0_i32_1 = arith.constant 0 : i32
    return %c0_i32, %c0_i32_0 : i32, i32
  }
  func.func @transform_9(%arg0: i32) -> (i32, i32) {
    %c0_i32 = arith.constant 0 : i32
    %c0_i32_0 = arith.constant 0 : i32
    return %arg0, %c0_i32 : i32, i32
  }
}

</mosaic_0001>

<llo_original>
// kernel: tpu_custom_call.1
$region0: #{tpu_custom_call.1}
  #allocation0 [shape = 'u32[]', space=smem, size = 0x4, offset = 0x4, fixed_abs, tag = 'smem constant byte address 0x4 - core index']
  #allocation1 [shape = 'u32[144,128]{1,0:T(1,128)}', space=vmem, size = 0x12000, scoped, tag = 'internal scratch']
  #allocation2 [shape = 'f32[8,8,512]{2,1,0:T(8,128)}', space=vmem, size = 0x20000, scoped, tag = 'scratch operand']
  #allocation3 [shape = 'f32[8,8,128]{2,1,0:T(8,128)}', space=vmem, size = 0x8000, scoped, tag = 'scratch operand']
  %s0 = inlined_call_operand.hbm [shape: f32[8,8,128], index: 0, kind: input, shape index: {}]
  %s1 = inlined_call_operand.hbm [shape: f32[128,512], index: 1, kind: input, shape index: {}]
  %s2 = inlined_call_operand.hbm [shape: f32[128,512], index: 2, kind: input, shape index: {}]
  %s3 = inlined_call_operand.vmem [shape: f32[1,512], index: 3, kind: input, shape index: {}]
  %s4 = inlined_call_operand.hbm [shape: f32[128,512], index: 4, kind: input, shape index: {}]
  %s5 = inlined_call_operand.hbm [shape: f32[128,512], index: 5, kind: input, shape index: {}]
  %s6 = inlined_call_operand.vmem [shape: f32[1,512], index: 6, kind: input, shape index: {}]
  %s7 = inlined_call_operand.hbm [shape: f32[128,128], index: 7, kind: input, shape index: {}]
  %s8 = inlined_call_operand.vmem [shape: f32[1,128], index: 8, kind: input, shape index: {}]
  %s9 = inlined_call_operand.hbm [shape: f32[8,128], index: 9, kind: output, shape index: {}]
  %s10 = sld [smem:[#allocation0]]
  $region70: #{tpu_custom_call.1} parent=0
    _
  %s12 = ssub.s32 1, %s10
  %s13 = scalar_select 0, %s12, %s10
  $region1: #{tpu_custom_call.1} parent=0
    #allocation4 [shape = 'u8[32768]{0}', space=vmem, size = 0x8000, scoped, tag = 'input window, operand 0, single buffered']
    #allocation5 [shape = 's32[1]{0}', space=sflag, size = 0x4, scoped, tag = 'scoped memory for tpu_custom_call.1']
    #allocation6 [shape = 's32[1]{0}', space=sflag, size = 0x4, scoped, tag = 'scoped memory for tpu_custom_call.1']
    #allocation7 [shape = 'u8[262144]{0}', space=vmem, size = 0x40000, scoped, tag = 'input window, operand 1, single buffered']
    #allocation8 [shape = 's32[1]{0}', space=sflag, size = 0x4, scoped, tag = 'scoped memory for tpu_custom_call.1']
    #allocation9 [shape = 'u8[262144]{0}', space=vmem, size = 0x40000, scoped, tag = 'input window, operand 2, single buffered']
    #allocation10 [shape = 'u8[262144]{0}', space=vmem, size = 0x40000, scoped, tag = 'input window, operand 4, single buffered']
    #allocation11 [shape = 's32[1]{0}', space=sflag, size = 0x4, scoped, tag = 'scoped memory for tpu_custom_call.1']
    #allocation12 [shape = 'u8[262144]{0}', space=vmem, size = 0x40000, scoped, tag = 'input window, operand 5, single buffered']
    #allocation13 [shape = 'u8[65536]{0}', space=vmem, size = 0x10000, scoped, tag = 'input window, operand 7, single buffered']
    #allocation14 [shape = 's32[1]{0}', space=sflag, size = 0x4, scoped, tag = 'scoped memory for tpu_custom_call.1']
    #allocation15 [shape = 'u8[4096]{0}', space=vmem, size = 0x1000, scoped, tag = 'output window, operand 0, single buffered']
    %14 = vsyncpa [#allocation5], 0
    %15 = vsyncpa [#allocation8], 0
    %16 = vsyncpa [#allocation11], 0
    %17 = vsyncpa [#allocation14], 0
    %18 = vsyncpa [#allocation6], 0
    // Predicated region
    $region2: #{tpu_custom_call.1} parent=1 // pred_check
      _
    $region3: #{tpu_custom_call.1} parent=1 // pred_check_branch
      %20 = sbr.rel (0) target = $region5
    $region4: #{tpu_custom_call.1} parent=1 // pred_region
      %s22 = ssub.s32 1024, 1024
      %23 = vsyncadd [#allocation5], %s22
      %s24 = sshll.u32 [#allocation4], 4
      %s25 = int_to_ptr.vmem [resolvable:$true] %s24
      %30 = dma.hbm_to_vmem [thread:$0]  %s0, 1024, %s25, [#allocation5], 128, 128, 8
    $region5: #{tpu_custom_call.1} parent=1 // pred_fallthru
      _
    // Predicated region
    $region6: #{tpu_custom_call.1} parent=1 // pred_check
      _
    $region7: #{tpu_custom_call.1} parent=1 // pred_check_branch
      %32 = sbr.rel (0) target = $region9
    $region8: #{tpu_custom_call.1} parent=1 // pred_region
      %s34 = ssub.s32 8192, 8192
      %35 = vsyncadd [#allocation8], %s34
      %s36 = sshll.u32 [#allocation7], 4
      %s37 = int_to_ptr.vmem [resolvable:$true] %s36
      %42 = dma.hbm_to_vmem [thread:$0]  %s1, 8192, %s37, [#allocation8], 512, 512, 32
    $region9: #{tpu_custom_call.1} parent=1 // pred_fallthru
      _
    // Predicated region
    $region10: #{tpu_custom_call.1} parent=1 // pred_check
      _
    $region11: #{tpu_custom_call.1} parent=1 // pred_check_branch
      %44 = sbr.rel (0) target = $region13
    $region12: #{tpu_custom_call.1} parent=1 // pred_region
      %s46 = ssub.s32 8192, 8192
      %47 = vsyncadd [#allocation8], %s46
      %s48 = sshll.u32 [#allocation9], 4
      %s49 = int_to_ptr.vmem [resolvable:$true] %s48
      %54 = dma.hbm_to_vmem [thread:$0]  %s2, 8192, %s49, [#allocation8], 512, 512, 32
    $region13: #{tpu_custom_call.1} parent=1 // pred_fallthru
      _
    // Predicated region
    $region14: #{tpu_custom_call.1} parent=1 // pred_check
      _
    $region15: #{tpu_custom_call.1} parent=1 // pred_check_branch
      %56 = sbr.rel (0) target = $region17
    $region16: #{tpu_custom_call.1} parent=1 // pred_region
      _
    $region17: #{tpu_custom_call.1} parent=1 // pred_fallthru
      _
    // Predicated region
    $region18: #{tpu_custom_call.1} parent=1 // pred_check
      _
    $region19: #{tpu_custom_call.1} parent=1 // pred_check_branch
      %58 = sbr.rel (0) target = $region21
    $region20: #{tpu_custom_call.1} parent=1 // pred_region
      %s60 = ssub.s32 8192, 8192
      %61 = vsyncadd [#allocation11], %s60
      %s62 = sshll.u32 [#allocation10], 4
      %s63 = int_to_ptr.vmem [resolvable:$true] %s62
      %68 = dma.hbm_to_vmem [thread:$0]  %s4, 8192, %s63, [#allocation11], 512, 512, 32
    $region21: #{tpu_custom_call.1} parent=1 // pred_fallthru
      _
    // Predicated region
    $region22: #{tpu_custom_call.1} parent=1 // pred_check
      _
    $region23: #{tpu_custom_call.1} parent=1 // pred_check_branch
      %70 = sbr.rel (0) target = $region25
    $region24: #{tpu_custom_call.1} parent=1 // pred_region
      %s72 = ssub.s32 8192, 8192
      %73 = vsyncadd [#allocation11], %s72
      %s74 = sshll.u32 [#allocation12], 4
      %s75 = int_to_ptr.vmem [resolvable:$true] %s74
      %80 = dma.hbm_to_vmem [thread:$0]  %s5, 8192, %s75, [#allocation11], 512, 512, 32
    $region25: #{tpu_custom_call.1} parent=1 // pred_fallthru
      _
    // Predicated region
    $region26: #{tpu_custom_call.1} parent=1 // pred_check
      _
    $region27: #{tpu_custom_call.1} parent=1 // pred_check_branch
      %82 = sbr.rel (0) target = $region29
    $region28: #{tpu_custom_call.1} parent=1 // pred_region
      _
    $region29: #{tpu_custom_call.1} parent=1 // pred_fallthru
      _
    // Predicated region
    $region30: #{tpu_custom_call.1} parent=1 // pred_check
      _
    $region31: #{tpu_custom_call.1} parent=1 // pred_check_branch
      %84 = sbr.rel (0) target = $region33
    $region32: #{tpu_custom_call.1} parent=1 // pred_region
      %s86 = ssub.s32 2048, 2048
      %87 = vsyncadd [#allocation14], %s86
      %s88 = sshll.u32 [#allocation13], 4
      %s89 = int_to_ptr.vmem [resolvable:$true] %s88
      %94 = dma.hbm_to_vmem [thread:$0]  %s7, 2048, %s89, [#allocation14], 128, 128, 8
    $region33: #{tpu_custom_call.1} parent=1 // pred_fallthru
      _
    // Predicated region
    $region34: #{tpu_custom_call.1} parent=1 // pred_check
      _
    $region35: #{tpu_custom_call.1} parent=1 // pred_check_branch
      %96 = sbr.rel (0) target = $region37
    $region36: #{tpu_custom_call.1} parent=1 // pred_region
      _
    $region37: #{tpu_custom_call.1} parent=1 // pred_fallthru
      _
    // Predicated region
    $region38: #{tpu_custom_call.1} parent=1 // pred_check
      _
    $region39: #{tpu_custom_call.1} parent=1 // pred_check_branch
      %98 = sbr.rel (0) target = $region41
    $region40: #{tpu_custom_call.1} parent=1 // pred_region
      %99 = dma.done [#allocation5], 1024
    $region41: #{tpu_custom_call.1} parent=1 // pred_fallthru
      _
    // Predicated region
    $region42: #{tpu_custom_call.1} parent=1 // pred_check
      _
    $region43: #{tpu_custom_call.1} parent=1 // pred_check_branch
      %101 = sbr.rel (0) target = $region45
    $region44: #{tpu_custom_call.1} parent=1 // pred_region
      %102 = dma.done [#allocation8], 8192
    $region45: #{tpu_custom_call.1} parent=1 // pred_fallthru
      _
    // Predicated region
    $region46: #{tpu_custom_call.1} parent=1 // pred_check
      _
    $region47: #{tpu_custom_call.1} parent=1 // pred_check_branch
      %104 = sbr.rel (0) target = $region49
    $region48: #{tpu_custom_call.1} parent=1 // pred_region
      %105 = dma.done [#allocation8], 8192
    $region49: #{tpu_custom_call.1} parent=1 // pred_fallthru
      _
    // Predicated region
    $region50: #{tpu_custom_call.1} parent=1 // pred_check
      _
    $region51: #{tpu_custom_call.1} parent=1 // pred_check_branch
      %107 = sbr.rel (0) target = $region53
    $region52: #{tpu_custom_call.1} parent=1 // pred_region
      %108 = dma.done [#allocation11], 8192
    $region53: #{tpu_custom_call.1} parent=1 // pred_fallthru
      _
    // Predicated region
    $region54: #{tpu_custom_call.1} parent=1 // pred_check
      _
    $region55: #{tpu_custom_call.1} parent=1 // pred_check_branch
      %110 = sbr.rel (0) target = $region57
    $region56: #{tpu_custom_call.1} parent=1 // pred_region
      %111 = dma.done [#allocation11], 8192
    $region57: #{tpu_custom_call.1} parent=1 // pred_fallthru
      _
    // Predicated region
    $region58: #{tpu_custom_call.1} parent=1 // pred_check
      _
    $region59: #{tpu_custom_call.1} parent=1 // pred_check_branch
      %113 = sbr.rel (0) target = $region61
    $region60: #{tpu_custom_call.1} parent=1 // pred_region
      %114 = dma.done [#allocation14], 2048
    $region61: #{tpu_custom_call.1} parent=1 // pred_fallthru
      _
    %v115 = vld [vmem:[#allocation4] sm:$0xff]
    %v116 = vld [vmem:[#allocation4 + $0x8] sm:$0xff]
    %v117 = vld [vmem:[#allocation4 + $0x10] sm:$0xff]
    %v118 = vld [vmem:[#allocation4 + $0x18] sm:$0xff]
    %v119 = vld [vmem:[#allocation4 + $0x20] sm:$0xff]
    %v120 = vld [vmem:[#allocation4 + $0x28] sm:$0xff]
    %v121 = vld [vmem:[#allocation4 + $0x30] sm:$0xff]
    %v122 = vld [vmem:[#allocation4 + $0x38] sm:$0xff]
    %v123 = vld [vmem:[#allocation7] sm:$0xff]
    %v124 = vld [vmem:[#allocation7 + $0x8] sm:$0xff]
    %v125 = vld [vmem:[#allocation7 + $0x10] sm:$0xff]
    %v126 = vld [vmem:[#allocation7 + $0x18] sm:$0xff]
    %v127 = vld [vmem:[#allocation7 + $0x20] sm:$0xff]
    %v128 = vld [vmem:[#allocation7 + $0x28] sm:$0xff]
    %v129 = vld [vmem:[#allocation7 + $0x30] sm:$0xff]
    %v130 = vld [vmem:[#allocation7 + $0x38] sm:$0xff]
    %v131 = vld [vmem:[#allocation7 + $0x40] sm:$0xff]
    %v132 = vld [vmem:[#allocation7 + $0x48] sm:$0xff]
    %v133 = vld [vmem:[#allocation7 + $0x50] sm:$0xff]
    %v134 = vld [vmem:[#allocation7 + $0x58] sm:$0xff]
    %v135 = vld [vmem:[#allocation7 + $0x60] sm:$0xff]
    %v136 = vld [vmem:[#allocation7 + $0x68] sm:$0xff]
    %v137 = vld [vmem:[#allocation7 + $0x70] sm:$0xff]
    %v138 = vld [vmem:[#allocation7 + $0x78] sm:$0xff]
    %v139 = vld [vmem:[#allocation7 + $0x80] sm:$0xff]
    %v140 = vld [vmem:[#allocation7 + $0x88] sm:$0xff]
    %v141 = vld [vmem:[#allocation7 + $0x90] sm:$0xff]
    %v142 = vld [vmem:[#allocation7 + $0x98] sm:$0xff]
    %v143 = vld [vmem:[#allocation7 + $0xa0] sm:$0xff]
    %v144 = vld [vmem:[#allocation7 + $0xa8] sm:$0xff]
    %v145 = vld [vmem:[#allocation7 + $0xb0] sm:$0xff]
    %v146 = vld [vmem:[#allocation7 + $0xb8] sm:$0xff]
    %v147 = vld [vmem:[#allocation7 + $0xc0] sm:$0xff]
    %v148 = vld [vmem:[#allocation7 + $0xc8] sm:$0xff]
    %v149 = vld [vmem:[#allocation7 + $0xd0] sm:$0xff]
    %v150 = vld [vmem:[#allocation7 + $0xd8] sm:$0xff]
    %v151 = vld [vmem:[#allocation7 + $0xe0] sm:$0xff]
    %v152 = vld [vmem:[#allocation7 + $0xe8] sm:$0xff]
    %v153 = vld [vmem:[#allocation7 + $0xf0] sm:$0xff]
    %v154 = vld [vmem:[#allocation7 + $0xf8] sm:$0xff]
    %v155 = vld [vmem:[#allocation7 + $0x100] sm:$0xff]
    %v156 = vld [vmem:[#allocation7 + $0x108] sm:$0xff]
    %v157 = vld [vmem:[#allocation7 + $0x110] sm:$0xff]
    %v158 = vld [vmem:[#allocation7 + $0x118] sm:$0xff]
    %v159 = vld [vmem:[#allocation7 + $0x120] sm:$0xff]
    %v160 = vld [vmem:[#allocation7 + $0x128] sm:$0xff]
    %v161 = vld [vmem:[#allocation7 + $0x130] sm:$0xff]
    %v162 = vld [vmem:[#allocation7 + $0x138] sm:$0xff]
    %v163 = vld [vmem:[#allocation7 + $0x140] sm:$0xff]
    %v164 = vld [vmem:[#allocation7 + $0x148] sm:$0xff]
    %v165 = vld [vmem:[#allocation7 + $0x150] sm:$0xff]
    %v166 = vld [vmem:[#allocation7 + $0x158] sm:$0xff]
    %v167 = vld [vmem:[#allocation7 + $0x160] sm:$0xff]
    %v168 = vld [vmem:[#allocation7 + $0x168] sm:$0xff]
    %v169 = vld [vmem:[#allocation7 + $0x170] sm:$0xff]
    %v170 = vld [vmem:[#allocation7 + $0x178] sm:$0xff]
    %v171 = vld [vmem:[#allocation7 + $0x180] sm:$0xff]
    %v172 = vld [vmem:[#allocation7 + $0x188] sm:$0xff]
    %v173 = vld [vmem:[#allocation7 + $0x190] sm:$0xff]
    %v174 = vld [vmem:[#allocation7 + $0x198] sm:$0xff]
    %v175 = vld [vmem:[#allocation7 + $0x1a0] sm:$0xff]
    %v176 = vld [vmem:[#allocation7 + $0x1a8] sm:$0xff]
    %v177 = vld [vmem:[#allocation7 + $0x1b0] sm:$0xff]
    %v178 = vld [vmem:[#allocation7 + $0x1b8] sm:$0xff]
    %v179 = vld [vmem:[#allocation7 + $0x1c0] sm:$0xff]
    %v180 = vld [vmem:[#allocation7 + $0x1c8] sm:$0xff]
    %v181 = vld [vmem:[#allocation7 + $0x1d0] sm:$0xff]
    %v182 = vld [vmem:[#allocation7 + $0x1d8] sm:$0xff]
    %v183 = vld [vmem:[#allocation7 + $0x1e0] sm:$0xff]
    %v184 = vld [vmem:[#allocation7 + $0x1e8] sm:$0xff]
    %v185 = vld [vmem:[#allocation7 + $0x1f0] sm:$0xff]
    %v186 = vld [vmem:[#allocation7 + $0x1f8] sm:$0xff]
    %v187 = vld [vmem:[%s3] sm:$0xf]
    %v189 = vlaneseq
    %v190 = vshrl.u32 %v189, 7
    %v191 = vsub.s32 0, %v190
    %v192 = vrot.slane %v187, %v191
    %v193 = vlaneseq
    %v194 = vshrl.u32 %v193, 7
    %v195 = vsub.s32 1, %v194
    %v196 = vrot.slane %v187, %v195
    %v197 = vlaneseq
    %v198 = vshrl.u32 %v197, 7
    %v199 = vsub.s32 2, %v198
    %v200 = vrot.slane %v187, %v199
    %v201 = vlaneseq
    %v202 = vshrl.u32 %v201, 7
    %v203 = vsub.s32 3, %v202
    %v204 = vrot.slane %v187, %v203
    %209 = vmatprep.subr.mxu0 %v184
    %210 = vmatpush1.msra.mxu0 %v183
    %211 = vmatprep.subr.mxu0 %v180
    %212 = vmatpush1.msra.mxu0 %v179
    %213 = vmatprep.subr.mxu0 %v176
    %214 = vmatpush1.msra.mxu0 %v175
    %215 = vmatprep.subr.mxu0 %v172
    %216 = vmatpush1.msra.mxu0 %v171
    %217 = vmatprep.subr.mxu0 %v168
    %218 = vmatpush1.msra.mxu0 %v167
    %219 = vmatprep.subr.mxu0 %v164
    %220 = vmatpush1.msra.mxu0 %v163
    %221 = vmatprep.subr.mxu0 %v160
    %222 = vmatpush1.msra.mxu0 %v159
    %223 = vmatprep.subr.mxu0 %v156
    %224 = vmatpush1.msra.mxu0 %v155
    %225 = vmatprep.subr.mxu0 %v152
    %226 = vmatpush1.msra.mxu0 %v151
    %227 = vmatprep.subr.mxu0 %v148
    %228 = vmatpush1.msra.mxu0 %v147
    %229 = vmatprep.subr.mxu0 %v144
    %230 = vmatpush1.msra.mxu0 %v143
    %231 = vmatprep.subr.mxu0 %v140
    %232 = vmatpush1.msra.mxu0 %v139
    %233 = vmatprep.subr.mxu0 %v136
    %234 = vmatpush1.msra.mxu0 %v135
    %235 = vmatprep.subr.mxu0 %v132
    %236 = vmatpush1.msra.mxu0 %v131
    %237 = vmatprep.subr.mxu0 %v128
    %238 = vmatpush1.msra.mxu0 %v127
    %239 = vmatprep.subr.mxu0 %v124
    %240 = vmatpush1.msra.mxu0 %v123
    %241 = vmatprep.subr.mxu0 0.0
    %242 = vmatpush2.msra.mxu0 0.0
    %243 = vmatprep.subr.mxu0 0.0
    %244 = vmatpush2.msra.mxu0 0.0
    %245 = vmatprep.subr.mxu0 0.0
    %246 = vmatpush2.msra.mxu0 0.0
    %247 = vmatprep.subr.mxu0 0.0
    %248 = vmatpush2.msra.mxu0 0.0
    %249 = vmatprep.subr.mxu0 0.0
    %250 = vmatpush2.msra.mxu0 0.0
    %251 = vmatprep.subr.mxu0 0.0
    %252 = vmatpush2.msra.mxu0 0.0
    %253 = vmatprep.subr.mxu0 0.0
    %254 = vmatpush2.msra.mxu0 0.0
    %255 = vmatprep.subr.mxu0 0.0
    %256 = vmatpush2.msra.mxu0 0.0
    %257 = vmatprep.subr.mxu0 0.0
    %258 = vmatpush2.msra.mxu0 0.0
    %259 = vmatprep.subr.mxu0 0.0
    %260 = vmatpush2.msra.mxu0 0.0
    %261 = vmatprep.subr.mxu0 0.0
    %262 = vmatpush2.msra.mxu0 0.0
    %263 = vmatprep.subr.mxu0 0.0
    %264 = vmatpush2.msra.mxu0 0.0
    %265 = vmatprep.subr.mxu0 0.0
    %266 = vmatpush2.msra.mxu0 0.0
    %267 = vmatprep.subr.mxu0 0.0
    %268 = vmatpush2.msra.mxu0 0.0
    %269 = vmatprep.subr.mxu0 0.0
    %270 = vmatpush2.msra.mxu0 0.0
    %271 = vmatprep.subr.mxu0 0.0
    %272 = vmatpush2.msra.mxu0 0.0
    %273 = vmatprep.mubr.f32.mxu0 0.0
    %274 = vmatmul.mubr.f32.gmra.mxu0 %v115
    %v275 = vpop.f32.mrf.mxu0
    %v276 = vadd.f32 %v192, %v275
    %v277 = vpop.f32.mrf.mxu0
    %v278 = vadd.f32 %v196, %v277
    %279 = vmatprep.mubr.f32.mxu0 0.0
    %280 = vmatmul.mubr.f32.gmra.mxu0 %v116
    %v281 = vpop.f32.mrf.mxu0
    %v282 = vadd.f32 %v192, %v281
    %v283 = vpop.f32.mrf.mxu0
    %v284 = vadd.f32 %v196, %v283
    %285 = vmatprep.mubr.f32.mxu0 0.0
    %286 = vmatmul.mubr.f32.gmra.mxu0 %v117
    %v287 = vpop.f32.mrf.mxu0
    %v288 = vadd.f32 %v192, %v287
    %v289 = vpop.f32.mrf.mxu0
    %v290 = vadd.f32 %v196, %v289
    %291 = vmatprep.mubr.f32.mxu0 0.0
    %292 = vmatmul.mubr.f32.gmra.mxu0 %v118
    %v293 = vpop.f32.mrf.mxu0
    %v294 = vadd.f32 %v192, %v293
    %v295 = vpop.f32.mrf.mxu0
    %v296 = vadd.f32 %v196, %v295
    %297 = vmatprep.mubr.f32.mxu0 0.0
    %298 = vmatmul.mubr.f32.gmra.mxu0 %v119
    %v299 = vpop.f32.mrf.mxu0
    %v300 = vadd.f32 %v192, %v299
    %v301 = vpop.f32.mrf.mxu0
    %v302 = vadd.f32 %v196, %v301
    %303 = vmatprep.mubr.f32.mxu0 0.0
    %304 = vmatmul.mubr.f32.gmra.mxu0 %v120
    %v305 = vpop.f32.mrf.mxu0
    %v306 = vadd.f32 %v192, %v305
    %v307 = vpop.f32.mrf.mxu0
    %v308 = vadd.f32 %v196, %v307
    %309 = vmatprep.mubr.f32.mxu0 0.0
    %310 = vmatmul.mubr.f32.gmra.mxu0 %v121
    %v311 = vpop.f32.mrf.mxu0
    %v312 = vadd.f32 %v192, %v311
    %v313 = vpop.f32.mrf.mxu0
    %v314 = vadd.f32 %v196, %v313
    %315 = vmatprep.mubr.f32.mxu0 0.0
    %316 = vmatmul.mubr.f32.gmra.mxu0 %v122
    %v317 = vpop.f32.mrf.mxu0
    %v318 = vadd.f32 %v192, %v317
    %v319 = vpop.f32.mrf.mxu0
    %v320 = vadd.f32 %v196, %v319
    %321 = vdwg.mxu0
    %322 = vmatprep.subr.mxu0 %v186
    %323 = vmatpush1.msra.mxu0 %v185
    %324 = vmatprep.subr.mxu0 %v182
    %325 = vmatpush1.msra.mxu0 %v181
    %326 = vmatprep.subr.mxu0 %v178
    %327 = vmatpush1.msra.mxu0 %v177
    %328 = vmatprep.subr.mxu0 %v174
    %329 = vmatpush1.msra.mxu0 %v173
    %330 = vmatprep.subr.mxu0 %v170
    %331 = vmatpush1.msra.mxu0 %v169
    %332 = vmatprep.subr.mxu0 %v166
    %333 = vmatpush1.msra.mxu0 %v165
    %334 = vmatprep.subr.mxu0 %v162
    %335 = vmatpush1.msra.mxu0 %v161
    %336 = vmatprep.subr.mxu0 %v158
    %337 = vmatpush1.msra.mxu0 %v157
    %338 = vmatprep.subr.mxu0 %v154
    %339 = vmatpush1.msra.mxu0 %v153
    %340 = vmatprep.subr.mxu0 %v150
    %341 = vmatpush1.msra.mxu0 %v149
    %342 = vmatprep.subr.mxu0 %v146
    %343 = vmatpush1.msra.mxu0 %v145
    %344 = vmatprep.subr.mxu0 %v142
    %345 = vmatpush1.msra.mxu0 %v141
    %346 = vmatprep.subr.mxu0 %v138
    %347 = vmatpush1.msra.mxu0 %v137
    %348 = vmatprep.subr.mxu0 %v134
    %349 = vmatpush1.msra.mxu0 %v133
    %350 = vmatprep.subr.mxu0 %v130
    %351 = vmatpush1.msra.mxu0 %v129
    %352 = vmatprep.subr.mxu0 %v126
    %353 = vmatpush1.msra.mxu0 %v125
    %354 = vmatprep.subr.mxu0 0.0
    %355 = vmatpush2.msra.mxu0 0.0
    %356 = vmatprep.subr.mxu0 0.0
    %357 = vmatpush2.msra.mxu0 0.0
    %358 = vmatprep.subr.mxu0 0.0
    %359 = vmatpush2.msra.mxu0 0.0
    %360 = vmatprep.subr.mxu0 0.0
    %361 = vmatpush2.msra.mxu0 0.0
    %362 = vmatprep.subr.mxu0 0.0
    %363 = vmatpush2.msra.mxu0 0.0
    %364 = vmatprep.subr.mxu0 0.0
    %365 = vmatpush2.msra.mxu0 0.0
    %366 = vmatprep.subr.mxu0 0.0
    %367 = vmatpush2.msra.mxu0 0.0
    %368 = vmatprep.subr.mxu0 0.0
    %369 = vmatpush2.msra.mxu0 0.0
    %370 = vmatprep.subr.mxu0 0.0
    %371 = vmatpush2.msra.mxu0 0.0
    %372 = vmatprep.subr.mxu0 0.0
    %373 = vmatpush2.msra.mxu0 0.0
    %374 = vmatprep.subr.mxu0 0.0
    %375 = vmatpush2.msra.mxu0 0.0
    %376 = vmatprep.subr.mxu0 0.0
    %377 = vmatpush2.msra.mxu0 0.0
    %378 = vmatprep.subr.mxu0 0.0
    %379 = vmatpush2.msra.mxu0 0.0
    %380 = vmatprep.subr.mxu0 0.0
    %381 = vmatpush2.msra.mxu0 0.0
    %382 = vmatprep.subr.mxu0 0.0
    %383 = vmatpush2.msra.mxu0 0.0
    %384 = vmatprep.subr.mxu0 0.0
    %385 = vmatpush2.msra.mxu0 0.0
    %386 = vmatprep.mubr.f32.mxu0 0.0
    %387 = vmatmul.mubr.f32.gmra.mxu0 %v115
    %v388 = vpop.f32.mrf.mxu0
    %v389 = vadd.f32 %v200, %v388
    %v390 = vpop.f32.mrf.mxu0
    %v391 = vadd.f32 %v204, %v390
    %392 = vmatprep.mubr.f32.mxu0 0.0
    %393 = vmatmul.mubr.f32.gmra.mxu0 %v116
    %v394 = vpop.f32.mrf.mxu0
    %v395 = vadd.f32 %v200, %v394
    %v396 = vpop.f32.mrf.mxu0
    %v397 = vadd.f32 %v204, %v396
    %398 = vmatprep.mubr.f32.mxu0 0.0
    %399 = vmatmul.mubr.f32.gmra.mxu0 %v117
    %v400 = vpop.f32.mrf.mxu0
    %v401 = vadd.f32 %v200, %v400
    %v402 = vpop.f32.mrf.mxu0
    %v403 = vadd.f32 %v204, %v402
    %404 = vmatprep.mubr.f32.mxu0 0.0
    %405 = vmatmul.mubr.f32.gmra.mxu0 %v118
    %v406 = vpop.f32.mrf.mxu0
    %v407 = vadd.f32 %v200, %v406
    %v408 = vpop.f32.mrf.mxu0
    %v409 = vadd.f32 %v204, %v408
    %410 = vmatprep.mubr.f32.mxu0 0.0
    %411 = vmatmul.mubr.f32.gmra.mxu0 %v119
    %v412 = vpop.f32.mrf.mxu0
    %v413 = vadd.f32 %v200, %v412
    %v414 = vpop.f32.mrf.mxu0
    %v415 = vadd.f32 %v204, %v414
    %416 = vmatprep.mubr.f32.mxu0 0.0
    %417 = vmatmul.mubr.f32.gmra.mxu0 %v120
    %v418 = vpop.f32.mrf.mxu0
    %v419 = vadd.f32 %v200, %v418
    %v420 = vpop.f32.mrf.mxu0
    %v421 = vadd.f32 %v204, %v420
    %422 = vmatprep.mubr.f32.mxu0 0.0
    %423 = vmatmul.mubr.f32.gmra.mxu0 %v121
    %v424 = vpop.f32.mrf.mxu0
    %v425 = vadd.f32 %v200, %v424
    %v426 = vpop.f32.mrf.mxu0
    %v427 = vadd.f32 %v204, %v426
    %428 = vmatprep.mubr.f32.mxu0 0.0
    %429 = vmatmul.mubr.f32.gmra.mxu0 %v122
    %v430 = vpop.f32.mrf.mxu0
    %v431 = vadd.f32 %v200, %v430
    %v432 = vpop.f32.mrf.mxu0
    %v433 = vadd.f32 %v204, %v432
    %434 = vdwg.mxu0
    %435 = vst [vmem:[#allocation2] sm:$0xff] %v276
    %436 = vst [vmem:[#allocation2 + $0x8] sm:$0xff] %v278
    %437 = vst [vmem:[#allocation2 + $0x10] sm:$0xff] %v389
    %438 = vst [vmem:[#allocation2 + $0x18] sm:$0xff] %v391
    %439 = vst [vmem:[#allocation2 + $0x20] sm:$0xff] %v282
    %440 = vst [vmem:[#allocation2 + $0x28] sm:$0xff] %v284
    %441 = vst [vmem:[#allocation2 + $0x30] sm:$0xff] %v395
    %442 = vst [vmem:[#allocation2 + $0x38] sm:$0xff] %v397
    %443 = vst [vmem:[#allocation2 + $0x40] sm:$0xff] %v288
    %444 = vst [vmem:[#allocation2 + $0x48] sm:$0xff] %v290
    %445 = vst [vmem:[#allocation2 + $0x50] sm:$0xff] %v401
    %446 = vst [vmem:[#allocation2 + $0x58] sm:$0xff] %v403
    %447 = vst [vmem:[#allocation2 + $0x60] sm:$0xff] %v294
    %448 = vst [vmem:[#allocation2 + $0x68] sm:$0xff] %v296
    %449 = vst [vmem:[#allocation2 + $0x70] sm:$0xff] %v407
    %450 = vst [vmem:[#allocation2 + $0x78] sm:$0xff] %v409
    %451 = vst [vmem:[#allocation2 + $0x80] sm:$0xff] %v300
    %452 = vst [vmem:[#allocation2 + $0x88] sm:$0xff] %v302
    %453 = vst [vmem:[#allocation2 + $0x90] sm:$0xff] %v413
    %454 = vst [vmem:[#allocation2 + $0x98] sm:$0xff] %v415
    %455 = vst [vmem:[#allocation2 + $0xa0] sm:$0xff] %v306
    %456 = vst [vmem:[#allocation2 + $0xa8] sm:$0xff] %v308
    %457 = vst [vmem:[#allocation2 + $0xb0] sm:$0xff] %v419
    %458 = vst [vmem:[#allocation2 + $0xb8] sm:$0xff] %v421
    %459 = vst [vmem:[#allocation2 + $0xc0] sm:$0xff] %v312
    %460 = vst [vmem:[#allocation2 + $0xc8] sm:$0xff] %v314
    %461 = vst [vmem:[#allocation2 + $0xd0] sm:$0xff] %v425
    %462 = vst [vmem:[#allocation2 + $0xd8] sm:$0xff] %v427
    %463 = vst [vmem:[#allocation2 + $0xe0] sm:$0xff] %v318
    %464 = vst [vmem:[#allocation2 + $0xe8] sm:$0xff] %v320
    %465 = vst [vmem:[#allocation2 + $0xf0] sm:$0xff] %v431
    %466 = vst [vmem:[#allocation2 + $0xf8] sm:$0xff] %v433
    %v467 = vld [vmem:[#allocation2] sm:$0xff]
    %v468 = vld [vmem:[#allocation2 + $0x8] sm:$0xff]
    %v469 = vld [vmem:[#allocation2 + $0x10] sm:$0xff]
    %v470 = vld [vmem:[#allocation2 + $0x18] sm:$0xff]
    %v471 = vld [vmem:[#allocation9] sm:$0xff]
    %v472 = vld [vmem:[#allocation9 + $0x8] sm:$0xff]
    %v473 = vld [vmem:[#allocation9 + $0x10] sm:$0xff]
    %v474 = vld [vmem:[#allocation9 + $0x18] sm:$0xff]
    %v475 = vld [vmem:[#allocation9 + $0x20] sm:$0xff]
    %v476 = vld [vmem:[#allocation9 + $0x28] sm:$0xff]
    %v477 = vld [vmem:[#allocation9 + $0x30] sm:$0xff]
    %v478 = vld [vmem:[#allocation9 + $0x38] sm:$0xff]
    %v479 = vld [vmem:[#allocation9 + $0x40] sm:$0xff]
    %v480 = vld [vmem:[#allocation9 + $0x48] sm:$0xff]
    %v481 = vld [vmem:[#allocation9 + $0x50] sm:$0xff]
    %v482 = vld [vmem:[#allocation9 + $0x58] sm:$0xff]
    %v483 = vld [vmem:[#allocation9 + $0x60] sm:$0xff]
    %v484 = vld [vmem:[#allocation9 + $0x68] sm:$0xff]
    %v485 = vld [vmem:[#allocation9 + $0x70] sm:$0xff]
    %v486 = vld [vmem:[#allocation9 + $0x78] sm:$0xff]
    %v487 = vld [vmem:[#allocation9 + $0x80] sm:$0xff]
    %v488 = vld [vmem:[#allocation9 + $0x88] sm:$0xff]
    %v489 = vld [vmem:[#allocation9 + $0x90] sm:$0xff]
    %v490 = vld [vmem:[#allocation9 + $0x98] sm:$0xff]
    %v491 = vld [vmem:[#allocation9 + $0xa0] sm:$0xff]
    %v492 = vld [vmem:[#allocation9 + $0xa8] sm:$0xff]
    %v493 = vld [vmem:[#allocation9 + $0xb0] sm:$0xff]
    %v494 = vld [vmem:[#allocation9 + $0xb8] sm:$0xff]
    %v495 = vld [vmem:[#allocation9 + $0xc0] sm:$0xff]
    %v496 = vld [vmem:[#allocation9 + $0xc8] sm:$0xff]
    %v497 = vld [vmem:[#allocation9 + $0xd0] sm:$0xff]
    %v498 = vld [vmem:[#allocation9 + $0xd8] sm:$0xff]
    %v499 = vld [vmem:[#allocation9 + $0xe0] sm:$0xff]
    %v500 = vld [vmem:[#allocation9 + $0xe8] sm:$0xff]
    %v501 = vld [vmem:[#allocation9 + $0xf0] sm:$0xff]
    %v502 = vld [vmem:[#allocation9 + $0xf8] sm:$0xff]
    %v503 = vld [vmem:[#allocation9 + $0x100] sm:$0xff]
    %v504 = vld [vmem:[#allocation9 + $0x108] sm:$0xff]
    %v505 = vld [vmem:[#allocation9 + $0x110] sm:$0xff]
    %v506 = vld [vmem:[#allocation9 + $0x118] sm:$0xff]
    %v507 = vld [vmem:[#allocation9 + $0x120] sm:$0xff]
    %v508 = vld [vmem:[#allocation9 + $0x128] sm:$0xff]
    %v509 = vld [vmem:[#allocation9 + $0x130] sm:$0xff]
    %v510 = vld [vmem:[#allocation9 + $0x138] sm:$0xff]
    %v511 = vld [vmem:[#allocation9 + $0x140] sm:$0xff]
    %v512 = vld [vmem:[#allocation9 + $0x148] sm:$0xff]
    %v513 = vld [vmem:[#allocation9 + $0x150] sm:$0xff]
    %v514 = vld [vmem:[#allocation9 + $0x158] sm:$0xff]
    %v515 = vld [vmem:[#allocation9 + $0x160] sm:$0xff]
    %v516 = vld [vmem:[#allocation9 + $0x168] sm:$0xff]
    %v517 = vld [vmem:[#allocation9 + $0x170] sm:$0xff]
    %v518 = vld [vmem:[#allocation9 + $0x178] sm:$0xff]
    %v519 = vld [vmem:[#allocation9 + $0x180] sm:$0xff]
    %v520 = vld [vmem:[#allocation9 + $0x188] sm:$0xff]
    %v521 = vld [vmem:[#allocation9 + $0x190] sm:$0xff]
    %v522 = vld [vmem:[#allocation9 + $0x198] sm:$0xff]
    %v523 = vld [vmem:[#allocation9 + $0x1a0] sm:$0xff]
    %v524 = vld [vmem:[#allocation9 + $0x1a8] sm:$0xff]
    %v525 = vld [vmem:[#allocation9 + $0x1b0] sm:$0xff]
    %v526 = vld [vmem:[#allocation9 + $0x1b8] sm:$0xff]
    %v527 = vld [vmem:[#allocation9 + $0x1c0] sm:$0xff]
    %v528 = vld [vmem:[#allocation9 + $0x1c8] sm:$0xff]
    %v529 = vld [vmem:[#allocation9 + $0x1d0] sm:$0xff]
    %v530 = vld [vmem:[#allocation9 + $0x1d8] sm:$0xff]
    %v531 = vld [vmem:[#allocation9 + $0x1e0] sm:$0xff]
    %v532 = vld [vmem:[#allocation9 + $0x1e8] sm:$0xff]
    %v533 = vld [vmem:[#allocation9 + $0x1f0] sm:$0xff]
    %v534 = vld [vmem:[#allocation9 + $0x1f8] sm:$0xff]
    %535 = vmatprep.subr.mxu0 %v532
    %536 = vmatpush1.msra.mxu0 %v531
    %537 = vmatprep.subr.mxu0 %v528
    %538 = vmatpush1.msra.mxu0 %v527
    %539 = vmatprep.subr.mxu0 %v524
    %540 = vmatpush1.msra.mxu0 %v523
    %541 = vmatprep.subr.mxu0 %v520
    %542 = vmatpush1.msra.mxu0 %v519
    %543 = vmatprep.subr.mxu0 %v516
    %544 = vmatpush1.msra.mxu0 %v515
    %545 = vmatprep.subr.mxu0 %v512
    %546 = vmatpush1.msra.mxu0 %v511
    %547 = vmatprep.subr.mxu0 %v508
    %548 = vmatpush1.msra.mxu0 %v507
    %549 = vmatprep.subr.mxu0 %v504
    %550 = vmatpush1.msra.mxu0 %v503
    %551 = vmatprep.subr.mxu0 %v500
    %552 = vmatpush1.msra.mxu0 %v499
    %553 = vmatprep.subr.mxu0 %v496
    %554 = vmatpush1.msra.mxu0 %v495
    %555 = vmatprep.subr.mxu0 %v492
    %556 = vmatpush1.msra.mxu0 %v491
    %557 = vmatprep.subr.mxu0 %v488
    %558 = vmatpush1.msra.mxu0 %v487
    %559 = vmatprep.subr.mxu0 %v484
    %560 = vmatpush1.msra.mxu0 %v483
    %561 = vmatprep.subr.mxu0 %v480
    %562 = vmatpush1.msra.mxu0 %v479
    %563 = vmatprep.subr.mxu0 %v476
    %564 = vmatpush1.msra.mxu0 %v475
    %565 = vmatprep.subr.mxu0 %v472
    %566 = vmatpush1.msra.mxu0 %v471
    %567 = vmatprep.subr.mxu0 0.0
    %568 = vmatpush2.msra.mxu0 0.0
    %569 = vmatprep.subr.mxu0 0.0
    %570 = vmatpush2.msra.mxu0 0.0
    %571 = vmatprep.subr.mxu0 0.0
    %572 = vmatpush2.msra.mxu0 0.0
    %573 = vmatprep.subr.mxu0 0.0
    %574 = vmatpush2.msra.mxu0 0.0
    %575 = vmatprep.subr.mxu0 0.0
    %576 = vmatpush2.msra.mxu0 0.0
    %577 = vmatprep.subr.mxu0 0.0
    %578 = vmatpush2.msra.mxu0 0.0
    %579 = vmatprep.subr.mxu0 0.0
    %580 = vmatpush2.msra.mxu0 0.0
    %581 = vmatprep.subr.mxu0 0.0
    %582 = vmatpush2.msra.mxu0 0.0
    %583 = vmatprep.subr.mxu0 0.0
    %584 = vmatpush2.msra.mxu0 0.0
    %585 = vmatprep.subr.mxu0 0.0
    %586 = vmatpush2.msra.mxu0 0.0
    %587 = vmatprep.subr.mxu0 0.0
    %588 = vmatpush2.msra.mxu0 0.0
    %589 = vmatprep.subr.mxu0 0.0
    %590 = vmatpush2.msra.mxu0 0.0
    %591 = vmatprep.subr.mxu0 0.0
    %592 = vmatpush2.msra.mxu0 0.0
    %593 = vmatprep.subr.mxu0 0.0
    %594 = vmatpush2.msra.mxu0 0.0
    %595 = vmatprep.subr.mxu0 0.0
    %596 = vmatpush2.msra.mxu0 0.0
    %597 = vmatprep.subr.mxu0 0.0
    %598 = vmatpush2.msra.mxu0 0.0
    %599 = vmatprep.mubr.f32.mxu0 0.0
    %600 = vmatmul.mubr.f32.gmra.mxu0 0.0
    %v601 = vpop.f32.mrf.mxu0
    %v602 = vadd.f32 0.0, %v601
    %v603 = vpop.f32.mrf.mxu0
    %v604 = vadd.f32 0.0, %v603
    %605 = vdwg.mxu0
    %606 = vmatprep.subr.mxu0 %v534
    %607 = vmatpush1.msra.mxu0 %v533
    %608 = vmatprep.subr.mxu0 %v530
    %609 = vmatpush1.msra.mxu0 %v529
    %610 = vmatprep.subr.mxu0 %v526
    %611 = vmatpush1.msra.mxu0 %v525
    %612 = vmatprep.subr.mxu0 %v522
    %613 = vmatpush1.msra.mxu0 %v521
    %614 = vmatprep.subr.mxu0 %v518
    %615 = vmatpush1.msra.mxu0 %v517
    %616 = vmatprep.subr.mxu0 %v514
    %617 = vmatpush1.msra.mxu0 %v513
    %618 = vmatprep.subr.mxu0 %v510
    %619 = vmatpush1.msra.mxu0 %v509
    %620 = vmatprep.subr.mxu0 %v506
    %621 = vmatpush1.msra.mxu0 %v505
    %622 = vmatprep.subr.mxu0 %v502
    %623 = vmatpush1.msra.mxu0 %v501
    %624 = vmatprep.subr.mxu0 %v498
    %625 = vmatpush1.msra.mxu0 %v497
    %626 = vmatprep.subr.mxu0 %v494
    %627 = vmatpush1.msra.mxu0 %v493
    %628 = vmatprep.subr.mxu0 %v490
    %629 = vmatpush1.msra.mxu0 %v489
    %630 = vmatprep.subr.mxu0 %v486
    %631 = vmatpush1.msra.mxu0 %v485
    %632 = vmatprep.subr.mxu0 %v482
    %633 = vmatpush1.msra.mxu0 %v481
    %634 = vmatprep.subr.mxu0 %v478
    %635 = vmatpush1.msra.mxu0 %v477
    %636 = vmatprep.subr.mxu0 %v474
    %637 = vmatpush1.msra.mxu0 %v473
    %638 = vmatprep.subr.mxu0 0.0
    %639 = vmatpush2.msra.mxu0 0.0
    %640 = vmatprep.subr.mxu0 0.0
    %641 = vmatpush2.msra.mxu0 0.0
    %642 = vmatprep.subr.mxu0 0.0
    %643 = vmatpush2.msra.mxu0 0.0
    %644 = vmatprep.subr.mxu0 0.0
    %645 = vmatpush2.msra.mxu0 0.0
    %646 = vmatprep.subr.mxu0 0.0
    %647 = vmatpush2.msra.mxu0 0.0
    %648 = vmatprep.subr.mxu0 0.0
    %649 = vmatpush2.msra.mxu0 0.0
    %650 = vmatprep.subr.mxu0 0.0
    %651 = vmatpush2.msra.mxu0 0.0
    %652 = vmatprep.subr.mxu0 0.0
    %653 = vmatpush2.msra.mxu0 0.0
    %654 = vmatprep.subr.mxu0 0.0
    %655 = vmatpush2.msra.mxu0 0.0
    %656 = vmatprep.subr.mxu0 0.0
    %657 = vmatpush2.msra.mxu0 0.0
    %658 = vmatprep.subr.mxu0 0.0
    %659 = vmatpush2.msra.mxu0 0.0
    %660 = vmatprep.subr.mxu0 0.0
    %661 = vmatpush2.msra.mxu0 0.0
    %662 = vmatprep.subr.mxu0 0.0
    %663 = vmatpush2.msra.mxu0 0.0
    %664 = vmatprep.subr.mxu0 0.0
    %665 = vmatpush2.msra.mxu0 0.0
    %666 = vmatprep.subr.mxu0 0.0
    %667 = vmatpush2.msra.mxu0 0.0
    %668 = vmatprep.subr.mxu0 0.0
    %669 = vmatpush2.msra.mxu0 0.0
    %670 = vmatprep.mubr.f32.mxu0 0.0
    %671 = vmatmul.mubr.f32.gmra.mxu0 0.0
    %v672 = vpop.f32.mrf.mxu0
    %v673 = vadd.f32 0.0, %v672
    %v674 = vpop.f32.mrf.mxu0
    %v675 = vadd.f32 0.0, %v674
    %676 = vdwg.mxu0
    %v677 = vadd.f32 %v467, %v602
    %v678 = vadd.f32 %v468, %v604
    %v679 = vadd.f32 %v469, %v673
    %v680 = vadd.f32 %v470, %v675
    %v681 = vxor.u32 %v677, 2147483648
    %v682 = vmul.f32 %v681, 1.442695
    %v683 = vpow.pop %v682
    %v684 = vadd.f32 %v683, 1.0
    %v685 = vrcp.pop %v684
    %v686 = vmul.f32 1.0, %v685
    %v687 = vxor.u32 %v678, 2147483648
    %v688 = vmul.f32 %v687, 1.442695
    %v689 = vpow.pop %v688
    %v690 = vadd.f32 %v689, 1.0
    %v691 = vrcp.pop %v690
    %v692 = vmul.f32 1.0, %v691
    %v693 = vtanh.pop %v679
    %v694 = vxor.u32 %v680, 2147483648
    %v695 = vmul.f32 %v694, 1.442695
    %v696 = vpow.pop %v695
    %v697 = vadd.f32 %v696, 1.0
    %v698 = vrcp.pop %v697
    %v699 = vmul.f32 1.0, %v698
    %v700 = vmul.f32 %v692, 0.0
    %v701 = vmul.f32 %v686, %v693
    %v702 = vadd.f32 %v700, %v701
    %v703 = vtanh.pop %v702
    %v704 = vmul.f32 %v699, %v703
    %705 = vst [vmem:[#allocation3] sm:$0xff] %v704
    %s706 = scalar_lea.vmem [#allocation2], 32
    %v707 = vld [vmem:[%s706] sm:$0xff]
    %v708 = vld [vmem:[%s706 + $0x8] sm:$0xff]
    %v709 = vld [vmem:[%s706 + $0x10] sm:$0xff]
    %v710 = vld [vmem:[%s706 + $0x18] sm:$0xff]
    %v711 = vld [vmem:[#allocation9] sm:$0xff]
    %v712 = vld [vmem:[#allocation9 + $0x8] sm:$0xff]
    %v713 = vld [vmem:[#allocation9 + $0x10] sm:$0xff]
    %v714 = vld [vmem:[#allocation9 + $0x18] sm:$0xff]
    %v715 = vld [vmem:[#allocation9 + $0x20] sm:$0xff]
    %v716 = vld [vmem:[#allocation9 + $0x28] sm:$0xff]
    %v717 = vld [vmem:[#allocation9 + $0x30] sm:$0xff]
    %v718 = vld [vmem:[#allocation9 + $0x38] sm:$0xff]
    %v719 = vld [vmem:[#allocation9 + $0x40] sm:$0xff]
    %v720 = vld [vmem:[#allocation9 + $0x48] sm:$0xff]
    %v721 = vld [vmem:[#allocation9 + $0x50] sm:$0xff]
    %v722 = vld [vmem:[#allocation9 + $0x58] sm:$0xff]
    %v723 = vld [vmem:[#allocation9 + $0x60] sm:$0xff]
    %v724 = vld [vmem:[#allocation9 + $0x68] sm:$0xff]
    %v725 = vld [vmem:[#allocation9 + $0x70] sm:$0xff]
    %v726 = vld [vmem:[#allocation9 + $0x78] sm:$0xff]
    %v727 = vld [vmem:[#allocation9 + $0x80] sm:$0xff]
    %v728 = vld [vmem:[#allocation9 + $0x88] sm:$0xff]
    %v729 = vld [vmem:[#allocation9 + $0x90] sm:$0xff]
    %v730 = vld [vmem:[#allocation9 + $0x98] sm:$0xff]
    %v731 = vld [vmem:[#allocation9 + $0xa0] sm:$0xff]
    %v732 = vld [vmem:[#allocation9 + $0xa8] sm:$0xff]
    %v733 = vld [vmem:[#allocation9 + $0xb0] sm:$0xff]
    %v734 = vld [vmem:[#allocation9 + $0xb8] sm:$0xff]
    %v735 = vld [vmem:[#allocation9 + $0xc0] sm:$0xff]
    %v736 = vld [vmem:[#allocation9 + $0xc8] sm:$0xff]
    %v737 = vld [vmem:[#allocation9 + $0xd0] sm:$0xff]
    %v738 = vld [vmem:[#allocation9 + $0xd8] sm:$0xff]
    %v739 = vld [vmem:[#allocation9 + $0xe0] sm:$0xff]
    %v740 = vld [vmem:[#allocation9 + $0xe8] sm:$0xff]
    %v741 = vld [vmem:[#allocation9 + $0xf0] sm:$0xff]
    %v742 = vld [vmem:[#allocation9 + $0xf8] sm:$0xff]
    %v743 = vld [vmem:[#allocation9 + $0x100] sm:$0xff]
    %v744 = vld [vmem:[#allocation9 + $0x108] sm:$0xff]
    %v745 = vld [vmem:[#allocation9 + $0x110] sm:$0xff]
    %v746 = vld [vmem:[#allocation9 + $0x118] sm:$0xff]
    %v747 = vld [vmem:[#allocation9 + $0x120] sm:$0xff]
    %v748 = vld [vmem:[#allocation9 + $0x128] sm:$0xff]
    %v749 = vld [vmem:[#allocation9 + $0x130] sm:$0xff]
    %v750 = vld [vmem:[#allocation9 + $0x138] sm:$0xff]
    %v751 = vld [vmem:[#allocation9 + $0x140] sm:$0xff]
    %v752 = vld [vmem:[#allocation9 + $0x148] sm:$0xff]
    %v753 = vld [vmem:[#allocation9 + $0x150] sm:$0xff]
    %v754 = vld [vmem:[#allocation9 + $0x158] sm:$0xff]
    %v755 = vld [vmem:[#allocation9 + $0x160] sm:$0xff]
    %v756 = vld [vmem:[#allocation9 + $0x168] sm:$0xff]
    %v757 = vld [vmem:[#allocation9 + $0x170] sm:$0xff]
    %v758 = vld [vmem:[#allocation9 + $0x178] sm:$0xff]
    %v759 = vld [vmem:[#allocation9 + $0x180] sm:$0xff]
    %v760 = vld [vmem:[#allocation9 + $0x188] sm:$0xff]
    %v761 = vld [vmem:[#allocation9 + $0x190] sm:$0xff]
    %v762 = vld [vmem:[#allocation9 + $0x198] sm:$0xff]
    %v763 = vld [vmem:[#allocation9 + $0x1a0] sm:$0xff]
    %v764 = vld [vmem:[#allocation9 + $0x1a8] sm:$0xff]
    %v765 = vld [vmem:[#allocation9 + $0x1b0] sm:$0xff]
    %v766 = vld [vmem:[#allocation9 + $0x1b8] sm:$0xff]
    %v767 = vld [vmem:[#allocation9 + $0x1c0] sm:$0xff]
    %v768 = vld [vmem:[#allocation9 + $0x1c8] sm:$0xff]
    %v769 = vld [vmem:[#allocation9 + $0x1d0] sm:$0xff]
    %v770 = vld [vmem:[#allocation9 + $0x1d8] sm:$0xff]
    %v771 = vld [vmem:[#allocation9 + $0x1e0] sm:$0xff]
    %v772 = vld [vmem:[#allocation9 + $0x1e8] sm:$0xff]
    %v773 = vld [vmem:[#allocation9 + $0x1f0] sm:$0xff]
    %v774 = vld [vmem:[#allocation9 + $0x1f8] sm:$0xff]
    %775 = vmatprep.subr.mxu0 %v772
    %776 = vmatpush1.msra.mxu0 %v771
    %777 = vmatprep.subr.mxu0 %v768
    %778 = vmatpush1.msra.mxu0 %v767
    %779 = vmatprep.subr.mxu0 %v764
    %780 = vmatpush1.msra.mxu0 %v763
    %781 = vmatprep.subr.mxu0 %v760
    %782 = vmatpush1.msra.mxu0 %v759
    %783 = vmatprep.subr.mxu0 %v756
    %784 = vmatpush1.msra.mxu0 %v755
    %785 = vmatprep.subr.mxu0 %v752
    %786 = vmatpush1.msra.mxu0 %v751
    %787 = vmatprep.subr.mxu0 %v748
    %788 = vmatpush1.msra.mxu0 %v747
    %789 = vmatprep.subr.mxu0 %v744
    %790 = vmatpush1.msra.mxu0 %v743
    %791 = vmatprep.subr.mxu0 %v740
    %792 = vmatpush1.msra.mxu0 %v739
    %793 = vmatprep.subr.mxu0 %v736
    %794 = vmatpush1.msra.mxu0 %v735
    %795 = vmatprep.subr.mxu0 %v732
    %796 = vmatpush1.msra.mxu0 %v731
    %797 = vmatprep.subr.mxu0 %v728
    %798 = vmatpush1.msra.mxu0 %v727
    %799 = vmatprep.subr.mxu0 %v724
    %800 = vmatpush1.msra.mxu0 %v723
    %801 = vmatprep.subr.mxu0 %v720
    %802 = vmatpush1.msra.mxu0 %v719
    %803 = vmatprep.subr.mxu0 %v716
    %804 = vmatpush1.msra.mxu0 %v715
    %805 = vmatprep.subr.mxu0 %v712
    %806 = vmatpush1.msra.mxu0 %v711
    %807 = vmatprep.subr.mxu0 0.0
    %808 = vmatpush2.msra.mxu0 0.0
    %809 = vmatprep.subr.mxu0 0.0
    %810 = vmatpush2.msra.mxu0 0.0
    %811 = vmatprep.subr.mxu0 0.0
    %812 = vmatpush2.msra.mxu0 0.0
    %813 = vmatprep.subr.mxu0 0.0
    %814 = vmatpush2.msra.mxu0 0.0
    %815 = vmatprep.subr.mxu0 0.0
    %816 = vmatpush2.msra.mxu0 0.0
    %817 = vmatprep.subr.mxu0 0.0
    %818 = vmatpush2.msra.mxu0 0.0
    %819 = vmatprep.subr.mxu0 0.0
    %820 = vmatpush2.msra.mxu0 0.0
    %821 = vmatprep.subr.mxu0 0.0
    %822 = vmatpush2.msra.mxu0 0.0
    %823 = vmatprep.subr.mxu0 0.0
    %824 = vmatpush2.msra.mxu0 0.0
    %825 = vmatprep.subr.mxu0 0.0
    %826 = vmatpush2.msra.mxu0 0.0
    %827 = vmatprep.subr.mxu0 0.0
    %828 = vmatpush2.msra.mxu0 0.0
    %829 = vmatprep.subr.mxu0 0.0
    %830 = vmatpush2.msra.mxu0 0.0
    %831 = vmatprep.subr.mxu0 0.0
    %832 = vmatpush2.msra.mxu0 0.0
    %833 = vmatprep.subr.mxu0 0.0
    %834 = vmatpush2.msra.mxu0 0.0
    %835 = vmatprep.subr.mxu0 0.0
    %836 = vmatpush2.msra.mxu0 0.0
    %837 = vmatprep.subr.mxu0 0.0
    %838 = vmatpush2.msra.mxu0 0.0
    %839 = vmatprep.mubr.f32.mxu0 0.0
    %840 = vmatmul.mubr.f32.gmra.mxu0 %v704
    %v841 = vpop.f32.mrf.mxu0
    %v842 = vadd.f32 0.0, %v841
    %v843 = vpop.f32.mrf.mxu0
    %v844 = vadd.f32 0.0, %v843
    %845 = vdwg.mxu0
    %846 = vmatprep.subr.mxu0 %v774
    %847 = vmatpush1.msra.mxu0 %v773
    %848 = vmatprep.subr.mxu0 %v770
    %849 = vmatpush1.msra.mxu0 %v769
    %850 = vmatprep.subr.mxu0 %v766
    %851 = vmatpush1.msra.mxu0 %v765
    %852 = vmatprep.subr.mxu0 %v762
    %853 = vmatpush1.msra.mxu0 %v761
    %854 = vmatprep.subr.mxu0 %v758
    %855 = vmatpush1.msra.mxu0 %v757
    %856 = vmatprep.subr.mxu0 %v754
    %857 = vmatpush1.msra.mxu0 %v753
    %858 = vmatprep.subr.mxu0 %v750
    %859 = vmatpush1.msra.mxu0 %v749
    %860 = vmatprep.subr.mxu0 %v746
    %861 = vmatpush1.msra.mxu0 %v745
    %862 = vmatprep.subr.mxu0 %v742
    %863 = vmatpush1.msra.mxu0 %v741
    %864 = vmatprep.subr.mxu0 %v738
    %865 = vmatpush1.msra.mxu0 %v737
    %866 = vmatprep.subr.mxu0 %v734
    %867 = vmatpush1.msra.mxu0 %v733
    %868 = vmatprep.subr.mxu0 %v730
    %869 = vmatpush1.msra.mxu0 %v729
    %870 = vmatprep.subr.mxu0 %v726
    %871 = vmatpush1.msra.mxu0 %v725
    %872 = vmatprep.subr.mxu0 %v722
    %873 = vmatpush1.msra.mxu0 %v721
    %874 = vmatprep.subr.mxu0 %v718
    %875 = vmatpush1.msra.mxu0 %v717
    %876 = vmatprep.subr.mxu0 %v714
    %877 = vmatpush1.msra.mxu0 %v713
    %878 = vmatprep.subr.mxu0 0.0
    %879 = vmatpush2.msra.mxu0 0.0
    %880 = vmatprep.subr.mxu0 0.0
    %881 = vmatpush2.msra.mxu0 0.0
    %882 = vmatprep.subr.mxu0 0.0
    %883 = vmatpush2.msra.mxu0 0.0
    %884 = vmatprep.subr.mxu0 0.0
    %885 = vmatpush2.msra.mxu0 0.0
    %886 = vmatprep.subr.mxu0 0.0
    %887 = vmatpush2.msra.mxu0 0.0
    %888 = vmatprep.subr.mxu0 0.0
    %889 = vmatpush2.msra.mxu0 0.0
    %890 = vmatprep.subr.mxu0 0.0
    %891 = vmatpush2.msra.mxu0 0.0
    %892 = vmatprep.subr.mxu0 0.0
    %893 = vmatpush2.msra.mxu0 0.0
    %894 = vmatprep.subr.mxu0 0.0
    %895 = vmatpush2.msra.mxu0 0.0
    %896 = vmatprep.subr.mxu0 0.0
    %897 = vmatpush2.msra.mxu0 0.0
    %898 = vmatprep.subr.mxu0 0.0
    %899 = vmatpush2.msra.mxu0 0.0
    %900 = vmatprep.subr.mxu0 0.0
    %901 = vmatpush2.msra.mxu0 0.0
    %902 = vmatprep.subr.mxu0 0.0
    %903 = vmatpush2.msra.mxu0 0.0
    %904 = vmatprep.subr.mxu0 0.0
    %905 = vmatpush2.msra.mxu0 0.0
    %906 = vmatprep.subr.mxu0 0.0
    %907 = vmatpush2.msra.mxu0 0.0
    %908 = vmatprep.subr.mxu0 0.0
    %909 = vmatpush2.msra.mxu0 0.0
    %910 = vmatprep.mubr.f32.mxu0 0.0
    %911 = vmatmul.mubr.f32.gmra.mxu0 %v704
    %v912 = vpop.f32.mrf.mxu0
    %v913 = vadd.f32 0.0, %v912
    %v914 = vpop.f32.mrf.mxu0
    %v915 = vadd.f32 0.0, %v914
    %916 = vdwg.mxu0
    %v917 = vadd.f32 %v707, %v842
    %v918 = vadd.f32 %v708, %v844
    %v919 = vadd.f32 %v709, %v913
    %v920 = vadd.f32 %v710, %v915
    %v921 = vxor.u32 %v917, 2147483648
    %v922 = vmul.f32 %v921, 1.442695
    %v923 = vpow.pop %v922
    %v924 = vadd.f32 %v923, 1.0
    %v925 = vrcp.pop %v924
    %v926 = vmul.f32 1.0, %v925
    %v927 = vxor.u32 %v918, 2147483648
    %v928 = vmul.f32 %v927, 1.442695
    %v929 = vpow.pop %v928
    %v930 = vadd.f32 %v929, 1.0
    %v931 = vrcp.pop %v930
    %v932 = vmul.f32 1.0, %v931
    %v933 = vtanh.pop %v919
    %v934 = vxor.u32 %v920, 2147483648
    %v935 = vmul.f32 %v934, 1.442695
    %v936 = vpow.pop %v935
    %v937 = vadd.f32 %v936, 1.0
    %v938 = vrcp.pop %v937
    %v939 = vmul.f32 1.0, %v938
    %v940 = vmul.f32 %v932, %v702
    %v941 = vmul.f32 %v926, %v933
    %v942 = vadd.f32 %v940, %v941
    %v943 = vtanh.pop %v942
    %v944 = vmul.f32 %v939, %v943
    %s945 = scalar_lea.vmem [#allocation3], 8
    %946 = vst [vmem:[%s945] sm:$0xff] %v944
    %s947 = scalar_lea.vmem [#allocation2], 64
    %v948 = vld [vmem:[%s947] sm:$0xff]
    %v949 = vld [vmem:[%s947 + $0x8] sm:$0xff]
    %v950 = vld [vmem:[%s947 + $0x10] sm:$0xff]
    %v951 = vld [vmem:[%s947 + $0x18] sm:$0xff]
    %v952 = vld [vmem:[#allocation9] sm:$0xff]
    %v953 = vld [vmem:[#allocation9 + $0x8] sm:$0xff]
    %v954 = vld [vmem:[#allocation9 + $0x10] sm:$0xff]
    %v955 = vld [vmem:[#allocation9 + $0x18] sm:$0xff]
    %v956 = vld [vmem:[#allocation9 + $0x20] sm:$0xff]
    %v957 = vld [vmem:[#allocation9 + $0x28] sm:$0xff]
    %v958 = vld [vmem:[#allocation9 + $0x30] sm:$0xff]
    %v959 = vld [vmem:[#allocation9 + $0x38] sm:$0xff]
    %v960 = vld [vmem:[#allocation9 + $0x40] sm:$0xff]
    %v961 = vld [vmem:[#allocation9 + $0x48] sm:$0xff]
    %v962 = vld [vmem:[#allocation9 + $0x50] sm:$0xff]
    %v963 = vld [vmem:[#allocation9 + $0x58] sm:$0xff]
    %v964 = vld [vmem:[#allocation9 + $0x60] sm:$0xff]
    %v965 = vld [vmem:[#allocation9 + $0x68] sm:$0xff]
    %v966 = vld [vmem:[#allocation9 + $0x70] sm:$0xff]
    %v967 = vld [vmem:[#allocation9 + $0x78] sm:$0xff]
    %v968 = vld [vmem:[#allocation9 + $0x80] sm:$0xff]
    %v969 = vld [vmem:[#allocation9 + $0x88] sm:$0xff]
    %v970 = vld [vmem:[#allocation9 + $0x90] sm:$0xff]
    %v971 = vld [vmem:[#allocation9 + $0x98] sm:$0xff]
    %v972 = vld [vmem:[#allocation9 + $0xa0] sm:$0xff]
    %v973 = vld [vmem:[#allocation9 + $0xa8] sm:$0xff]
    %v974 = vld [vmem:[#allocation9 + $0xb0] sm:$0xff]
    %v975 = vld [vmem:[#allocation9 + $0xb8] sm:$0xff]
    %v976 = vld [vmem:[#allocation9 + $0xc0] sm:$0xff]
    %v977 = vld [vmem:[#allocation9 + $0xc8] sm:$0xff]
    %v978 = vld [vmem:[#allocation9 + $0xd0] sm:$0xff]
    %v979 = vld [vmem:[#allocation9 + $0xd8] sm:$0xff]
    %v980 = vld [vmem:[#allocation9 + $0xe0] sm:$0xff]
    %v981 = vld [vmem:[#allocation9 + $0xe8] sm:$0xff]
    %v982 = vld [vmem:[#allocation9 + $0xf0] sm:$0xff]
    %v983 = vld [vmem:[#allocation9 + $0xf8] sm:$0xff]
    %v984 = vld [vmem:[#allocation9 + $0x100] sm:$0xff]
    %v985 = vld [vmem:[#allocation9 + $0x108] sm:$0xff]
    %v986 = vld [vmem:[#allocation9 + $0x110] sm:$0xff]
    %v987 = vld [vmem:[#allocation9 + $0x118] sm:$0xff]
    %v988 = vld [vmem:[#allocation9 + $0x120] sm:$0xff]
    %v989 = vld [vmem:[#allocation9 + $0x128] sm:$0xff]
    %v990 = vld [vmem:[#allocation9 + $0x130] sm:$0xff]
    %v991 = vld [vmem:[#allocation9 + $0x138] sm:$0xff]
    %v992 = vld [vmem:[#allocation9 + $0x140] sm:$0xff]
    %v993 = vld [vmem:[#allocation9 + $0x148] sm:$0xff]
    %v994 = vld [vmem:[#allocation9 + $0x150] sm:$0xff]
    %v995 = vld [vmem:[#allocation9 + $0x158] sm:$0xff]
    %v996 = vld [vmem:[#allocation9 + $0x160] sm:$0xff]
    %v997 = vld [vmem:[#allocation9 + $0x168] sm:$0xff]
    %v998 = vld [vmem:[#allocation9 + $0x170] sm:$0xff]
    %v999 = vld [vmem:[#allocation9 + $0x178] sm:$0xff]
    %v1000 = vld [vmem:[#allocation9 + $0x180] sm:$0xff]
    %v1001 = vld [vmem:[#allocation9 + $0x188] sm:$0xff]
    %v1002 = vld [vmem:[#allocation9 + $0x190] sm:$0xff]
    %v1003 = vld [vmem:[#allocation9 + $0x198] sm:$0xff]
    %v1004 = vld [vmem:[#allocation9 + $0x1a0] sm:$0xff]
    %v1005 = vld [vmem:[#allocation9 + $0x1a8] sm:$0xff]
    %v1006 = vld [vmem:[#allocation9 + $0x1b0] sm:$0xff]
    %v1007 = vld [vmem:[#allocation9 + $0x1b8] sm:$0xff]
    %v1008 = vld [vmem:[#allocation9 + $0x1c0] sm:$0xff]
    %v1009 = vld [vmem:[#allocation9 + $0x1c8] sm:$0xff]
    %v1010 = vld [vmem:[#allocation9 + $0x1d0] sm:$0xff]
    %v1011 = vld [vmem:[#allocation9 + $0x1d8] sm:$0xff]
    %v1012 = vld [vmem:[#allocation9 + $0x1e0] sm:$0xff]
    %v1013 = vld [vmem:[#allocation9 + $0x1e8] sm:$0xff]
    %v1014 = vld [vmem:[#allocation9 + $0x1f0] sm:$0xff]
    %v1015 = vld [vmem:[#allocation9 + $0x1f8] sm:$0xff]
    %1016 = vmatprep.subr.mxu0 %v1013
    %1017 = vmatpush1.msra.mxu0 %v1012
    %1018 = vmatprep.subr.mxu0 %v1009
    %1019 = vmatpush1.msra.mxu0 %v1008
    %1020 = vmatprep.subr.mxu0 %v1005
    %1021 = vmatpush1.msra.mxu0 %v1004
    %1022 = vmatprep.subr.mxu0 %v1001
    %1023 = vmatpush1.msra.mxu0 %v1000
    %1024 = vmatprep.subr.mxu0 %v997
    %1025 = vmatpush1.msra.mxu0 %v996
    %1026 = vmatprep.subr.mxu0 %v993
    %1027 = vmatpush1.msra.mxu0 %v992
    %1028 = vmatprep.subr.mxu0 %v989
    %1029 = vmatpush1.msra.mxu0 %v988
    %1030 = vmatprep.subr.mxu0 %v985
    %1031 = vmatpush1.msra.mxu0 %v984
    %1032 = vmatprep.subr.mxu0 %v981
    %1033 = vmatpush1.msra.mxu0 %v980
    %1034 = vmatprep.subr.mxu0 %v977
    %1035 = vmatpush1.msra.mxu0 %v976
    %1036 = vmatprep.subr.mxu0 %v973
    %1037 = vmatpush1.msra.mxu0 %v972
    %1038 = vmatprep.subr.mxu0 %v969
    %1039 = vmatpush1.msra.mxu0 %v968
    %1040 = vmatprep.subr.mxu0 %v965
    %1041 = vmatpush1.msra.mxu0 %v964
    %1042 = vmatprep.subr.mxu0 %v961
    %1043 = vmatpush1.msra.mxu0 %v960
    %1044 = vmatprep.subr.mxu0 %v957
    %1045 = vmatpush1.msra.mxu0 %v956
    %1046 = vmatprep.subr.mxu0 %v953
    %1047 = vmatpush1.msra.mxu0 %v952
    %1048 = vmatprep.subr.mxu0 0.0
    %1049 = vmatpush2.msra.mxu0 0.0
    %1050 = vmatprep.subr.mxu0 0.0
    %1051 = vmatpush2.msra.mxu0 0.0
    %1052 = vmatprep.subr.mxu0 0.0
    %1053 = vmatpush2.msra.mxu0 0.0
    %1054 = vmatprep.subr.mxu0 0.0
    %1055 = vmatpush2.msra.mxu0 0.0
    %1056 = vmatprep.subr.mxu0 0.0
    %1057 = vmatpush2.msra.mxu0 0.0
    %1058 = vmatprep.subr.mxu0 0.0
    %1059 = vmatpush2.msra.mxu0 0.0
    %1060 = vmatprep.subr.mxu0 0.0
    %1061 = vmatpush2.msra.mxu0 0.0
    %1062 = vmatprep.subr.mxu0 0.0
    %1063 = vmatpush2.msra.mxu0 0.0
    %1064 = vmatprep.subr.mxu0 0.0
    %1065 = vmatpush2.msra.mxu0 0.0
    %1066 = vmatprep.subr.mxu0 0.0
    %1067 = vmatpush2.msra.mxu0 0.0
    %1068 = vmatprep.subr.mxu0 0.0
    %1069 = vmatpush2.msra.mxu0 0.0
    %1070 = vmatprep.subr.mxu0 0.0
    %1071 = vmatpush2.msra.mxu0 0.0
    %1072 = vmatprep.subr.mxu0 0.0
    %1073 = vmatpush2.msra.mxu0 0.0
    %1074 = vmatprep.subr.mxu0 0.0
    %1075 = vmatpush2.msra.mxu0 0.0
    %1076 = vmatprep.subr.mxu0 0.0
    %1077 = vmatpush2.msra.mxu0 0.0
    %1078 = vmatprep.subr.mxu0 0.0
    %1079 = vmatpush2.msra.mxu0 0.0
    %1080 = vmatprep.mubr.f32.mxu0 0.0
    %1081 = vmatmul.mubr.f32.gmra.mxu0 %v944
    %v1082 = vpop.f32.mrf.mxu0
    %v1083 = vadd.f32 0.0, %v1082
    %v1084 = vpop.f32.mrf.mxu0
    %v1085 = vadd.f32 0.0, %v1084
    %1086 = vdwg.mxu0
    %1087 = vmatprep.subr.mxu0 %v1015
    %1088 = vmatpush1.msra.mxu0 %v1014
    %1089 = vmatprep.subr.mxu0 %v1011
    %1090 = vmatpush1.msra.mxu0 %v1010
    %1091 = vmatprep.subr.mxu0 %v1007
    %1092 = vmatpush1.msra.mxu0 %v1006
    %1093 = vmatprep.subr.mxu0 %v1003
    %1094 = vmatpush1.msra.mxu0 %v1002
    %1095 = vmatprep.subr.mxu0 %v999
    %1096 = vmatpush1.msra.mxu0 %v998
    %1097 = vmatprep.subr.mxu0 %v995
    %1098 = vmatpush1.msra.mxu0 %v994
    %1099 = vmatprep.subr.mxu0 %v991
    %1100 = vmatpush1.msra.mxu0 %v990
    %1101 = vmatprep.subr.mxu0 %v987
    %1102 = vmatpush1.msra.mxu0 %v986
    %1103 = vmatprep.subr.mxu0 %v983
    %1104 = vmatpush1.msra.mxu0 %v982
    %1105 = vmatprep.subr.mxu0 %v979
    %1106 = vmatpush1.msra.mxu0 %v978
    %1107 = vmatprep.subr.mxu0 %v975
    %1108 = vmatpush1.msra.mxu0 %v974
    %1109 = vmatprep.subr.mxu0 %v971
    %1110 = vmatpush1.msra.mxu0 %v970
    %1111 = vmatprep.subr.mxu0 %v967
    %1112 = vmatpush1.msra.mxu0 %v966
    %1113 = vmatprep.subr.mxu0 %v963
    %1114 = vmatpush1.msra.mxu0 %v962
    %1115 = vmatprep.subr.mxu0 %v959
    %1116 = vmatpush1.msra.mxu0 %v958
    %1117 = vmatprep.subr.mxu0 %v955
    %1118 = vmatpush1.msra.mxu0 %v954
    %1119 = vmatprep.subr.mxu0 0.0
    %1120 = vmatpush2.msra.mxu0 0.0
    %1121 = vmatprep.subr.mxu0 0.0
    %1122 = vmatpush2.msra.mxu0 0.0
    %1123 = vmatprep.subr.mxu0 0.0
    %1124 = vmatpush2.msra.mxu0 0.0
    %1125 = vmatprep.subr.mxu0 0.0
    %1126 = vmatpush2.msra.mxu0 0.0
    %1127 = vmatprep.subr.mxu0 0.0
    %1128 = vmatpush2.msra.mxu0 0.0
    %1129 = vmatprep.subr.mxu0 0.0
    %1130 = vmatpush2.msra.mxu0 0.0
    %1131 = vmatprep.subr.mxu0 0.0
    %1132 = vmatpush2.msra.mxu0 0.0
    %1133 = vmatprep.subr.mxu0 0.0
    %1134 = vmatpush2.msra.mxu0 0.0
    %1135 = vmatprep.subr.mxu0 0.0
    %1136 = vmatpush2.msra.mxu0 0.0
    %1137 = vmatprep.subr.mxu0 0.0
    %1138 = vmatpush2.msra.mxu0 0.0
    %1139 = vmatprep.subr.mxu0 0.0
    %1140 = vmatpush2.msra.mxu0 0.0
    %1141 = vmatprep.subr.mxu0 0.0
    %1142 = vmatpush2.msra.mxu0 0.0
    %1143 = vmatprep.subr.mxu0 0.0
    %1144 = vmatpush2.msra.mxu0 0.0
    %1145 = vmatprep.subr.mxu0 0.0
    %1146 = vmatpush2.msra.mxu0 0.0
    %1147 = vmatprep.subr.mxu0 0.0
    %1148 = vmatpush2.msra.mxu0 0.0
    %1149 = vmatprep.subr.mxu0 0.0
    %1150 = vmatpush2.msra.mxu0 0.0
    %1151 = vmatprep.mubr.f32.mxu0 0.0
    %1152 = vmatmul.mubr.f32.gmra.mxu0 %v944
    %v1153 = vpop.f32.mrf.mxu0
    %v1154 = vadd.f32 0.0, %v1153
    %v1155 = vpop.f32.mrf.mxu0
    %v1156 = vadd.f32 0.0, %v1155
    %1157 = vdwg.mxu0
    %v1158 = vadd.f32 %v948, %v1083
    %v1159 = vadd.f32 %v949, %v1085
    %v1160 = vadd.f32 %v950, %v1154
    %v1161 = vadd.f32 %v951, %v1156
    %v1162 = vxor.u32 %v1158, 2147483648
    %v1163 = vmul.f32 %v1162, 1.442695
    %v1164 = vpow.pop %v1163
    %v1165 = vadd.f32 %v1164, 1.0
    %v1166 = vrcp.pop %v1165
    %v1167 = vmul.f32 1.0, %v1166
    %v1168 = vxor.u32 %v1159, 2147483648
    %v1169 = vmul.f32 %v1168, 1.442695
    %v1170 = vpow.pop %v1169
    %v1171 = vadd.f32 %v1170, 1.0
    %v1172 = vrcp.pop %v1171
    %v1173 = vmul.f32 1.0, %v1172
    %v1174 = vtanh.pop %v1160
    %v1175 = vxor.u32 %v1161, 2147483648
    %v1176 = vmul.f32 %v1175, 1.442695
    %v1177 = vpow.pop %v1176
    %v1178 = vadd.f32 %v1177, 1.0
    %v1179 = vrcp.pop %v1178
    %v1180 = vmul.f32 1.0, %v1179
    %v1181 = vmul.f32 %v1173, %v942
    %v1182 = vmul.f32 %v1167, %v1174
    %v1183 = vadd.f32 %v1181, %v1182
    %v1184 = vtanh.pop %v1183
    %v1185 = vmul.f32 %v1180, %v1184
    %s1186 = scalar_lea.vmem [#allocation3], 16
    %1187 = vst [vmem:[%s1186] sm:$0xff] %v1185
    %s1188 = scalar_lea.vmem [#allocation2], 96
    %v1189 = vld [vmem:[%s1188] sm:$0xff]
    %v1190 = vld [vmem:[%s1188 + $0x8] sm:$0xff]
    %v1191 = vld [vmem:[%s1188 + $0x10] sm:$0xff]
    %v1192 = vld [vmem:[%s1188 + $0x18] sm:$0xff]
    %v1193 = vld [vmem:[#allocation9] sm:$0xff]
    %v1194 = vld [vmem:[#allocation9 + $0x8] sm:$0xff]
    %v1195 = vld [vmem:[#allocation9 + $0x10] sm:$0xff]
    %v1196 = vld [vmem:[#allocation9 + $0x18] sm:$0xff]
    %v1197 = vld [vmem:[#allocation9 + $0x20] sm:$0xff]
    %v1198 = vld [vmem:[#allocation9 + $0x28] sm:$0xff]
    %v1199 = vld [vmem:[#allocation9 + $0x30] sm:$0xff]
    %v1200 = vld [vmem:[#allocation9 + $0x38] sm:$0xff]
    %v1201 = vld [vmem:[#allocation9 + $0x40] sm:$0xff]
    %v1202 = vld [vmem:[#allocation9 + $0x48] sm:$0xff]
    %v1203 = vld [vmem:[#allocation9 + $0x50] sm:$0xff]
    %v1204 = vld [vmem:[#allocation9 + $0x58] sm:$0xff]
    %v1205 = vld [vmem:[#allocation9 + $0x60] sm:$0xff]
    %v1206 = vld [vmem:[#allocation9 + $0x68] sm:$0xff]
    %v1207 = vld [vmem:[#allocation9 + $0x70] sm:$0xff]
    %v1208 = vld [vmem:[#allocation9 + $0x78] sm:$0xff]
    %v1209 = vld [vmem:[#allocation9 + $0x80] sm:$0xff]
    %v1210 = vld [vmem:[#allocation9 + $0x88] sm:$0xff]
    %v1211 = vld [vmem:[#allocation9 + $0x90] sm:$0xff]
    %v1212 = vld [vmem:[#allocation9 + $0x98] sm:$0xff]
    %v1213 = vld [vmem:[#allocation9 + $0xa0] sm:$0xff]
    %v1214 = vld [vmem:[#allocation9 + $0xa8] sm:$0xff]
    %v1215 = vld [vmem:[#allocation9 + $0xb0] sm:$0xff]
    %v1216 = vld [vmem:[#allocation9 + $0xb8] sm:$0xff]
    %v1217 = vld [vmem:[#allocation9 + $0xc0] sm:$0xff]
    %v1218 = vld [vmem:[#allocation9 + $0xc8] sm:$0xff]
    %v1219 = vld [vmem:[#allocation9 + $0xd0] sm:$0xff]
    %v1220 = vld [vmem:[#allocation9 + $0xd8] sm:$0xff]
    %v1221 = vld [vmem:[#allocation9 + $0xe0] sm:$0xff]
    %v1222 = vld [vmem:[#allocation9 + $0xe8] sm:$0xff]
    %v1223 = vld [vmem:[#allocation9 + $0xf0] sm:$0xff]
    %v1224 = vld [vmem:[#allocation9 + $0xf8] sm:$0xff]
    %v1225 = vld [vmem:[#allocation9 + $0x100] sm:$0xff]
    %v1226 = vld [vmem:[#allocation9 + $0x108] sm:$0xff]
    %v1227 = vld [vmem:[#allocation9 + $0x110] sm:$0xff]
    %v1228 = vld [vmem:[#allocation9 + $0x118] sm:$0xff]
    %v1229 = vld [vmem:[#allocation9 + $0x120] sm:$0xff]
    %v1230 = vld [vmem:[#allocation9 + $0x128] sm:$0xff]
    %v1231 = vld [vmem:[#allocation9 + $0x130] sm:$0xff]
    %v1232 = vld [vmem:[#allocation9 + $0x138] sm:$0xff]
    %v1233 = vld [vmem:[#allocation9 + $0x140] sm:$0xff]
    %v1234 = vld [vmem:[#allocation9 + $0x148] sm:$0xff]
    %v1235 = vld [vmem:[#allocation9 + $0x150] sm:$0xff]
    %v1236 = vld [vmem:[#allocation9 + $0x158] sm:$0xff]
    %v1237 = vld [vmem:[#allocation9 + $0x160] sm:$0xff]
    %v1238 = vld [vmem:[#allocation9 + $0x168] sm:$0xff]
    %v1239 = vld [vmem:[#allocation9 + $0x170] sm:$0xff]
    %v1240 = vld [vmem:[#allocation9 + $0x178] sm:$0xff]
    %v1241 = vld [vmem:[#allocation9 + $0x180] sm:$0xff]
    %v1242 = vld [vmem:[#allocation9 + $0x188] sm:$0xff]
    %v1243 = vld [vmem:[#allocation9 + $0x190] sm:$0xff]
    %v1244 = vld [vmem:[#allocation9 + $0x198] sm:$0xff]
    %v1245 = vld [vmem:[#allocation9 + $0x1a0] sm:$0xff]
    %v1246 = vld [vmem:[#allocation9 + $0x1a8] sm:$0xff]
    %v1247 = vld [vmem:[#allocation9 + $0x1b0] sm:$0xff]
    %v1248 = vld [vmem:[#allocation9 + $0x1b8] sm:$0xff]
    %v1249 = vld [vmem:[#allocation9 + $0x1c0] sm:$0xff]
    %v1250 = vld [vmem:[#allocation9 + $0x1c8] sm:$0xff]
    %v1251 = vld [vmem:[#allocation9 + $0x1d0] sm:$0xff]
    %v1252 = vld [vmem:[#allocation9 + $0x1d8] sm:$0xff]
    %v1253 = vld [vmem:[#allocation9 + $0x1e0] sm:$0xff]
    %v1254 = vld [vmem:[#allocation9 + $0x1e8] sm:$0xff]
    %v1255 = vld [vmem:[#allocation9 + $0x1f0] sm:$0xff]
    %v1256 = vld [vmem:[#allocation9 + $0x1f8] sm:$0xff]
    %1257 = vmatprep.subr.mxu0 %v1254
    %1258 = vmatpush1.msra.mxu0 %v1253
    %1259 = vmatprep.subr.mxu0 %v1250
    %1260 = vmatpush1.msra.mxu0 %v1249
    %1261 = vmatprep.subr.mxu0 %v1246
    %1262 = vmatpush1.msra.mxu0 %v1245
    %1263 = vmatprep.subr.mxu0 %v1242
    %1264 = vmatpush1.msra.mxu0 %v1241
    %1265 = vmatprep.subr.mxu0 %v1238
    %1266 = vmatpush1.msra.mxu0 %v1237
    %1267 = vmatprep.subr.mxu0 %v1234
    %1268 = vmatpush1.msra.mxu0 %v1233
    %1269 = vmatprep.subr.mxu0 %v1230
    %1270 = vmatpush1.msra.mxu0 %v1229
    %1271 = vmatprep.subr.mxu0 %v1226
    %1272 = vmatpush1.msra.mxu0 %v1225
    %1273 = vmatprep.subr.mxu0 %v1222
    %1274 = vmatpush1.msra.mxu0 %v1221
    %1275 = vmatprep.subr.mxu0 %v1218
    %1276 = vmatpush1.msra.mxu0 %v1217
    %1277 = vmatprep.subr.mxu0 %v1214
    %1278 = vmatpush1.msra.mxu0 %v1213
    %1279 = vmatprep.subr.mxu0 %v1210
    %1280 = vmatpush1.msra.mxu0 %v1209
    %1281 = vmatprep.subr.mxu0 %v1206
    %1282 = vmatpush1.msra.mxu0 %v1205
    %1283 = vmatprep.subr.mxu0 %v1202
    %1284 = vmatpush1.msra.mxu0 %v1201
    %1285 = vmatprep.subr.mxu0 %v1198
    %1286 = vmatpush1.msra.mxu0 %v1197
    %1287 = vmatprep.subr.mxu0 %v1194
    %1288 = vmatpush1.msra.mxu0 %v1193
    %1289 = vmatprep.subr.mxu0 0.0
    %1290 = vmatpush2.msra.mxu0 0.0
    %1291 = vmatprep.subr.mxu0 0.0
    %1292 = vmatpush2.msra.mxu0 0.0
    %1293 = vmatprep.subr.mxu0 0.0
    %1294 = vmatpush2.msra.mxu0 0.0
    %1295 = vmatprep.subr.mxu0 0.0
    %1296 = vmatpush2.msra.mxu0 0.0
    %1297 = vmatprep.subr.mxu0 0.0
    %1298 = vmatpush2.msra.mxu0 0.0
    %1299 = vmatprep.subr.mxu0 0.0
    %1300 = vmatpush2.msra.mxu0 0.0
    %1301 = vmatprep.subr.mxu0 0.0
    %1302 = vmatpush2.msra.mxu0 0.0
    %1303 = vmatprep.subr.mxu0 0.0
    %1304 = vmatpush2.msra.mxu0 0.0
    %1305 = vmatprep.subr.mxu0 0.0
    %1306 = vmatpush2.msra.mxu0 0.0
    %1307 = vmatprep.subr.mxu0 0.0
    %1308 = vmatpush2.msra.mxu0 0.0
    %1309 = vmatprep.subr.mxu0 0.0
    %1310 = vmatpush2.msra.mxu0 0.0
    %1311 = vmatprep.subr.mxu0 0.0
    %1312 = vmatpush2.msra.mxu0 0.0
    %1313 = vmatprep.subr.mxu0 0.0
    %1314 = vmatpush2.msra.mxu0 0.0
    %1315 = vmatprep.subr.mxu0 0.0
    %1316 = vmatpush2.msra.mxu0 0.0
    %1317 = vmatprep.subr.mxu0 0.0
    %1318 = vmatpush2.msra.mxu0 0.0
    %1319 = vmatprep.subr.mxu0 0.0
    %1320 = vmatpush2.msra.mxu0 0.0
    %1321 = vmatprep.mubr.f32.mxu0 0.0
    %1322 = vmatmul.mubr.f32.gmra.mxu0 %v1185
    %v1323 = vpop.f32.mrf.mxu0
    %v1324 = vadd.f32 0.0, %v1323
    %v1325 = vpop.f32.mrf.mxu0
    %v1326 = vadd.f32 0.0, %v1325
    %1327 = vdwg.mxu0
    %1328 = vmatprep.subr.mxu0 %v1256
    %1329 = vmatpush1.msra.mxu0 %v1255
    %1330 = vmatprep.subr.mxu0 %v1252
    %1331 = vmatpush1.msra.mxu0 %v1251
    %1332 = vmatprep.subr.mxu0 %v1248
    %1333 = vmatpush1.msra.mxu0 %v1247
    %1334 = vmatprep.subr.mxu0 %v1244
    %1335 = vmatpush1.msra.mxu0 %v1243
    %1336 = vmatprep.subr.mxu0 %v1240
    %1337 = vmatpush1.msra.mxu0 %v1239
    %1338 = vmatprep.subr.mxu0 %v1236
    %1339 = vmatpush1.msra.mxu0 %v1235
    %1340 = vmatprep.subr.mxu0 %v1232
    %1341 = vmatpush1.msra.mxu0 %v1231
    %1342 = vmatprep.subr.mxu0 %v1228
    %1343 = vmatpush1.msra.mxu0 %v1227
    %1344 = vmatprep.subr.mxu0 %v1224
    %1345 = vmatpush1.msra.mxu0 %v1223
    %1346 = vmatprep.subr.mxu0 %v1220
    %1347 = vmatpush1.msra.mxu0 %v1219
    %1348 = vmatprep.subr.mxu0 %v1216
    %1349 = vmatpush1.msra.mxu0 %v1215
    %1350 = vmatprep.subr.mxu0 %v1212
    %1351 = vmatpush1.msra.mxu0 %v1211
    %1352 = vmatprep.subr.mxu0 %v1208
    %1353 = vmatpush1.msra.mxu0 %v1207
    %1354 = vmatprep.subr.mxu0 %v1204
    %1355 = vmatpush1.msra.mxu0 %v1203
    %1356 = vmatprep.subr.mxu0 %v1200
    %1357 = vmatpush1.msra.mxu0 %v1199
    %1358 = vmatprep.subr.mxu0 %v1196
    %1359 = vmatpush1.msra.mxu0 %v1195
    %1360 = vmatprep.subr.mxu0 0.0
    %1361 = vmatpush2.msra.mxu0 0.0
    %1362 = vmatprep.subr.mxu0 0.0
    %1363 = vmatpush2.msra.mxu0 0.0
    %1364 = vmatprep.subr.mxu0 0.0
    %1365 = vmatpush2.msra.mxu0 0.0
    %1366 = vmatprep.subr.mxu0 0.0
    %1367 = vmatpush2.msra.mxu0 0.0
    %1368 = vmatprep.subr.mxu0 0.0
    %1369 = vmatpush2.msra.mxu0 0.0
    %1370 = vmatprep.subr.mxu0 0.0
    %1371 = vmatpush2.msra.mxu0 0.0
    %1372 = vmatprep.subr.mxu0 0.0
    %1373 = vmatpush2.msra.mxu0 0.0
    %1374 = vmatprep.subr.mxu0 0.0
    %1375 = vmatpush2.msra.mxu0 0.0
    %1376 = vmatprep.subr.mxu0 0.0
    %1377 = vmatpush2.msra.mxu0 0.0
    %1378 = vmatprep.subr.mxu0 0.0
    %1379 = vmatpush2.msra.mxu0 0.0
    %1380 = vmatprep.subr.mxu0 0.0
    %1381 = vmatpush2.msra.mxu0 0.0
    %1382 = vmatprep.subr.mxu0 0.0
    %1383 = vmatpush2.msra.mxu0 0.0
    %1384 = vmatprep.subr.mxu0 0.0
    %1385 = vmatpush2.msra.mxu0 0.0
    %1386 = vmatprep.subr.mxu0 0.0
    %1387 = vmatpush2.msra.mxu0 0.0
    %1388 = vmatprep.subr.mxu0 0.0
    %1389 = vmatpush2.msra.mxu0 0.0
    %1390 = vmatprep.subr.mxu0 0.0
    %1391 = vmatpush2.msra.mxu0 0.0
    %1392 = vmatprep.mubr.f32.mxu0 0.0
    %1393 = vmatmul.mubr.f32.gmra.mxu0 %v1185
    %v1394 = vpop.f32.mrf.mxu0
    %v1395 = vadd.f32 0.0, %v1394
    %v1396 = vpop.f32.mrf.mxu0
    %v1397 = vadd.f32 0.0, %v1396
    %1398 = vdwg.mxu0
    %v1399 = vadd.f32 %v1189, %v1324
    %v1400 = vadd.f32 %v1190, %v1326
    %v1401 = vadd.f32 %v1191, %v1395
    %v1402 = vadd.f32 %v1192, %v1397
    %v1403 = vxor.u32 %v1399, 2147483648
    %v1404 = vmul.f32 %v1403, 1.442695
    %v1405 = vpow.pop %v1404
    %v1406 = vadd.f32 %v1405, 1.0
    %v1407 = vrcp.pop %v1406
    %v1408 = vmul.f32 1.0, %v1407
    %v1409 = vxor.u32 %v1400, 2147483648
    %v1410 = vmul.f32 %v1409, 1.442695
    %v1411 = vpow.pop %v1410
    %v1412 = vadd.f32 %v1411, 1.0
    %v1413 = vrcp.pop %v1412
    %v1414 = vmul.f32 1.0, %v1413
    %v1415 = vtanh.pop %v1401
    %v1416 = vxor.u32 %v1402, 2147483648
    %v1417 = vmul.f32 %v1416, 1.442695
    %v1418 = vpow.pop %v1417
    %v1419 = vadd.f32 %v1418, 1.0
    %v1420 = vrcp.pop %v1419
    %v1421 = vmul.f32 1.0, %v1420
    %v1422 = vmul.f32 %v1414, %v1183
    %v1423 = vmul.f32 %v1408, %v1415
    %v1424 = vadd.f32 %v1422, %v1423
    %v1425 = vtanh.pop %v1424
    %v1426 = vmul.f32 %v1421, %v1425
    %s1427 = scalar_lea.vmem [#allocation3], 24
    %1428 = vst [vmem:[%s1427] sm:$0xff] %v1426
    %s1429 = scalar_lea.vmem [#allocation2], 128
    %v1430 = vld [vmem:[%s1429] sm:$0xff]
    %v1431 = vld [vmem:[%s1429 + $0x8] sm:$0xff]
    %v1432 = vld [vmem:[%s1429 + $0x10] sm:$0xff]
    %v1433 = vld [vmem:[%s1429 + $0x18] sm:$0xff]
    %v1434 = vld [vmem:[#allocation9] sm:$0xff]
    %v1435 = vld [vmem:[#allocation9 + $0x8] sm:$0xff]
    %v1436 = vld [vmem:[#allocation9 + $0x10] sm:$0xff]
    %v1437 = vld [vmem:[#allocation9 + $0x18] sm:$0xff]
    %v1438 = vld [vmem:[#allocation9 + $0x20] sm:$0xff]
    %v1439 = vld [vmem:[#allocation9 + $0x28] sm:$0xff]
    %v1440 = vld [vmem:[#allocation9 + $0x30] sm:$0xff]
    %v1441 = vld [vmem:[#allocation9 + $0x38] sm:$0xff]
    %v1442 = vld [vmem:[#allocation9 + $0x40] sm:$0xff]
    %v1443 = vld [vmem:[#allocation9 + $0x48] sm:$0xff]
    %v1444 = vld [vmem:[#allocation9 + $0x50] sm:$0xff]
    %v1445 = vld [vmem:[#allocation9 + $0x58] sm:$0xff]
    %v1446 = vld [vmem:[#allocation9 + $0x60] sm:$0xff]
    %v1447 = vld [vmem:[#allocation9 + $0x68] sm:$0xff]
    %v1448 = vld [vmem:[#allocation9 + $0x70] sm:$0xff]
    %v1449 = vld [vmem:[#allocation9 + $0x78] sm:$0xff]
    %v1450 = vld [vmem:[#allocation9 + $0x80] sm:$0xff]
    %v1451 = vld [vmem:[#allocation9 + $0x88] sm:$0xff]
    %v1452 = vld [vmem:[#allocation9 + $0x90] sm:$0xff]
    %v1453 = vld [vmem:[#allocation9 + $0x98] sm:$0xff]
    %v1454 = vld [vmem:[#allocation9 + $0xa0] sm:$0xff]
    %v1455 = vld [vmem:[#allocation9 + $0xa8] sm:$0xff]
    %v1456 = vld [vmem:[#allocation9 + $0xb0] sm:$0xff]
    %v1457 = vld [vmem:[#allocation9 + $0xb8] sm:$0xff]
    %v1458 = vld [vmem:[#allocation9 + $0xc0] sm:$0xff]
    %v1459 = vld [vmem:[#allocation9 + $0xc8] sm:$0xff]
    %v1460 = vld [vmem:[#allocation9 + $0xd0] sm:$0xff]
    %v1461 = vld [vmem:[#allocation9 + $0xd8] sm:$0xff]
    %v1462 = vld [vmem:[#allocation9 + $0xe0] sm:$0xff]
    %v1463 = vld [vmem:[#allocation9 + $0xe8] sm:$0xff]
    %v1464 = vld [vmem:[#allocation9 + $0xf0] sm:$0xff]
    %v1465 = vld [vmem:[#allocation9 + $0xf8] sm:$0xff]
    %v1466 = vld [vmem:[#allocation9 + $0x100] sm:$0xff]
    %v1467 = vld [vmem:[#allocation9 + $0x108] sm:$0xff]
    %v1468 = vld [vmem:[#allocation9 + $0x110] sm:$0xff]
    %v1469 = vld [vmem:[#allocation9 + $0x118] sm:$0xff]
    %v1470 = vld [vmem:[#allocation9 + $0x120] sm:$0xff]
    %v1471 = vld [vmem:[#allocation9 + $0x128] sm:$0xff]
    %v1472 = vld [vmem:[#allocation9 + $0x130] sm:$0xff]
    %v1473 = vld [vmem:[#allocation9 + $0x138] sm:$0xff]
    %v1474 = vld [vmem:[#allocation9 + $0x140] sm:$0xff]
    %v1475 = vld [vmem:[#allocation9 + $0x148] sm:$0xff]
    %v1476 = vld [vmem:[#allocation9 + $0x150] sm:$0xff]
    %v1477 = vld [vmem:[#allocation9 + $0x158] sm:$0xff]
    %v1478 = vld [vmem:[#allocation9 + $0x160] sm:$0xff]
    %v1479 = vld [vmem:[#allocation9 + $0x168] sm:$0xff]
    %v1480 = vld [vmem:[#allocation9 + $0x170] sm:$0xff]
    %v1481 = vld [vmem:[#allocation9 + $0x178] sm:$0xff]
    %v1482 = vld [vmem:[#allocation9 + $0x180] sm:$0xff]
    %v1483 = vld [vmem:[#allocation9 + $0x188] sm:$0xff]
    %v1484 = vld [vmem:[#allocation9 + $0x190] sm:$0xff]
    %v1485 = vld [vmem:[#allocation9 + $0x198] sm:$0xff]
    %v1486 = vld [vmem:[#allocation9 + $0x1a0] sm:$0xff]
    %v1487 = vld [vmem:[#allocation9 + $0x1a8] sm:$0xff]
    %v1488 = vld [vmem:[#allocation9 + $0x1b0] sm:$0xff]
    %v1489 = vld [vmem:[#allocation9 + $0x1b8] sm:$0xff]
    %v1490 = vld [vmem:[#allocation9 + $0x1c0] sm:$0xff]
    %v1491 = vld [vmem:[#allocation9 + $0x1c8] sm:$0xff]
    %v1492 = vld [vmem:[#allocation9 + $0x1d0] sm:$0xff]
    %v1493 = vld [vmem:[#allocation9 + $0x1d8] sm:$0xff]
    %v1494 = vld [vmem:[#allocation9 + $0x1e0] sm:$0xff]
    %v1495 = vld [vmem:[#allocation9 + $0x1e8] sm:$0xff]
    %v1496 = vld [vmem:[#allocation9 + $0x1f0] sm:$0xff]
    %v1497 = vld [vmem:[#allocation9 + $0x1f8] sm:$0xff]
    %1498 = vmatprep.subr.mxu0 %v1495
    %1499 = vmatpush1.msra.mxu0 %v1494
    %1500 = vmatprep.subr.mxu0 %v1491
    %1501 = vmatpush1.msra.mxu0 %v1490
    %1502 = vmatprep.subr.mxu0 %v1487
    %1503 = vmatpush1.msra.mxu0 %v1486
    %1504 = vmatprep.subr.mxu0 %v1483
    %1505 = vmatpush1.msra.mxu0 %v1482
    %1506 = vmatprep.subr.mxu0 %v1479
    %1507 = vmatpush1.msra.mxu0 %v1478
    %1508 = vmatprep.subr.mxu0 %v1475
    %1509 = vmatpush1.msra.mxu0 %v1474
    %1510 = vmatprep.subr.mxu0 %v1471
    %1511 = vmatpush1.msra.mxu0 %v1470
    %1512 = vmatprep.subr.mxu0 %v1467
    %1513 = vmatpush1.msra.mxu0 %v1466
    %1514 = vmatprep.subr.mxu0 %v1463
    %1515 = vmatpush1.msra.mxu0 %v1462
    %1516 = vmatprep.subr.mxu0 %v1459
    %1517 = vmatpush1.msra.mxu0 %v1458
    %1518 = vmatprep.subr.mxu0 %v1455
    %1519 = vmatpush1.msra.mxu0 %v1454
    %1520 = vmatprep.subr.mxu0 %v1451
    %1521 = vmatpush1.msra.mxu0 %v1450
    %1522 = vmatprep.subr.mxu0 %v1447
    %1523 = vmatpush1.msra.mxu0 %v1446
    %1524 = vmatprep.subr.mxu0 %v1443
    %1525 = vmatpush1.msra.mxu0 %v1442
    %1526 = vmatprep.subr.mxu0 %v1439
    %1527 = vmatpush1.msra.mxu0 %v1438
    %1528 = vmatprep.subr.mxu0 %v1435
    %1529 = vmatpush1.msra.mxu0 %v1434
    %1530 = vmatprep.subr.mxu0 0.0
    %1531 = vmatpush2.msra.mxu0 0.0
    %1532 = vmatprep.subr.mxu0 0.0
    %1533 = vmatpush2.msra.mxu0 0.0
    %1534 = vmatprep.subr.mxu0 0.0
    %1535 = vmatpush2.msra.mxu0 0.0
    %1536 = vmatprep.subr.mxu0 0.0
    %1537 = vmatpush2.msra.mxu0 0.0
    %1538 = vmatprep.subr.mxu0 0.0
    %1539 = vmatpush2.msra.mxu0 0.0
    %1540 = vmatprep.subr.mxu0 0.0
    %1541 = vmatpush2.msra.mxu0 0.0
    %1542 = vmatprep.subr.mxu0 0.0
    %1543 = vmatpush2.msra.mxu0 0.0
    %1544 = vmatprep.subr.mxu0 0.0
    %1545 = vmatpush2.msra.mxu0 0.0
    %1546 = vmatprep.subr.mxu0 0.0
    %1547 = vmatpush2.msra.mxu0 0.0
    %1548 = vmatprep.subr.mxu0 0.0
    %1549 = vmatpush2.msra.mxu0 0.0
    %1550 = vmatprep.subr.mxu0 0.0
    %1551 = vmatpush2.msra.mxu0 0.0
    %1552 = vmatprep.subr.mxu0 0.0
    %1553 = vmatpush2.msra.mxu0 0.0
    %1554 = vmatprep.subr.mxu0 0.0
    %1555 = vmatpush2.msra.mxu0 0.0
    %1556 = vmatprep.subr.mxu0 0.0
    %1557 = vmatpush2.msra.mxu0 0.0
    %1558 = vmatprep.subr.mxu0 0.0
    %1559 = vmatpush2.msra.mxu0 0.0
    %1560 = vmatprep.subr.mxu0 0.0
    %1561 = vmatpush2.msra.mxu0 0.0
    %1562 = vmatprep.mubr.f32.mxu0 0.0
    %1563 = vmatmul.mubr.f32.gmra.mxu0 %v1426
    %v1564 = vpop.f32.mrf.mxu0
    %v1565 = vadd.f32 0.0, %v1564
    %v1566 = vpop.f32.mrf.mxu0
    %v1567 = vadd.f32 0.0, %v1566
    %1568 = vdwg.mxu0
    %1569 = vmatprep.subr.mxu0 %v1497
    %1570 = vmatpush1.msra.mxu0 %v1496
    %1571 = vmatprep.subr.mxu0 %v1493
    %1572 = vmatpush1.msra.mxu0 %v1492
    %1573 = vmatprep.subr.mxu0 %v1489
    %1574 = vmatpush1.msra.mxu0 %v1488
    %1575 = vmatprep.subr.mxu0 %v1485
    %1576 = vmatpush1.msra.mxu0 %v1484
    %1577 = vmatprep.subr.mxu0 %v1481
    %1578 = vmatpush1.msra.mxu0 %v1480
    %1579 = vmatprep.subr.mxu0 %v1477
    %1580 = vmatpush1.msra.mxu0 %v1476
    %1581 = vmatprep.subr.mxu0 %v1473
    %1582 = vmatpush1.msra.mxu0 %v1472
    %1583 = vmatprep.subr.mxu0 %v1469
    %1584 = vmatpush1.msra.mxu0 %v1468
    %1585 = vmatprep.subr.mxu0 %v1465
    %1586 = vmatpush1.msra.mxu0 %v1464
    %1587 = vmatprep.subr.mxu0 %v1461
    %1588 = vmatpush1.msra.mxu0 %v1460
    %1589 = vmatprep.subr.mxu0 %v1457
    %1590 = vmatpush1.msra.mxu0 %v1456
    %1591 = vmatprep.subr.mxu0 %v1453
    %1592 = vmatpush1.msra.mxu0 %v1452
    %1593 = vmatprep.subr.mxu0 %v1449
    %1594 = vmatpush1.msra.mxu0 %v1448
    %1595 = vmatprep.subr.mxu0 %v1445
    %1596 = vmatpush1.msra.mxu0 %v1444
    %1597 = vmatprep.subr.mxu0 %v1441
    %1598 = vmatpush1.msra.mxu0 %v1440
    %1599 = vmatprep.subr.mxu0 %v1437
    %1600 = vmatpush1.msra.mxu0 %v1436
    %1601 = vmatprep.subr.mxu0 0.0
    %1602 = vmatpush2.msra.mxu0 0.0
    %1603 = vmatprep.subr.mxu0 0.0
    %1604 = vmatpush2.msra.mxu0 0.0
    %1605 = vmatprep.subr.mxu0 0.0
    %1606 = vmatpush2.msra.mxu0 0.0
    %1607 = vmatprep.subr.mxu0 0.0
    %1608 = vmatpush2.msra.mxu0 0.0
    %1609 = vmatprep.subr.mxu0 0.0
    %1610 = vmatpush2.msra.mxu0 0.0
    %1611 = vmatprep.subr.mxu0 0.0
    %1612 = vmatpush2.msra.mxu0 0.0
    %1613 = vmatprep.subr.mxu0 0.0
    %1614 = vmatpush2.msra.mxu0 0.0
    %1615 = vmatprep.subr.mxu0 0.0
    %1616 = vmatpush2.msra.mxu0 0.0
    %1617 = vmatprep.subr.mxu0 0.0
    %1618 = vmatpush2.msra.mxu0 0.0
    %1619 = vmatprep.subr.mxu0 0.0
    %1620 = vmatpush2.msra.mxu0 0.0
    %1621 = vmatprep.subr.mxu0 0.0
    %1622 = vmatpush2.msra.mxu0 0.0
    %1623 = vmatprep.subr.mxu0 0.0
    %1624 = vmatpush2.msra.mxu0 0.0
    %1625 = vmatprep.subr.mxu0 0.0
    %1626 = vmatpush2.msra.mxu0 0.0
    %1627 = vmatprep.subr.mxu0 0.0
    %1628 = vmatpush2.msra.mxu0 0.0
    %1629 = vmatprep.subr.mxu0 0.0
    %1630 = vmatpush2.msra.mxu0 0.0
    %1631 = vmatprep.subr.mxu0 0.0
    %1632 = vmatpush2.msra.mxu0 0.0
    %1633 = vmatprep.mubr.f32.mxu0 0.0
    %1634 = vmatmul.mubr.f32.gmra.mxu0 %v1426
    %v1635 = vpop.f32.mrf.mxu0
    %v1636 = vadd.f32 0.0, %v1635
    %v1637 = vpop.f32.mrf.mxu0
    %v1638 = vadd.f32 0.0, %v1637
    %1639 = vdwg.mxu0
    %v1640 = vadd.f32 %v1430, %v1565
    %v1641 = vadd.f32 %v1431, %v1567
    %v1642 = vadd.f32 %v1432, %v1636
    %v1643 = vadd.f32 %v1433, %v1638
    %v1644 = vxor.u32 %v1640, 2147483648
    %v1645 = vmul.f32 %v1644, 1.442695
    %v1646 = vpow.pop %v1645
    %v1647 = vadd.f32 %v1646, 1.0
    %v1648 = vrcp.pop %v1647
    %v1649 = vmul.f32 1.0, %v1648
    %v1650 = vxor.u32 %v1641, 2147483648
    %v1651 = vmul.f32 %v1650, 1.442695
    %v1652 = vpow.pop %v1651
    %v1653 = vadd.f32 %v1652, 1.0
    %v1654 = vrcp.pop %v1653
    %v1655 = vmul.f32 1.0, %v1654
    %v1656 = vtanh.pop %v1642
    %v1657 = vxor.u32 %v1643, 2147483648
    %v1658 = vmul.f32 %v1657, 1.442695
    %v1659 = vpow.pop %v1658
    %v1660 = vadd.f32 %v1659, 1.0
    %v1661 = vrcp.pop %v1660
    %v1662 = vmul.f32 1.0, %v1661
    %v1663 = vmul.f32 %v1655, %v1424
    %v1664 = vmul.f32 %v1649, %v1656
    %v1665 = vadd.f32 %v1663, %v1664
    %v1666 = vtanh.pop %v1665
    %v1667 = vmul.f32 %v1662, %v1666
    %s1668 = scalar_lea.vmem [#allocation3], 32
    %1669 = vst [vmem:[%s1668] sm:$0xff] %v1667
    %s1670 = scalar_lea.vmem [#allocation2], 160
    %v1671 = vld [vmem:[%s1670] sm:$0xff]
    %v1672 = vld [vmem:[%s1670 + $0x8] sm:$0xff]
    %v1673 = vld [vmem:[%s1670 + $0x10] sm:$0xff]
    %v1674 = vld [vmem:[%s1670 + $0x18] sm:$0xff]
    %v1675 = vld [vmem:[#allocation9] sm:$0xff]
    %v1676 = vld [vmem:[#allocation9 + $0x8] sm:$0xff]
    %v1677 = vld [vmem:[#allocation9 + $0x10] sm:$0xff]
    %v1678 = vld [vmem:[#allocation9 + $0x18] sm:$0xff]
    %v1679 = vld [vmem:[#allocation9 + $0x20] sm:$0xff]
    %v1680 = vld [vmem:[#allocation9 + $0x28] sm:$0xff]
    %v1681 = vld [vmem:[#allocation9 + $0x30] sm:$0xff]
    %v1682 = vld [vmem:[#allocation9 + $0x38] sm:$0xff]
    %v1683 = vld [vmem:[#allocation9 + $0x40] sm:$0xff]
    %v1684 = vld [vmem:[#allocation9 + $0x48] sm:$0xff]
    %v1685 = vld [vmem:[#allocation9 + $0x50] sm:$0xff]
    %v1686 = vld [vmem:[#allocation9 + $0x58] sm:$0xff]
    %v1687 = vld [vmem:[#allocation9 + $0x60] sm:$0xff]
    %v1688 = vld [vmem:[#allocation9 + $0x68] sm:$0xff]
    %v1689 = vld [vmem:[#allocation9 + $0x70] sm:$0xff]
    %v1690 = vld [vmem:[#allocation9 + $0x78] sm:$0xff]
    %v1691 = vld [vmem:[#allocation9 + $0x80] sm:$0xff]
    %v1692 = vld [vmem:[#allocation9 + $0x88] sm:$0xff]
    %v1693 = vld [vmem:[#allocation9 + $0x90] sm:$0xff]
    %v1694 = vld [vmem:[#allocation9 + $0x98] sm:$0xff]
    %v1695 = vld [vmem:[#allocation9 + $0xa0] sm:$0xff]
    %v1696 = vld [vmem:[#allocation9 + $0xa8] sm:$0xff]
    %v1697 = vld [vmem:[#allocation9 + $0xb0] sm:$0xff]
    %v1698 = vld [vmem:[#allocation9 + $0xb8] sm:$0xff]
    %v1699 = vld [vmem:[#allocation9 + $0xc0] sm:$0xff]
    %v1700 = vld [vmem:[#allocation9 + $0xc8] sm:$0xff]
    %v1701 = vld [vmem:[#allocation9 + $0xd0] sm:$0xff]
    %v1702 = vld [vmem:[#allocation9 + $0xd8] sm:$0xff]
    %v1703 = vld [vmem:[#allocation9 + $0xe0] sm:$0xff]
    %v1704 = vld [vmem:[#allocation9 + $0xe8] sm:$0xff]
    %v1705 = vld [vmem:[#allocation9 + $0xf0] sm:$0xff]
    %v1706 = vld [vmem:[#allocation9 + $0xf8] sm:$0xff]
    %v1707 = vld [vmem:[#allocation9 + $0x100] sm:$0xff]
    %v1708 = vld [vmem:[#allocation9 + $0x108] sm:$0xff]
    %v1709 = vld [vmem:[#allocation9 + $0x110] sm:$0xff]
    %v1710 = vld [vmem:[#allocation9 + $0x118] sm:$0xff]
    %v1711 = vld [vmem:[#allocation9 + $0x120] sm:$0xff]
    %v1712 = vld [vmem:[#allocation9 + $0x128] sm:$0xff]
    %v1713 = vld [vmem:[#allocation9 + $0x130] sm:$0xff]
    %v1714 = vld [vmem:[#allocation9 + $0x138] sm:$0xff]
    %v1715 = vld [vmem:[#allocation9 + $0x140] sm:$0xff]
    %v1716 = vld [vmem:[#allocation9 + $0x148] sm:$0xff]
    %v1717 = vld [vmem:[#allocation9 + $0x150] sm:$0xff]
    %v1718 = vld [vmem:[#allocation9 + $0x158] sm:$0xff]
    %v1719 = vld [vmem:[#allocation9 + $0x160] sm:$0xff]
    %v1720 = vld [vmem:[#allocation9 + $0x168] sm:$0xff]
    %v1721 = vld [vmem:[#allocation9 + $0x170] sm:$0xff]
    %v1722 = vld [vmem:[#allocation9 + $0x178] sm:$0xff]
    %v1723 = vld [vmem:[#allocation9 + $0x180] sm:$0xff]
    %v1724 = vld [vmem:[#allocation9 + $0x188] sm:$0xff]
    %v1725 = vld [vmem:[#allocation9 + $0x190] sm:$0xff]
    %v1726 = vld [vmem:[#allocation9 + $0x198] sm:$0xff]
    %v1727 = vld [vmem:[#allocation9 + $0x1a0] sm:$0xff]
    %v1728 = vld [vmem:[#allocation9 + $0x1a8] sm:$0xff]
    %v1729 = vld [vmem:[#allocation9 + $0x1b0] sm:$0xff]
    %v1730 = vld [vmem:[#allocation9 + $0x1b8] sm:$0xff]
    %v1731 = vld [vmem:[#allocation9 + $0x1c0] sm:$0xff]
    %v1732 = vld [vmem:[#allocation9 + $0x1c8] sm:$0xff]
    %v1733 = vld [vmem:[#allocation9 + $0x1d0] sm:$0xff]
    %v1734 = vld [vmem:[#allocation9 + $0x1d8] sm:$0xff]
    %v1735 = vld [vmem:[#allocation9 + $0x1e0] sm:$0xff]
    %v1736 = vld [vmem:[#allocation9 + $0x1e8] sm:$0xff]
    %v1737 = vld [vmem:[#allocation9 + $0x1f0] sm:$0xff]
    %v1738 = vld [vmem:[#allocation9 + $0x1f8] sm:$0xff]
    %1739 = vmatprep.subr.mxu0 %v1736
    %1740 = vmatpush1.msra.mxu0 %v1735
    %1741 = vmatprep.subr.mxu0 %v1732
    %1742 = vmatpush1.msra.mxu0 %v1731
    %1743 = vmatprep.subr.mxu0 %v1728
    %1744 = vmatpush1.msra.mxu0 %v1727
    %1745 = vmatprep.subr.mxu0 %v1724
    %1746 = vmatpush1.msra.mxu0 %v1723
    %1747 = vmatprep.subr.mxu0 %v1720
    %1748 = vmatpush1.msra.mxu0 %v1719
    %1749 = vmatprep.subr.mxu0 %v1716
    %1750 = vmatpush1.msra.mxu0 %v1715
    %1751 = vmatprep.subr.mxu0 %v1712
    %1752 = vmatpush1.msra.mxu0 %v1711
    %1753 = vmatprep.subr.mxu0 %v1708
    %1754 = vmatpush1.msra.mxu0 %v1707
    %1755 = vmatprep.subr.mxu0 %v1704
    %1756 = vmatpush1.msra.mxu0 %v1703
    %1757 = vmatprep.subr.mxu0 %v1700
    %1758 = vmatpush1.msra.mxu0 %v1699
    %1759 = vmatprep.subr.mxu0 %v1696
    %1760 = vmatpush1.msra.mxu0 %v1695
    %1761 = vmatprep.subr.mxu0 %v1692
    %1762 = vmatpush1.msra.mxu0 %v1691
    %1763 = vmatprep.subr.mxu0 %v1688
    %1764 = vmatpush1.msra.mxu0 %v1687
    %1765 = vmatprep.subr.mxu0 %v1684
    %1766 = vmatpush1.msra.mxu0 %v1683
    %1767 = vmatprep.subr.mxu0 %v1680
    %1768 = vmatpush1.msra.mxu0 %v1679
    %1769 = vmatprep.subr.mxu0 %v1676
    %1770 = vmatpush1.msra.mxu0 %v1675
    %1771 = vmatprep.subr.mxu0 0.0
    %1772 = vmatpush2.msra.mxu0 0.0
    %1773 = vmatprep.subr.mxu0 0.0
    %1774 = vmatpush2.msra.mxu0 0.0
    %1775 = vmatprep.subr.mxu0 0.0
    %1776 = vmatpush2.msra.mxu0 0.0
    %1777 = vmatprep.subr.mxu0 0.0
    %1778 = vmatpush2.msra.mxu0 0.0
    %1779 = vmatprep.subr.mxu0 0.0
    %1780 = vmatpush2.msra.mxu0 0.0
    %1781 = vmatprep.subr.mxu0 0.0
    %1782 = vmatpush2.msra.mxu0 0.0
    %1783 = vmatprep.subr.mxu0 0.0
    %1784 = vmatpush2.msra.mxu0 0.0
    %1785 = vmatprep.subr.mxu0 0.0
    %1786 = vmatpush2.msra.mxu0 0.0
    %1787 = vmatprep.subr.mxu0 0.0
    %1788 = vmatpush2.msra.mxu0 0.0
    %1789 = vmatprep.subr.mxu0 0.0
    %1790 = vmatpush2.msra.mxu0 0.0
    %1791 = vmatprep.subr.mxu0 0.0
    %1792 = vmatpush2.msra.mxu0 0.0
    %1793 = vmatprep.subr.mxu0 0.0
    %1794 = vmatpush2.msra.mxu0 0.0
    %1795 = vmatprep.subr.mxu0 0.0
    %1796 = vmatpush2.msra.mxu0 0.0
    %1797 = vmatprep.subr.mxu0 0.0
    %1798 = vmatpush2.msra.mxu0 0.0
    %1799 = vmatprep.subr.mxu0 0.0
    %1800 = vmatpush2.msra.mxu0 0.0
    %1801 = vmatprep.subr.mxu0 0.0
    %1802 = vmatpush2.msra.mxu0 0.0
    %1803 = vmatprep.mubr.f32.mxu0 0.0
    %1804 = vmatmul.mubr.f32.gmra.mxu0 %v1667
    %v1805 = vpop.f32.mrf.mxu0
    %v1806 = vadd.f32 0.0, %v1805
    %v1807 = vpop.f32.mrf.mxu0
    %v1808 = vadd.f32 0.0, %v1807
    %1809 = vdwg.mxu0
    %1810 = vmatprep.subr.mxu0 %v1738
    %1811 = vmatpush1.msra.mxu0 %v1737
    %1812 = vmatprep.subr.mxu0 %v1734
    %1813 = vmatpush1.msra.mxu0 %v1733
    %1814 = vmatprep.subr.mxu0 %v1730
    %1815 = vmatpush1.msra.mxu0 %v1729
    %1816 = vmatprep.subr.mxu0 %v1726
    %1817 = vmatpush1.msra.mxu0 %v1725
    %1818 = vmatprep.subr.mxu0 %v1722
    %1819 = vmatpush1.msra.mxu0 %v1721
    %1820 = vmatprep.subr.mxu0 %v1718
    %1821 = vmatpush1.msra.mxu0 %v1717
    %1822 = vmatprep.subr.mxu0 %v1714
    %1823 = vmatpush1.msra.mxu0 %v1713
    %1824 = vmatprep.subr.mxu0 %v1710
    %1825 = vmatpush1.msra.mxu0 %v1709
    %1826 = vmatprep.subr.mxu0 %v1706
    %1827 = vmatpush1.msra.mxu0 %v1705
    %1828 = vmatprep.subr.mxu0 %v1702
    %1829 = vmatpush1.msra.mxu0 %v1701
    %1830 = vmatprep.subr.mxu0 %v1698
    %1831 = vmatpush1.msra.mxu0 %v1697
    %1832 = vmatprep.subr.mxu0 %v1694
    %1833 = vmatpush1.msra.mxu0 %v1693
    %1834 = vmatprep.subr.mxu0 %v1690
    %1835 = vmatpush1.msra.mxu0 %v1689
    %1836 = vmatprep.subr.mxu0 %v1686
    %1837 = vmatpush1.msra.mxu0 %v1685
    %1838 = vmatprep.subr.mxu0 %v1682
    %1839 = vmatpush1.msra.mxu0 %v1681
    %1840 = vmatprep.subr.mxu0 %v1678
    %1841 = vmatpush1.msra.mxu0 %v1677
    %1842 = vmatprep.subr.mxu0 0.0
    %1843 = vmatpush2.msra.mxu0 0.0
    %1844 = vmatprep.subr.mxu0 0.0
    %1845 = vmatpush2.msra.mxu0 0.0
    %1846 = vmatprep.subr.mxu0 0.0
    %1847 = vmatpush2.msra.mxu0 0.0
    %1848 = vmatprep.subr.mxu0 0.0
    %1849 = vmatpush2.msra.mxu0 0.0
    %1850 = vmatprep.subr.mxu0 0.0
    %1851 = vmatpush2.msra.mxu0 0.0
    %1852 = vmatprep.subr.mxu0 0.0
    %1853 = vmatpush2.msra.mxu0 0.0
    %1854 = vmatprep.subr.mxu0 0.0
    %1855 = vmatpush2.msra.mxu0 0.0
    %1856 = vmatprep.subr.mxu0 0.0
    %1857 = vmatpush2.msra.mxu0 0.0
    %1858 = vmatprep.subr.mxu0 0.0
    %1859 = vmatpush2.msra.mxu0 0.0
    %1860 = vmatprep.subr.mxu0 0.0
    %1861 = vmatpush2.msra.mxu0 0.0
    %1862 = vmatprep.subr.mxu0 0.0
    %1863 = vmatpush2.msra.mxu0 0.0
    %1864 = vmatprep.subr.mxu0 0.0
    %1865 = vmatpush2.msra.mxu0 0.0
    %1866 = vmatprep.subr.mxu0 0.0
    %1867 = vmatpush2.msra.mxu0 0.0
    %1868 = vmatprep.subr.mxu0 0.0
    %1869 = vmatpush2.msra.mxu0 0.0
    %1870 = vmatprep.subr.mxu0 0.0
    %1871 = vmatpush2.msra.mxu0 0.0
    %1872 = vmatprep.subr.mxu0 0.0
    %1873 = vmatpush2.msra.mxu0 0.0
    %1874 = vmatprep.mubr.f32.mxu0 0.0
    %1875 = vmatmul.mubr.f32.gmra.mxu0 %v1667
    %v1876 = vpop.f32.mrf.mxu0
    %v1877 = vadd.f32 0.0, %v1876
    %v1878 = vpop.f32.mrf.mxu0
    %v1879 = vadd.f32 0.0, %v1878
    %1880 = vdwg.mxu0
    %v1881 = vadd.f32 %v1671, %v1806
    %v1882 = vadd.f32 %v1672, %v1808
    %v1883 = vadd.f32 %v1673, %v1877
    %v1884 = vadd.f32 %v1674, %v1879
    %v1885 = vxor.u32 %v1881, 2147483648
    %v1886 = vmul.f32 %v1885, 1.442695
    %v1887 = vpow.pop %v1886
    %v1888 = vadd.f32 %v1887, 1.0
    %v1889 = vrcp.pop %v1888
    %v1890 = vmul.f32 1.0, %v1889
    %v1891 = vxor.u32 %v1882, 2147483648
    %v1892 = vmul.f32 %v1891, 1.442695
    %v1893 = vpow.pop %v1892
    %v1894 = vadd.f32 %v1893, 1.0
    %v1895 = vrcp.pop %v1894
    %v1896 = vmul.f32 1.0, %v1895
    %v1897 = vtanh.pop %v1883
    %v1898 = vxor.u32 %v1884, 2147483648
    %v1899 = vmul.f32 %v1898, 1.442695
    %v1900 = vpow.pop %v1899
    %v1901 = vadd.f32 %v1900, 1.0
    %v1902 = vrcp.pop %v1901
    %v1903 = vmul.f32 1.0, %v1902
    %v1904 = vmul.f32 %v1896, %v1665
    %v1905 = vmul.f32 %v1890, %v1897
    %v1906 = vadd.f32 %v1904, %v1905
    %v1907 = vtanh.pop %v1906
    %v1908 = vmul.f32 %v1903, %v1907
    %s1909 = scalar_lea.vmem [#allocation3], 40
    %1910 = vst [vmem:[%s1909] sm:$0xff] %v1908
    %s1911 = scalar_lea.vmem [#allocation2], 192
    %v1912 = vld [vmem:[%s1911] sm:$0xff]
    %v1913 = vld [vmem:[%s1911 + $0x8] sm:$0xff]
    %v1914 = vld [vmem:[%s1911 + $0x10] sm:$0xff]
    %v1915 = vld [vmem:[%s1911 + $0x18] sm:$0xff]
    %v1916 = vld [vmem:[#allocation9] sm:$0xff]
    %v1917 = vld [vmem:[#allocation9 + $0x8] sm:$0xff]
    %v1918 = vld [vmem:[#allocation9 + $0x10] sm:$0xff]
    %v1919 = vld [vmem:[#allocation9 + $0x18] sm:$0xff]
    %v1920 = vld [vmem:[#allocation9 + $0x20] sm:$0xff]
    %v1921 = vld [vmem:[#allocation9 + $0x28] sm:$0xff]
    %v1922 = vld [vmem:[#allocation9 + $0x30] sm:$0xff]
    %v1923 = vld [vmem:[#allocation9 + $0x38] sm:$0xff]
    %v1924 = vld [vmem:[#allocation9 + $0x40] sm:$0xff]
    %v1925 = vld [vmem:[#allocation9 + $0x48] sm:$0xff]
    %v1926 = vld [vmem:[#allocation9 + $0x50] sm:$0xff]
    %v1927 = vld [vmem:[#allocation9 + $0x58] sm:$0xff]
    %v1928 = vld [vmem:[#allocation9 + $0x60] sm:$0xff]
    %v1929 = vld [vmem:[#allocation9 + $0x68] sm:$0xff]
    %v1930 = vld [vmem:[#allocation9 + $0x70] sm:$0xff]
    %v1931 = vld [vmem:[#allocation9 + $0x78] sm:$0xff]
    %v1932 = vld [vmem:[#allocation9 + $0x80] sm:$0xff]
    %v1933 = vld [vmem:[#allocation9 + $0x88] sm:$0xff]
    %v1934 = vld [vmem:[#allocation9 + $0x90] sm:$0xff]
    %v1935 = vld [vmem:[#allocation9 + $0x98] sm:$0xff]
    %v1936 = vld [vmem:[#allocation9 + $0xa0] sm:$0xff]
    %v1937 = vld [vmem:[#allocation9 + $0xa8] sm:$0xff]
    %v1938 = vld [vmem:[#allocation9 + $0xb0] sm:$0xff]
    %v1939 = vld [vmem:[#allocation9 + $0xb8] sm:$0xff]
    %v1940 = vld [vmem:[#allocation9 + $0xc0] sm:$0xff]
    %v1941 = vld [vmem:[#allocation9 + $0xc8] sm:$0xff]
    %v1942 = vld [vmem:[#allocation9 + $0xd0] sm:$0xff]
    %v1943 = vld [vmem:[#allocation9 + $0xd8] sm:$0xff]
    %v1944 = vld [vmem:[#allocation9 + $0xe0] sm:$0xff]
    %v1945 = vld [vmem:[#allocation9 + $0xe8] sm:$0xff]
    %v1946 = vld [vmem:[#allocation9 + $0xf0] sm:$0xff]
    %v1947 = vld [vmem:[#allocation9 + $0xf8] sm:$0xff]
    %v1948 = vld [vmem:[#allocation9 + $0x100] sm:$0xff]
    %v1949 = vld [vmem:[#allocation9 + $0x108] sm:$0xff]
    %v1950 = vld [vmem:[#allocation9 + $0x110] sm:$0xff]
    %v1951 = vld [vmem:[#allocation9 + $0x118] sm:$0xff]
    %v1952 = vld [vmem:[#allocation9 + $0x120] sm:$0xff]
    %v1953 = vld [vmem:[#allocation9 + $0x128] sm:$0xff]
    %v1954 = vld [vmem:[#allocation9 + $0x130] sm:$0xff]
    %v1955 = vld [vmem:[#allocation9 + $0x138] sm:$0xff]
    %v1956 = vld [vmem:[#allocation9 + $0x140] sm:$0xff]
    %v1957 = vld [vmem:[#allocation9 + $0x148] sm:$0xff]
    %v1958 = vld [vmem:[#allocation9 + $0x150] sm:$0xff]
    %v1959 = vld [vmem:[#allocation9 + $0x158] sm:$0xff]
    %v1960 = vld [vmem:[#allocation9 + $0x160] sm:$0xff]
    %v1961 = vld [vmem:[#allocation9 + $0x168] sm:$0xff]
    %v1962 = vld [vmem:[#allocation9 + $0x170] sm:$0xff]
    %v1963 = vld [vmem:[#allocation9 + $0x178] sm:$0xff]
    %v1964 = vld [vmem:[#allocation9 + $0x180] sm:$0xff]
    %v1965 = vld [vmem:[#allocation9 + $0x188] sm:$0xff]
    %v1966 = vld [vmem:[#allocation9 + $0x190] sm:$0xff]
    %v1967 = vld [vmem:[#allocation9 + $0x198] sm:$0xff]
    %v1968 = vld [vmem:[#allocation9 + $0x1a0] sm:$0xff]
    %v1969 = vld [vmem:[#allocation9 + $0x1a8] sm:$0xff]
    %v1970 = vld [vmem:[#allocation9 + $0x1b0] sm:$0xff]
    %v1971 = vld [vmem:[#allocation9 + $0x1b8] sm:$0xff]
    %v1972 = vld [vmem:[#allocation9 + $0x1c0] sm:$0xff]
    %v1973 = vld [vmem:[#allocation9 + $0x1c8] sm:$0xff]
    %v1974 = vld [vmem:[#allocation9 + $0x1d0] sm:$0xff]
    %v1975 = vld [vmem:[#allocation9 + $0x1d8] sm:$0xff]
    %v1976 = vld [vmem:[#allocation9 + $0x1e0] sm:$0xff]
    %v1977 = vld [vmem:[#allocation9 + $0x1e8] sm:$0xff]
    %v1978 = vld [vmem:[#allocation9 + $0x1f0] sm:$0xff]
    %v1979 = vld [vmem:[#allocation9 + $0x1f8] sm:$0xff]
    %1980 = vmatprep.subr.mxu0 %v1977
    %1981 = vmatpush1.msra.mxu0 %v1976
    %1982 = vmatprep.subr.mxu0 %v1973
    %1983 = vmatpush1.msra.mxu0 %v1972
    %1984 = vmatprep.subr.mxu0 %v1969
    %1985 = vmatpush1.msra.mxu0 %v1968
    %1986 = vmatprep.subr.mxu0 %v1965
    %1987 = vmatpush1.msra.mxu0 %v1964
    %1988 = vmatprep.subr.mxu0 %v1961
    %1989 = vmatpush1.msra.mxu0 %v1960
    %1990 = vmatprep.subr.mxu0 %v1957
    %1991 = vmatpush1.msra.mxu0 %v1956
    %1992 = vmatprep.subr.mxu0 %v1953
    %1993 = vmatpush1.msra.mxu0 %v1952
    %1994 = vmatprep.subr.mxu0 %v1949
    %1995 = vmatpush1.msra.mxu0 %v1948
    %1996 = vmatprep.subr.mxu0 %v1945
    %1997 = vmatpush1.msra.mxu0 %v1944
    %1998 = vmatprep.subr.mxu0 %v1941
    %1999 = vmatpush1.msra.mxu0 %v1940
    %2000 = vmatprep.subr.mxu0 %v1937
    %2001 = vmatpush1.msra.mxu0 %v1936
    %2002 = vmatprep.subr.mxu0 %v1933
    %2003 = vmatpush1.msra.mxu0 %v1932
    %2004 = vmatprep.subr.mxu0 %v1929
    %2005 = vmatpush1.msra.mxu0 %v1928
    %2006 = vmatprep.subr.mxu0 %v1925
    %2007 = vmatpush1.msra.mxu0 %v1924
    %2008 = vmatprep.subr.mxu0 %v1921
    %2009 = vmatpush1.msra.mxu0 %v1920
    %2010 = vmatprep.subr.mxu0 %v1917
    %2011 = vmatpush1.msra.mxu0 %v1916
    %2012 = vmatprep.subr.mxu0 0.0
    %2013 = vmatpush2.msra.mxu0 0.0
    %2014 = vmatprep.subr.mxu0 0.0
    %2015 = vmatpush2.msra.mxu0 0.0
    %2016 = vmatprep.subr.mxu0 0.0
    %2017 = vmatpush2.msra.mxu0 0.0
    %2018 = vmatprep.subr.mxu0 0.0
    %2019 = vmatpush2.msra.mxu0 0.0
    %2020 = vmatprep.subr.mxu0 0.0
    %2021 = vmatpush2.msra.mxu0 0.0
    %2022 = vmatprep.subr.mxu0 0.0
    %2023 = vmatpush2.msra.mxu0 0.0
    %2024 = vmatprep.subr.mxu0 0.0
    %2025 = vmatpush2.msra.mxu0 0.0
    %2026 = vmatprep.subr.mxu0 0.0
    %2027 = vmatpush2.msra.mxu0 0.0
    %2028 = vmatprep.subr.mxu0 0.0
    %2029 = vmatpush2.msra.mxu0 0.0
    %2030 = vmatprep.subr.mxu0 0.0
    %2031 = vmatpush2.msra.mxu0 0.0
    %2032 = vmatprep.subr.mxu0 0.0
    %2033 = vmatpush2.msra.mxu0 0.0
    %2034 = vmatprep.subr.mxu0 0.0
    %2035 = vmatpush2.msra.mxu0 0.0
    %2036 = vmatprep.subr.mxu0 0.0
    %2037 = vmatpush2.msra.mxu0 0.0
    %2038 = vmatprep.subr.mxu0 0.0
    %2039 = vmatpush2.msra.mxu0 0.0
    %2040 = vmatprep.subr.mxu0 0.0
    %2041 = vmatpush2.msra.mxu0 0.0
    %2042 = vmatprep.subr.mxu0 0.0
    %2043 = vmatpush2.msra.mxu0 0.0
    %2044 = vmatprep.mubr.f32.mxu0 0.0
    %2045 = vmatmul.mubr.f32.gmra.mxu0 %v1908
    %v2046 = vpop.f32.mrf.mxu0
    %v2047 = vadd.f32 0.0, %v2046
    %v2048 = vpop.f32.mrf.mxu0
    %v2049 = vadd.f32 0.0, %v2048
    %2050 = vdwg.mxu0
    %2051 = vmatprep.subr.mxu0 %v1979
    %2052 = vmatpush1.msra.mxu0 %v1978
    %2053 = vmatprep.subr.mxu0 %v1975
    %2054 = vmatpush1.msra.mxu0 %v1974
    %2055 = vmatprep.subr.mxu0 %v1971
    %2056 = vmatpush1.msra.mxu0 %v1970
    %2057 = vmatprep.subr.mxu0 %v1967
    %2058 = vmatpush1.msra.mxu0 %v1966
    %2059 = vmatprep.subr.mxu0 %v1963
    %2060 = vmatpush1.msra.mxu0 %v1962
    %2061 = vmatprep.subr.mxu0 %v1959
    %2062 = vmatpush1.msra.mxu0 %v1958
    %2063 = vmatprep.subr.mxu0 %v1955
    %2064 = vmatpush1.msra.mxu0 %v1954
    %2065 = vmatprep.subr.mxu0 %v1951
    %2066 = vmatpush1.msra.mxu0 %v1950
    %2067 = vmatprep.subr.mxu0 %v1947
    %2068 = vmatpush1.msra.mxu0 %v1946
    %2069 = vmatprep.subr.mxu0 %v1943
    %2070 = vmatpush1.msra.mxu0 %v1942
    %2071 = vmatprep.subr.mxu0 %v1939
    %2072 = vmatpush1.msra.mxu0 %v1938
    %2073 = vmatprep.subr.mxu0 %v1935
    %2074 = vmatpush1.msra.mxu0 %v1934
    %2075 = vmatprep.subr.mxu0 %v1931
    %2076 = vmatpush1.msra.mxu0 %v1930
    %2077 = vmatprep.subr.mxu0 %v1927
    %2078 = vmatpush1.msra.mxu0 %v1926
    %2079 = vmatprep.subr.mxu0 %v1923
    %2080 = vmatpush1.msra.mxu0 %v1922
    %2081 = vmatprep.subr.mxu0 %v1919
    %2082 = vmatpush1.msra.mxu0 %v1918
    %2083 = vmatprep.subr.mxu0 0.0
    %2084 = vmatpush2.msra.mxu0 0.0
    %2085 = vmatprep.subr.mxu0 0.0
    %2086 = vmatpush2.msra.mxu0 0.0
    %2087 = vmatprep.subr.mxu0 0.0
    %2088 = vmatpush2.msra.mxu0 0.0
    %2089 = vmatprep.subr.mxu0 0.0
    %2090 = vmatpush2.msra.mxu0 0.0
    %2091 = vmatprep.subr.mxu0 0.0
    %2092 = vmatpush2.msra.mxu0 0.0
    %2093 = vmatprep.subr.mxu0 0.0
    %2094 = vmatpush2.msra.mxu0 0.0
    %2095 = vmatprep.subr.mxu0 0.0
    %2096 = vmatpush2.msra.mxu0 0.0
    %2097 = vmatprep.subr.mxu0 0.0
    %2098 = vmatpush2.msra.mxu0 0.0
    %2099 = vmatprep.subr.mxu0 0.0
    %2100 = vmatpush2.msra.mxu0 0.0
    %2101 = vmatprep.subr.mxu0 0.0
    %2102 = vmatpush2.msra.mxu0 0.0
    %2103 = vmatprep.subr.mxu0 0.0
    %2104 = vmatpush2.msra.mxu0 0.0
    %2105 = vmatprep.subr.mxu0 0.0
    %2106 = vmatpush2.msra.mxu0 0.0
    %2107 = vmatprep.subr.mxu0 0.0
    %2108 = vmatpush2.msra.mxu0 0.0
    %2109 = vmatprep.subr.mxu0 0.0
    %2110 = vmatpush2.msra.mxu0 0.0
    %2111 = vmatprep.subr.mxu0 0.0
    %2112 = vmatpush2.msra.mxu0 0.0
    %2113 = vmatprep.subr.mxu0 0.0
    %2114 = vmatpush2.msra.mxu0 0.0
    %2115 = vmatprep.mubr.f32.mxu0 0.0
    %2116 = vmatmul.mubr.f32.gmra.mxu0 %v1908
    %v2117 = vpop.f32.mrf.mxu0
    %v2118 = vadd.f32 0.0, %v2117
    %v2119 = vpop.f32.mrf.mxu0
    %v2120 = vadd.f32 0.0, %v2119
    %2121 = vdwg.mxu0
    %v2122 = vadd.f32 %v1912, %v2047
    %v2123 = vadd.f32 %v1913, %v2049
    %v2124 = vadd.f32 %v1914, %v2118
    %v2125 = vadd.f32 %v1915, %v2120
    %v2126 = vxor.u32 %v2122, 2147483648
    %v2127 = vmul.f32 %v2126, 1.442695
    %v2128 = vpow.pop %v2127
    %v2129 = vadd.f32 %v2128, 1.0
    %v2130 = vrcp.pop %v2129
    %v2131 = vmul.f32 1.0, %v2130
    %v2132 = vxor.u32 %v2123, 2147483648
    %v2133 = vmul.f32 %v2132, 1.442695
    %v2134 = vpow.pop %v2133
    %v2135 = vadd.f32 %v2134, 1.0
    %v2136 = vrcp.pop %v2135
    %v2137 = vmul.f32 1.0, %v2136
    %v2138 = vtanh.pop %v2124
    %v2139 = vxor.u32 %v2125, 2147483648
    %v2140 = vmul.f32 %v2139, 1.442695
    %v2141 = vpow.pop %v2140
    %v2142 = vadd.f32 %v2141, 1.0
    %v2143 = vrcp.pop %v2142
    %v2144 = vmul.f32 1.0, %v2143
    %v2145 = vmul.f32 %v2137, %v1906
    %v2146 = vmul.f32 %v2131, %v2138
    %v2147 = vadd.f32 %v2145, %v2146
    %v2148 = vtanh.pop %v2147
    %v2149 = vmul.f32 %v2144, %v2148
    %s2150 = scalar_lea.vmem [#allocation3], 48
    %2151 = vst [vmem:[%s2150] sm:$0xff] %v2149
    %s2152 = scalar_lea.vmem [#allocation2], 224
    %v2153 = vld [vmem:[%s2152] sm:$0xff]
    %v2154 = vld [vmem:[%s2152 + $0x8] sm:$0xff]
    %v2155 = vld [vmem:[%s2152 + $0x10] sm:$0xff]
    %v2156 = vld [vmem:[%s2152 + $0x18] sm:$0xff]
    %v2157 = vld [vmem:[#allocation9] sm:$0xff]
    %v2158 = vld [vmem:[#allocation9 + $0x8] sm:$0xff]
    %v2159 = vld [vmem:[#allocation9 + $0x10] sm:$0xff]
    %v2160 = vld [vmem:[#allocation9 + $0x18] sm:$0xff]
    %v2161 = vld [vmem:[#allocation9 + $0x20] sm:$0xff]
    %v2162 = vld [vmem:[#allocation9 + $0x28] sm:$0xff]
    %v2163 = vld [vmem:[#allocation9 + $0x30] sm:$0xff]
    %v2164 = vld [vmem:[#allocation9 + $0x38] sm:$0xff]
    %v2165 = vld [vmem:[#allocation9 + $0x40] sm:$0xff]
    %v2166 = vld [vmem:[#allocation9 + $0x48] sm:$0xff]
    %v2167 = vld [vmem:[#allocation9 + $0x50] sm:$0xff]
    %v2168 = vld [vmem:[#allocation9 + $0x58] sm:$0xff]
    %v2169 = vld [vmem:[#allocation9 + $0x60] sm:$0xff]
    %v2170 = vld [vmem:[#allocation9 + $0x68] sm:$0xff]
    %v2171 = vld [vmem:[#allocation9 + $0x70] sm:$0xff]
    %v2172 = vld [vmem:[#allocation9 + $0x78] sm:$0xff]
    %v2173 = vld [vmem:[#allocation9 + $0x80] sm:$0xff]
    %v2174 = vld [vmem:[#allocation9 + $0x88] sm:$0xff]
    %v2175 = vld [vmem:[#allocation9 + $0x90] sm:$0xff]
    %v2176 = vld [vmem:[#allocation9 + $0x98] sm:$0xff]
    %v2177 = vld [vmem:[#allocation9 + $0xa0] sm:$0xff]
    %v2178 = vld [vmem:[#allocation9 + $0xa8] sm:$0xff]
    %v2179 = vld [vmem:[#allocation9 + $0xb0] sm:$0xff]
    %v2180 = vld [vmem:[#allocation9 + $0xb8] sm:$0xff]
    %v2181 = vld [vmem:[#allocation9 + $0xc0] sm:$0xff]
    %v2182 = vld [vmem:[#allocation9 + $0xc8] sm:$0xff]
    %v2183 = vld [vmem:[#allocation9 + $0xd0] sm:$0xff]
    %v2184 = vld [vmem:[#allocation9 + $0xd8] sm:$0xff]
    %v2185 = vld [vmem:[#allocation9 + $0xe0] sm:$0xff]
    %v2186 = vld [vmem:[#allocation9 + $0xe8] sm:$0xff]
    %v2187 = vld [vmem:[#allocation9 + $0xf0] sm:$0xff]
    %v2188 = vld [vmem:[#allocation9 + $0xf8] sm:$0xff]
    %v2189 = vld [vmem:[#allocation9 + $0x100] sm:$0xff]
    %v2190 = vld [vmem:[#allocation9 + $0x108] sm:$0xff]
    %v2191 = vld [vmem:[#allocation9 + $0x110] sm:$0xff]
    %v2192 = vld [vmem:[#allocation9 + $0x118] sm:$0xff]
    %v2193 = vld [vmem:[#allocation9 + $0x120] sm:$0xff]
    %v2194 = vld [vmem:[#allocation9 + $0x128] sm:$0xff]
    %v2195 = vld [vmem:[#allocation9 + $0x130] sm:$0xff]
    %v2196 = vld [vmem:[#allocation9 + $0x138] sm:$0xff]
    %v2197 = vld [vmem:[#allocation9 + $0x140] sm:$0xff]
    %v2198 = vld [vmem:[#allocation9 + $0x148] sm:$0xff]
    %v2199 = vld [vmem:[#allocation9 + $0x150] sm:$0xff]
    %v2200 = vld [vmem:[#allocation9 + $0x158] sm:$0xff]
    %v2201 = vld [vmem:[#allocation9 + $0x160] sm:$0xff]
    %v2202 = vld [vmem:[#allocation9 + $0x168] sm:$0xff]
    %v2203 = vld [vmem:[#allocation9 + $0x170] sm:$0xff]
    %v2204 = vld [vmem:[#allocation9 + $0x178] sm:$0xff]
    %v2205 = vld [vmem:[#allocation9 + $0x180] sm:$0xff]
    %v2206 = vld [vmem:[#allocation9 + $0x188] sm:$0xff]
    %v2207 = vld [vmem:[#allocation9 + $0x190] sm:$0xff]
    %v2208 = vld [vmem:[#allocation9 + $0x198] sm:$0xff]
    %v2209 = vld [vmem:[#allocation9 + $0x1a0] sm:$0xff]
    %v2210 = vld [vmem:[#allocation9 + $0x1a8] sm:$0xff]
    %v2211 = vld [vmem:[#allocation9 + $0x1b0] sm:$0xff]
    %v2212 = vld [vmem:[#allocation9 + $0x1b8] sm:$0xff]
    %v2213 = vld [vmem:[#allocation9 + $0x1c0] sm:$0xff]
    %v2214 = vld [vmem:[#allocation9 + $0x1c8] sm:$0xff]
    %v2215 = vld [vmem:[#allocation9 + $0x1d0] sm:$0xff]
    %v2216 = vld [vmem:[#allocation9 + $0x1d8] sm:$0xff]
    %v2217 = vld [vmem:[#allocation9 + $0x1e0] sm:$0xff]
    %v2218 = vld [vmem:[#allocation9 + $0x1e8] sm:$0xff]
    %v2219 = vld [vmem:[#allocation9 + $0x1f0] sm:$0xff]
    %v2220 = vld [vmem:[#allocation9 + $0x1f8] sm:$0xff]
    %2221 = vmatprep.subr.mxu0 %v2218
    %2222 = vmatpush1.msra.mxu0 %v2217
    %2223 = vmatprep.subr.mxu0 %v2214
    %2224 = vmatpush1.msra.mxu0 %v2213
    %2225 = vmatprep.subr.mxu0 %v2210
    %2226 = vmatpush1.msra.mxu0 %v2209
    %2227 = vmatprep.subr.mxu0 %v2206
    %2228 = vmatpush1.msra.mxu0 %v2205
    %2229 = vmatprep.subr.mxu0 %v2202
    %2230 = vmatpush1.msra.mxu0 %v2201
    %2231 = vmatprep.subr.mxu0 %v2198
    %2232 = vmatpush1.msra.mxu0 %v2197
    %2233 = vmatprep.subr.mxu0 %v2194
    %2234 = vmatpush1.msra.mxu0 %v2193
    %2235 = vmatprep.subr.mxu0 %v2190
    %2236 = vmatpush1.msra.mxu0 %v2189
    %2237 = vmatprep.subr.mxu0 %v2186
    %2238 = vmatpush1.msra.mxu0 %v2185
    %2239 = vmatprep.subr.mxu0 %v2182
    %2240 = vmatpush1.msra.mxu0 %v2181
    %2241 = vmatprep.subr.mxu0 %v2178
    %2242 = vmatpush1.msra.mxu0 %v2177
    %2243 = vmatprep.subr.mxu0 %v2174
    %2244 = vmatpush1.msra.mxu0 %v2173
    %2245 = vmatprep.subr.mxu0 %v2170
    %2246 = vmatpush1.msra.mxu0 %v2169
    %2247 = vmatprep.subr.mxu0 %v2166
    %2248 = vmatpush1.msra.mxu0 %v2165
    %2249 = vmatprep.subr.mxu0 %v2162
    %2250 = vmatpush1.msra.mxu0 %v2161
    %2251 = vmatprep.subr.mxu0 %v2158
    %2252 = vmatpush1.msra.mxu0 %v2157
    %2253 = vmatprep.subr.mxu0 0.0
    %2254 = vmatpush2.msra.mxu0 0.0
    %2255 = vmatprep.subr.mxu0 0.0
    %2256 = vmatpush2.msra.mxu0 0.0
    %2257 = vmatprep.subr.mxu0 0.0
    %2258 = vmatpush2.msra.mxu0 0.0
    %2259 = vmatprep.subr.mxu0 0.0
    %2260 = vmatpush2.msra.mxu0 0.0
    %2261 = vmatprep.subr.mxu0 0.0
    %2262 = vmatpush2.msra.mxu0 0.0
    %2263 = vmatprep.subr.mxu0 0.0
    %2264 = vmatpush2.msra.mxu0 0.0
    %2265 = vmatprep.subr.mxu0 0.0
    %2266 = vmatpush2.msra.mxu0 0.0
    %2267 = vmatprep.subr.mxu0 0.0
    %2268 = vmatpush2.msra.mxu0 0.0
    %2269 = vmatprep.subr.mxu0 0.0
    %2270 = vmatpush2.msra.mxu0 0.0
    %2271 = vmatprep.subr.mxu0 0.0
    %2272 = vmatpush2.msra.mxu0 0.0
    %2273 = vmatprep.subr.mxu0 0.0
    %2274 = vmatpush2.msra.mxu0 0.0
    %2275 = vmatprep.subr.mxu0 0.0
    %2276 = vmatpush2.msra.mxu0 0.0
    %2277 = vmatprep.subr.mxu0 0.0
    %2278 = vmatpush2.msra.mxu0 0.0
    %2279 = vmatprep.subr.mxu0 0.0
    %2280 = vmatpush2.msra.mxu0 0.0
    %2281 = vmatprep.subr.mxu0 0.0
    %2282 = vmatpush2.msra.mxu0 0.0
    %2283 = vmatprep.subr.mxu0 0.0
    %2284 = vmatpush2.msra.mxu0 0.0
    %2285 = vmatprep.mubr.f32.mxu0 0.0
    %2286 = vmatmul.mubr.f32.gmra.mxu0 %v2149
    %v2287 = vpop.f32.mrf.mxu0
    %v2288 = vadd.f32 0.0, %v2287
    %v2289 = vpop.f32.mrf.mxu0
    %v2290 = vadd.f32 0.0, %v2289
    %2291 = vdwg.mxu0
    %2292 = vmatprep.subr.mxu0 %v2220
    %2293 = vmatpush1.msra.mxu0 %v2219
    %2294 = vmatprep.subr.mxu0 %v2216
    %2295 = vmatpush1.msra.mxu0 %v2215
    %2296 = vmatprep.subr.mxu0 %v2212
    %2297 = vmatpush1.msra.mxu0 %v2211
    %2298 = vmatprep.subr.mxu0 %v2208
    %2299 = vmatpush1.msra.mxu0 %v2207
    %2300 = vmatprep.subr.mxu0 %v2204
    %2301 = vmatpush1.msra.mxu0 %v2203
    %2302 = vmatprep.subr.mxu0 %v2200
    %2303 = vmatpush1.msra.mxu0 %v2199
    %2304 = vmatprep.subr.mxu0 %v2196
    %2305 = vmatpush1.msra.mxu0 %v2195
    %2306 = vmatprep.subr.mxu0 %v2192
    %2307 = vmatpush1.msra.mxu0 %v2191
    %2308 = vmatprep.subr.mxu0 %v2188
    %2309 = vmatpush1.msra.mxu0 %v2187
    %2310 = vmatprep.subr.mxu0 %v2184
    %2311 = vmatpush1.msra.mxu0 %v2183
    %2312 = vmatprep.subr.mxu0 %v2180
    %2313 = vmatpush1.msra.mxu0 %v2179
    %2314 = vmatprep.subr.mxu0 %v2176
    %2315 = vmatpush1.msra.mxu0 %v2175
    %2316 = vmatprep.subr.mxu0 %v2172
    %2317 = vmatpush1.msra.mxu0 %v2171
    %2318 = vmatprep.subr.mxu0 %v2168
    %2319 = vmatpush1.msra.mxu0 %v2167
    %2320 = vmatprep.subr.mxu0 %v2164
    %2321 = vmatpush1.msra.mxu0 %v2163
    %2322 = vmatprep.subr.mxu0 %v2160
    %2323 = vmatpush1.msra.mxu0 %v2159
    %2324 = vmatprep.subr.mxu0 0.0
    %2325 = vmatpush2.msra.mxu0 0.0
    %2326 = vmatprep.subr.mxu0 0.0
    %2327 = vmatpush2.msra.mxu0 0.0
    %2328 = vmatprep.subr.mxu0 0.0
    %2329 = vmatpush2.msra.mxu0 0.0
    %2330 = vmatprep.subr.mxu0 0.0
    %2331 = vmatpush2.msra.mxu0 0.0
    %2332 = vmatprep.subr.mxu0 0.0
    %2333 = vmatpush2.msra.mxu0 0.0
    %2334 = vmatprep.subr.mxu0 0.0
    %2335 = vmatpush2.msra.mxu0 0.0
    %2336 = vmatprep.subr.mxu0 0.0
    %2337 = vmatpush2.msra.mxu0 0.0
    %2338 = vmatprep.subr.mxu0 0.0
    %2339 = vmatpush2.msra.mxu0 0.0
    %2340 = vmatprep.subr.mxu0 0.0
    %2341 = vmatpush2.msra.mxu0 0.0
    %2342 = vmatprep.subr.mxu0 0.0
    %2343 = vmatpush2.msra.mxu0 0.0
    %2344 = vmatprep.subr.mxu0 0.0
    %2345 = vmatpush2.msra.mxu0 0.0
    %2346 = vmatprep.subr.mxu0 0.0
    %2347 = vmatpush2.msra.mxu0 0.0
    %2348 = vmatprep.subr.mxu0 0.0
    %2349 = vmatpush2.msra.mxu0 0.0
    %2350 = vmatprep.subr.mxu0 0.0
    %2351 = vmatpush2.msra.mxu0 0.0
    %2352 = vmatprep.subr.mxu0 0.0
    %2353 = vmatpush2.msra.mxu0 0.0
    %2354 = vmatprep.subr.mxu0 0.0
    %2355 = vmatpush2.msra.mxu0 0.0
    %2356 = vmatprep.mubr.f32.mxu0 0.0
    %2357 = vmatmul.mubr.f32.gmra.mxu0 %v2149
    %v2358 = vpop.f32.mrf.mxu0
    %v2359 = vadd.f32 0.0, %v2358
    %v2360 = vpop.f32.mrf.mxu0
    %v2361 = vadd.f32 0.0, %v2360
    %2362 = vdwg.mxu0
    %v2363 = vadd.f32 %v2153, %v2288
    %v2364 = vadd.f32 %v2154, %v2290
    %v2365 = vadd.f32 %v2155, %v2359
    %v2366 = vadd.f32 %v2156, %v2361
    %v2367 = vxor.u32 %v2363, 2147483648
    %v2368 = vmul.f32 %v2367, 1.442695
    %v2369 = vpow.pop %v2368
    %v2370 = vadd.f32 %v2369, 1.0
    %v2371 = vrcp.pop %v2370
    %v2372 = vmul.f32 1.0, %v2371
    %v2373 = vxor.u32 %v2364, 2147483648
    %v2374 = vmul.f32 %v2373, 1.442695
    %v2375 = vpow.pop %v2374
    %v2376 = vadd.f32 %v2375, 1.0
    %v2377 = vrcp.pop %v2376
    %v2378 = vmul.f32 1.0, %v2377
    %v2379 = vtanh.pop %v2365
    %v2380 = vxor.u32 %v2366, 2147483648
    %v2381 = vmul.f32 %v2380, 1.442695
    %v2382 = vpow.pop %v2381
    %v2383 = vadd.f32 %v2382, 1.0
    %v2384 = vrcp.pop %v2383
    %v2385 = vmul.f32 1.0, %v2384
    %v2386 = vmul.f32 %v2378, %v2147
    %v2387 = vmul.f32 %v2372, %v2379
    %v2388 = vadd.f32 %v2386, %v2387
    %v2389 = vtanh.pop %v2388
    %v2390 = vmul.f32 %v2385, %v2389
    %s2391 = scalar_lea.vmem [#allocation3], 56
    %2392 = vst [vmem:[%s2391] sm:$0xff] %v2390
    %v2393 = vld [vmem:[#allocation3] sm:$0xff]
    %v2394 = vld [vmem:[#allocation3 + $0x8] sm:$0xff]
    %v2395 = vld [vmem:[#allocation3 + $0x10] sm:$0xff]
    %v2396 = vld [vmem:[#allocation3 + $0x18] sm:$0xff]
    %v2397 = vld [vmem:[#allocation3 + $0x20] sm:$0xff]
    %v2398 = vld [vmem:[#allocation3 + $0x28] sm:$0xff]
    %v2399 = vld [vmem:[#allocation3 + $0x30] sm:$0xff]
    %v2400 = vld [vmem:[#allocation3 + $0x38] sm:$0xff]
    %v2401 = vld [vmem:[#allocation10] sm:$0xff]
    %v2402 = vld [vmem:[#allocation10 + $0x8] sm:$0xff]
    %v2403 = vld [vmem:[#allocation10 + $0x10] sm:$0xff]
    %v2404 = vld [vmem:[#allocation10 + $0x18] sm:$0xff]
    %v2405 = vld [vmem:[#allocation10 + $0x20] sm:$0xff]
    %v2406 = vld [vmem:[#allocation10 + $0x28] sm:$0xff]
    %v2407 = vld [vmem:[#allocation10 + $0x30] sm:$0xff]
    %v2408 = vld [vmem:[#allocation10 + $0x38] sm:$0xff]
    %v2409 = vld [vmem:[#allocation10 + $0x40] sm:$0xff]
    %v2410 = vld [vmem:[#allocation10 + $0x48] sm:$0xff]
    %v2411 = vld [vmem:[#allocation10 + $0x50] sm:$0xff]
    %v2412 = vld [vmem:[#allocation10 + $0x58] sm:$0xff]
    %v2413 = vld [vmem:[#allocation10 + $0x60] sm:$0xff]
    %v2414 = vld [vmem:[#allocation10 + $0x68] sm:$0xff]
    %v2415 = vld [vmem:[#allocation10 + $0x70] sm:$0xff]
    %v2416 = vld [vmem:[#allocation10 + $0x78] sm:$0xff]
    %v2417 = vld [vmem:[#allocation10 + $0x80] sm:$0xff]
    %v2418 = vld [vmem:[#allocation10 + $0x88] sm:$0xff]
    %v2419 = vld [vmem:[#allocation10 + $0x90] sm:$0xff]
    %v2420 = vld [vmem:[#allocation10 + $0x98] sm:$0xff]
    %v2421 = vld [vmem:[#allocation10 + $0xa0] sm:$0xff]
    %v2422 = vld [vmem:[#allocation10 + $0xa8] sm:$0xff]
    %v2423 = vld [vmem:[#allocation10 + $0xb0] sm:$0xff]
    %v2424 = vld [vmem:[#allocation10 + $0xb8] sm:$0xff]
    %v2425 = vld [vmem:[#allocation10 + $0xc0] sm:$0xff]
    %v2426 = vld [vmem:[#allocation10 + $0xc8] sm:$0xff]
    %v2427 = vld [vmem:[#allocation10 + $0xd0] sm:$0xff]
    %v2428 = vld [vmem:[#allocation10 + $0xd8] sm:$0xff]
    %v2429 = vld [vmem:[#allocation10 + $0xe0] sm:$0xff]
    %v2430 = vld [vmem:[#allocation10 + $0xe8] sm:$0xff]
    %v2431 = vld [vmem:[#allocation10 + $0xf0] sm:$0xff]
    %v2432 = vld [vmem:[#allocation10 + $0xf8] sm:$0xff]
    %v2433 = vld [vmem:[#allocation10 + $0x100] sm:$0xff]
    %v2434 = vld [vmem:[#allocation10 + $0x108] sm:$0xff]
    %v2435 = vld [vmem:[#allocation10 + $0x110] sm:$0xff]
    %v2436 = vld [vmem:[#allocation10 + $0x118] sm:$0xff]
    %v2437 = vld [vmem:[#allocation10 + $0x120] sm:$0xff]
    %v2438 = vld [vmem:[#allocation10 + $0x128] sm:$0xff]
    %v2439 = vld [vmem:[#allocation10 + $0x130] sm:$0xff]
    %v2440 = vld [vmem:[#allocation10 + $0x138] sm:$0xff]
    %v2441 = vld [vmem:[#allocation10 + $0x140] sm:$0xff]
    %v2442 = vld [vmem:[#allocation10 + $0x148] sm:$0xff]
    %v2443 = vld [vmem:[#allocation10 + $0x150] sm:$0xff]
    %v2444 = vld [vmem:[#allocation10 + $0x158] sm:$0xff]
    %v2445 = vld [vmem:[#allocation10 + $0x160] sm:$0xff]
    %v2446 = vld [vmem:[#allocation10 + $0x168] sm:$0xff]
    %v2447 = vld [vmem:[#allocation10 + $0x170] sm:$0xff]
    %v2448 = vld [vmem:[#allocation10 + $0x178] sm:$0xff]
    %v2449 = vld [vmem:[#allocation10 + $0x180] sm:$0xff]
    %v2450 = vld [vmem:[#allocation10 + $0x188] sm:$0xff]
    %v2451 = vld [vmem:[#allocation10 + $0x190] sm:$0xff]
    %v2452 = vld [vmem:[#allocation10 + $0x198] sm:$0xff]
    %v2453 = vld [vmem:[#allocation10 + $0x1a0] sm:$0xff]
    %v2454 = vld [vmem:[#allocation10 + $0x1a8] sm:$0xff]
    %v2455 = vld [vmem:[#allocation10 + $0x1b0] sm:$0xff]
    %v2456 = vld [vmem:[#allocation10 + $0x1b8] sm:$0xff]
    %v2457 = vld [vmem:[#allocation10 + $0x1c0] sm:$0xff]
    %v2458 = vld [vmem:[#allocation10 + $0x1c8] sm:$0xff]
    %v2459 = vld [vmem:[#allocation10 + $0x1d0] sm:$0xff]
    %v2460 = vld [vmem:[#allocation10 + $0x1d8] sm:$0xff]
    %v2461 = vld [vmem:[#allocation10 + $0x1e0] sm:$0xff]
    %v2462 = vld [vmem:[#allocation10 + $0x1e8] sm:$0xff]
    %v2463 = vld [vmem:[#allocation10 + $0x1f0] sm:$0xff]
    %v2464 = vld [vmem:[#allocation10 + $0x1f8] sm:$0xff]
    %v2465 = vld [vmem:[%s6] sm:$0xf]
    %v2467 = vlaneseq
    %v2468 = vshrl.u32 %v2467, 7
    %v2469 = vsub.s32 0, %v2468
    %v2470 = vrot.slane %v2465, %v2469
    %v2471 = vlaneseq
    %v2472 = vshrl.u32 %v2471, 7
    %v2473 = vsub.s32 1, %v2472
    %v2474 = vrot.slane %v2465, %v2473
    %v2475 = vlaneseq
    %v2476 = vshrl.u32 %v2475, 7
    %v2477 = vsub.s32 2, %v2476
    %v2478 = vrot.slane %v2465, %v2477
    %v2479 = vlaneseq
    %v2480 = vshrl.u32 %v2479, 7
    %v2481 = vsub.s32 3, %v2480
    %v2482 = vrot.slane %v2465, %v2481
    %2487 = vmatprep.subr.mxu0 %v2462
    %2488 = vmatpush1.msra.mxu0 %v2461
    %2489 = vmatprep.subr.mxu0 %v2458
    %2490 = vmatpush1.msra.mxu0 %v2457
    %2491 = vmatprep.subr.mxu0 %v2454
    %2492 = vmatpush1.msra.mxu0 %v2453
    %2493 = vmatprep.subr.mxu0 %v2450
    %2494 = vmatpush1.msra.mxu0 %v2449
    %2495 = vmatprep.subr.mxu0 %v2446
    %2496 = vmatpush1.msra.mxu0 %v2445
    %2497 = vmatprep.subr.mxu0 %v2442
    %2498 = vmatpush1.msra.mxu0 %v2441
    %2499 = vmatprep.subr.mxu0 %v2438
    %2500 = vmatpush1.msra.mxu0 %v2437
    %2501 = vmatprep.subr.mxu0 %v2434
    %2502 = vmatpush1.msra.mxu0 %v2433
    %2503 = vmatprep.subr.mxu0 %v2430
    %2504 = vmatpush1.msra.mxu0 %v2429
    %2505 = vmatprep.subr.mxu0 %v2426
    %2506 = vmatpush1.msra.mxu0 %v2425
    %2507 = vmatprep.subr.mxu0 %v2422
    %2508 = vmatpush1.msra.mxu0 %v2421
    %2509 = vmatprep.subr.mxu0 %v2418
    %2510 = vmatpush1.msra.mxu0 %v2417
    %2511 = vmatprep.subr.mxu0 %v2414
    %2512 = vmatpush1.msra.mxu0 %v2413
    %2513 = vmatprep.subr.mxu0 %v2410
    %2514 = vmatpush1.msra.mxu0 %v2409
    %2515 = vmatprep.subr.mxu0 %v2406
    %2516 = vmatpush1.msra.mxu0 %v2405
    %2517 = vmatprep.subr.mxu0 %v2402
    %2518 = vmatpush1.msra.mxu0 %v2401
    %2519 = vmatprep.subr.mxu0 0.0
    %2520 = vmatpush2.msra.mxu0 0.0
    %2521 = vmatprep.subr.mxu0 0.0
    %2522 = vmatpush2.msra.mxu0 0.0
    %2523 = vmatprep.subr.mxu0 0.0
    %2524 = vmatpush2.msra.mxu0 0.0
    %2525 = vmatprep.subr.mxu0 0.0
    %2526 = vmatpush2.msra.mxu0 0.0
    %2527 = vmatprep.subr.mxu0 0.0
    %2528 = vmatpush2.msra.mxu0 0.0
    %2529 = vmatprep.subr.mxu0 0.0
    %2530 = vmatpush2.msra.mxu0 0.0
    %2531 = vmatprep.subr.mxu0 0.0
    %2532 = vmatpush2.msra.mxu0 0.0
    %2533 = vmatprep.subr.mxu0 0.0
    %2534 = vmatpush2.msra.mxu0 0.0
    %2535 = vmatprep.subr.mxu0 0.0
    %2536 = vmatpush2.msra.mxu0 0.0
    %2537 = vmatprep.subr.mxu0 0.0
    %2538 = vmatpush2.msra.mxu0 0.0
    %2539 = vmatprep.subr.mxu0 0.0
    %2540 = vmatpush2.msra.mxu0 0.0
    %2541 = vmatprep.subr.mxu0 0.0
    %2542 = vmatpush2.msra.mxu0 0.0
    %2543 = vmatprep.subr.mxu0 0.0
    %2544 = vmatpush2.msra.mxu0 0.0
    %2545 = vmatprep.subr.mxu0 0.0
    %2546 = vmatpush2.msra.mxu0 0.0
    %2547 = vmatprep.subr.mxu0 0.0
    %2548 = vmatpush2.msra.mxu0 0.0
    %2549 = vmatprep.subr.mxu0 0.0
    %2550 = vmatpush2.msra.mxu0 0.0
    %2551 = vmatprep.mubr.f32.mxu0 0.0
    %2552 = vmatmul.mubr.f32.gmra.mxu0 %v2393
    %v2553 = vpop.f32.mrf.mxu0
    %v2554 = vadd.f32 %v2470, %v2553
    %v2555 = vpop.f32.mrf.mxu0
    %v2556 = vadd.f32 %v2474, %v2555
    %2557 = vmatprep.mubr.f32.mxu0 0.0
    %2558 = vmatmul.mubr.f32.gmra.mxu0 %v2394
    %v2559 = vpop.f32.mrf.mxu0
    %v2560 = vadd.f32 %v2470, %v2559
    %v2561 = vpop.f32.mrf.mxu0
    %v2562 = vadd.f32 %v2474, %v2561
    %2563 = vmatprep.mubr.f32.mxu0 0.0
    %2564 = vmatmul.mubr.f32.gmra.mxu0 %v2395
    %v2565 = vpop.f32.mrf.mxu0
    %v2566 = vadd.f32 %v2470, %v2565
    %v2567 = vpop.f32.mrf.mxu0
    %v2568 = vadd.f32 %v2474, %v2567
    %2569 = vmatprep.mubr.f32.mxu0 0.0
    %2570 = vmatmul.mubr.f32.gmra.mxu0 %v2396
    %v2571 = vpop.f32.mrf.mxu0
    %v2572 = vadd.f32 %v2470, %v2571
    %v2573 = vpop.f32.mrf.mxu0
    %v2574 = vadd.f32 %v2474, %v2573
    %2575 = vmatprep.mubr.f32.mxu0 0.0
    %2576 = vmatmul.mubr.f32.gmra.mxu0 %v2397
    %v2577 = vpop.f32.mrf.mxu0
    %v2578 = vadd.f32 %v2470, %v2577
    %v2579 = vpop.f32.mrf.mxu0
    %v2580 = vadd.f32 %v2474, %v2579
    %2581 = vmatprep.mubr.f32.mxu0 0.0
    %2582 = vmatmul.mubr.f32.gmra.mxu0 %v2398
    %v2583 = vpop.f32.mrf.mxu0
    %v2584 = vadd.f32 %v2470, %v2583
    %v2585 = vpop.f32.mrf.mxu0
    %v2586 = vadd.f32 %v2474, %v2585
    %2587 = vmatprep.mubr.f32.mxu0 0.0
    %2588 = vmatmul.mubr.f32.gmra.mxu0 %v2399
    %v2589 = vpop.f32.mrf.mxu0
    %v2590 = vadd.f32 %v2470, %v2589
    %v2591 = vpop.f32.mrf.mxu0
    %v2592 = vadd.f32 %v2474, %v2591
    %2593 = vmatprep.mubr.f32.mxu0 0.0
    %2594 = vmatmul.mubr.f32.gmra.mxu0 %v2400
    %v2595 = vpop.f32.mrf.mxu0
    %v2596 = vadd.f32 %v2470, %v2595
    %v2597 = vpop.f32.mrf.mxu0
    %v2598 = vadd.f32 %v2474, %v2597
    %2599 = vdwg.mxu0
    %2600 = vmatprep.subr.mxu0 %v2464
    %2601 = vmatpush1.msra.mxu0 %v2463
    %2602 = vmatprep.subr.mxu0 %v2460
    %2603 = vmatpush1.msra.mxu0 %v2459
    %2604 = vmatprep.subr.mxu0 %v2456
    %2605 = vmatpush1.msra.mxu0 %v2455
    %2606 = vmatprep.subr.mxu0 %v2452
    %2607 = vmatpush1.msra.mxu0 %v2451
    %2608 = vmatprep.subr.mxu0 %v2448
    %2609 = vmatpush1.msra.mxu0 %v2447
    %2610 = vmatprep.subr.mxu0 %v2444
    %2611 = vmatpush1.msra.mxu0 %v2443
    %2612 = vmatprep.subr.mxu0 %v2440
    %2613 = vmatpush1.msra.mxu0 %v2439
    %2614 = vmatprep.subr.mxu0 %v2436
    %2615 = vmatpush1.msra.mxu0 %v2435
    %2616 = vmatprep.subr.mxu0 %v2432
    %2617 = vmatpush1.msra.mxu0 %v2431
    %2618 = vmatprep.subr.mxu0 %v2428
    %2619 = vmatpush1.msra.mxu0 %v2427
    %2620 = vmatprep.subr.mxu0 %v2424
    %2621 = vmatpush1.msra.mxu0 %v2423
    %2622 = vmatprep.subr.mxu0 %v2420
    %2623 = vmatpush1.msra.mxu0 %v2419
    %2624 = vmatprep.subr.mxu0 %v2416
    %2625 = vmatpush1.msra.mxu0 %v2415
    %2626 = vmatprep.subr.mxu0 %v2412
    %2627 = vmatpush1.msra.mxu0 %v2411
    %2628 = vmatprep.subr.mxu0 %v2408
    %2629 = vmatpush1.msra.mxu0 %v2407
    %2630 = vmatprep.subr.mxu0 %v2404
    %2631 = vmatpush1.msra.mxu0 %v2403
    %2632 = vmatprep.subr.mxu0 0.0
    %2633 = vmatpush2.msra.mxu0 0.0
    %2634 = vmatprep.subr.mxu0 0.0
    %2635 = vmatpush2.msra.mxu0 0.0
    %2636 = vmatprep.subr.mxu0 0.0
    %2637 = vmatpush2.msra.mxu0 0.0
    %2638 = vmatprep.subr.mxu0 0.0
    %2639 = vmatpush2.msra.mxu0 0.0
    %2640 = vmatprep.subr.mxu0 0.0
    %2641 = vmatpush2.msra.mxu0 0.0
    %2642 = vmatprep.subr.mxu0 0.0
    %2643 = vmatpush2.msra.mxu0 0.0
    %2644 = vmatprep.subr.mxu0 0.0
    %2645 = vmatpush2.msra.mxu0 0.0
    %2646 = vmatprep.subr.mxu0 0.0
    %2647 = vmatpush2.msra.mxu0 0.0
    %2648 = vmatprep.subr.mxu0 0.0
    %2649 = vmatpush2.msra.mxu0 0.0
    %2650 = vmatprep.subr.mxu0 0.0
    %2651 = vmatpush2.msra.mxu0 0.0
    %2652 = vmatprep.subr.mxu0 0.0
    %2653 = vmatpush2.msra.mxu0 0.0
    %2654 = vmatprep.subr.mxu0 0.0
    %2655 = vmatpush2.msra.mxu0 0.0
    %2656 = vmatprep.subr.mxu0 0.0
    %2657 = vmatpush2.msra.mxu0 0.0
    %2658 = vmatprep.subr.mxu0 0.0
    %2659 = vmatpush2.msra.mxu0 0.0
    %2660 = vmatprep.subr.mxu0 0.0
    %2661 = vmatpush2.msra.mxu0 0.0
    %2662 = vmatprep.subr.mxu0 0.0
    %2663 = vmatpush2.msra.mxu0 0.0
    %2664 = vmatprep.mubr.f32.mxu0 0.0
    %2665 = vmatmul.mubr.f32.gmra.mxu0 %v2393
    %v2666 = vpop.f32.mrf.mxu0
    %v2667 = vadd.f32 %v2478, %v2666
    %v2668 = vpop.f32.mrf.mxu0
    %v2669 = vadd.f32 %v2482, %v2668
    %2670 = vmatprep.mubr.f32.mxu0 0.0
    %2671 = vmatmul.mubr.f32.gmra.mxu0 %v2394
    %v2672 = vpop.f32.mrf.mxu0
    %v2673 = vadd.f32 %v2478, %v2672
    %v2674 = vpop.f32.mrf.mxu0
    %v2675 = vadd.f32 %v2482, %v2674
    %2676 = vmatprep.mubr.f32.mxu0 0.0
    %2677 = vmatmul.mubr.f32.gmra.mxu0 %v2395
    %v2678 = vpop.f32.mrf.mxu0
    %v2679 = vadd.f32 %v2478, %v2678
    %v2680 = vpop.f32.mrf.mxu0
    %v2681 = vadd.f32 %v2482, %v2680
    %2682 = vmatprep.mubr.f32.mxu0 0.0
    %2683 = vmatmul.mubr.f32.gmra.mxu0 %v2396
    %v2684 = vpop.f32.mrf.mxu0
    %v2685 = vadd.f32 %v2478, %v2684
    %v2686 = vpop.f32.mrf.mxu0
    %v2687 = vadd.f32 %v2482, %v2686
    %2688 = vmatprep.mubr.f32.mxu0 0.0
    %2689 = vmatmul.mubr.f32.gmra.mxu0 %v2397
    %v2690 = vpop.f32.mrf.mxu0
    %v2691 = vadd.f32 %v2478, %v2690
    %v2692 = vpop.f32.mrf.mxu0
    %v2693 = vadd.f32 %v2482, %v2692
    %2694 = vmatprep.mubr.f32.mxu0 0.0
    %2695 = vmatmul.mubr.f32.gmra.mxu0 %v2398
    %v2696 = vpop.f32.mrf.mxu0
    %v2697 = vadd.f32 %v2478, %v2696
    %v2698 = vpop.f32.mrf.mxu0
    %v2699 = vadd.f32 %v2482, %v2698
    %2700 = vmatprep.mubr.f32.mxu0 0.0
    %2701 = vmatmul.mubr.f32.gmra.mxu0 %v2399
    %v2702 = vpop.f32.mrf.mxu0
    %v2703 = vadd.f32 %v2478, %v2702
    %v2704 = vpop.f32.mrf.mxu0
    %v2705 = vadd.f32 %v2482, %v2704
    %2706 = vmatprep.mubr.f32.mxu0 0.0
    %2707 = vmatmul.mubr.f32.gmra.mxu0 %v2400
    %v2708 = vpop.f32.mrf.mxu0
    %v2709 = vadd.f32 %v2478, %v2708
    %v2710 = vpop.f32.mrf.mxu0
    %v2711 = vadd.f32 %v2482, %v2710
    %2712 = vdwg.mxu0
    %2713 = vst [vmem:[#allocation2] sm:$0xff] %v2554
    %2714 = vst [vmem:[#allocation2 + $0x8] sm:$0xff] %v2556
    %2715 = vst [vmem:[#allocation2 + $0x10] sm:$0xff] %v2667
    %2716 = vst [vmem:[#allocation2 + $0x18] sm:$0xff] %v2669
    %2717 = vst [vmem:[#allocation2 + $0x20] sm:$0xff] %v2560
    %2718 = vst [vmem:[#allocation2 + $0x28] sm:$0xff] %v2562
    %2719 = vst [vmem:[#allocation2 + $0x30] sm:$0xff] %v2673
    %2720 = vst [vmem:[#allocation2 + $0x38] sm:$0xff] %v2675
    %2721 = vst [vmem:[#allocation2 + $0x40] sm:$0xff] %v2566
    %2722 = vst [vmem:[#allocation2 + $0x48] sm:$0xff] %v2568
    %2723 = vst [vmem:[#allocation2 + $0x50] sm:$0xff] %v2679
    %2724 = vst [vmem:[#allocation2 + $0x58] sm:$0xff] %v2681
    %2725 = vst [vmem:[#allocation2 + $0x60] sm:$0xff] %v2572
    %2726 = vst [vmem:[#allocation2 + $0x68] sm:$0xff] %v2574
    %2727 = vst [vmem:[#allocation2 + $0x70] sm:$0xff] %v2685
    %2728 = vst [vmem:[#allocation2 + $0x78] sm:$0xff] %v2687
    %2729 = vst [vmem:[#allocation2 + $0x80] sm:$0xff] %v2578
    %2730 = vst [vmem:[#allocation2 + $0x88] sm:$0xff] %v2580
    %2731 = vst [vmem:[#allocation2 + $0x90] sm:$0xff] %v2691
    %2732 = vst [vmem:[#allocation2 + $0x98] sm:$0xff] %v2693
    %2733 = vst [vmem:[#allocation2 + $0xa0] sm:$0xff] %v2584
    %2734 = vst [vmem:[#allocation2 + $0xa8] sm:$0xff] %v2586
    %2735 = vst [vmem:[#allocation2 + $0xb0] sm:$0xff] %v2697
    %2736 = vst [vmem:[#allocation2 + $0xb8] sm:$0xff] %v2699
    %2737 = vst [vmem:[#allocation2 + $0xc0] sm:$0xff] %v2590
    %2738 = vst [vmem:[#allocation2 + $0xc8] sm:$0xff] %v2592
    %2739 = vst [vmem:[#allocation2 + $0xd0] sm:$0xff] %v2703
    %2740 = vst [vmem:[#allocation2 + $0xd8] sm:$0xff] %v2705
    %2741 = vst [vmem:[#allocation2 + $0xe0] sm:$0xff] %v2596
    %2742 = vst [vmem:[#allocation2 + $0xe8] sm:$0xff] %v2598
    %2743 = vst [vmem:[#allocation2 + $0xf0] sm:$0xff] %v2709
    %2744 = vst [vmem:[#allocation2 + $0xf8] sm:$0xff] %v2711
    %v2745 = vld [vmem:[#allocation2] sm:$0xff]
    %v2746 = vld [vmem:[#allocation2 + $0x8] sm:$0xff]
    %v2747 = vld [vmem:[#allocation2 + $0x10] sm:$0xff]
    %v2748 = vld [vmem:[#allocation2 + $0x18] sm:$0xff]
    %v2749 = vld [vmem:[#allocation12] sm:$0xff]
    %v2750 = vld [vmem:[#allocation12 + $0x8] sm:$0xff]
    %v2751 = vld [vmem:[#allocation12 + $0x10] sm:$0xff]
    %v2752 = vld [vmem:[#allocation12 + $0x18] sm:$0xff]
    %v2753 = vld [vmem:[#allocation12 + $0x20] sm:$0xff]
    %v2754 = vld [vmem:[#allocation12 + $0x28] sm:$0xff]
    %v2755 = vld [vmem:[#allocation12 + $0x30] sm:$0xff]
    %v2756 = vld [vmem:[#allocation12 + $0x38] sm:$0xff]
    %v2757 = vld [vmem:[#allocation12 + $0x40] sm:$0xff]
    %v2758 = vld [vmem:[#allocation12 + $0x48] sm:$0xff]
    %v2759 = vld [vmem:[#allocation12 + $0x50] sm:$0xff]
    %v2760 = vld [vmem:[#allocation12 + $0x58] sm:$0xff]
    %v2761 = vld [vmem:[#allocation12 + $0x60] sm:$0xff]
    %v2762 = vld [vmem:[#allocation12 + $0x68] sm:$0xff]
    %v2763 = vld [vmem:[#allocation12 + $0x70] sm:$0xff]
    %v2764 = vld [vmem:[#allocation12 + $0x78] sm:$0xff]
    %v2765 = vld [vmem:[#allocation12 + $0x80] sm:$0xff]
    %v2766 = vld [vmem:[#allocation12 + $0x88] sm:$0xff]
    %v2767 = vld [vmem:[#allocation12 + $0x90] sm:$0xff]
    %v2768 = vld [vmem:[#allocation12 + $0x98] sm:$0xff]
    %v2769 = vld [vmem:[#allocation12 + $0xa0] sm:$0xff]
    %v2770 = vld [vmem:[#allocation12 + $0xa8] sm:$0xff]
    %v2771 = vld [vmem:[#allocation12 + $0xb0] sm:$0xff]
    %v2772 = vld [vmem:[#allocation12 + $0xb8] sm:$0xff]
    %v2773 = vld [vmem:[#allocation12 + $0xc0] sm:$0xff]
    %v2774 = vld [vmem:[#allocation12 + $0xc8] sm:$0xff]
    %v2775 = vld [vmem:[#allocation12 + $0xd0] sm:$0xff]
    %v2776 = vld [vmem:[#allocation12 + $0xd8] sm:$0xff]
    %v2777 = vld [vmem:[#allocation12 + $0xe0] sm:$0xff]
    %v2778 = vld [vmem:[#allocation12 + $0xe8] sm:$0xff]
    %v2779 = vld [vmem:[#allocation12 + $0xf0] sm:$0xff]
    %v2780 = vld [vmem:[#allocation12 + $0xf8] sm:$0xff]
    %v2781 = vld [vmem:[#allocation12 + $0x100] sm:$0xff]
    %v2782 = vld [vmem:[#allocation12 + $0x108] sm:$0xff]
    %v2783 = vld [vmem:[#allocation12 + $0x110] sm:$0xff]
    %v2784 = vld [vmem:[#allocation12 + $0x118] sm:$0xff]
    %v2785 = vld [vmem:[#allocation12 + $0x120] sm:$0xff]
    %v2786 = vld [vmem:[#allocation12 + $0x128] sm:$0xff]
    %v2787 = vld [vmem:[#allocation12 + $0x130] sm:$0xff]
    %v2788 = vld [vmem:[#allocation12 + $0x138] sm:$0xff]
    %v2789 = vld [vmem:[#allocation12 + $0x140] sm:$0xff]
    %v2790 = vld [vmem:[#allocation12 + $0x148] sm:$0xff]
    %v2791 = vld [vmem:[#allocation12 + $0x150] sm:$0xff]
    %v2792 = vld [vmem:[#allocation12 + $0x158] sm:$0xff]
    %v2793 = vld [vmem:[#allocation12 + $0x160] sm:$0xff]
    %v2794 = vld [vmem:[#allocation12 + $0x168] sm:$0xff]
    %v2795 = vld [vmem:[#allocation12 + $0x170] sm:$0xff]
    %v2796 = vld [vmem:[#allocation12 + $0x178] sm:$0xff]
    %v2797 = vld [vmem:[#allocation12 + $0x180] sm:$0xff]
    %v2798 = vld [vmem:[#allocation12 + $0x188] sm:$0xff]
    %v2799 = vld [vmem:[#allocation12 + $0x190] sm:$0xff]
    %v2800 = vld [vmem:[#allocation12 + $0x198] sm:$0xff]
    %v2801 = vld [vmem:[#allocation12 + $0x1a0] sm:$0xff]
    %v2802 = vld [vmem:[#allocation12 + $0x1a8] sm:$0xff]
    %v2803 = vld [vmem:[#allocation12 + $0x1b0] sm:$0xff]
    %v2804 = vld [vmem:[#allocation12 + $0x1b8] sm:$0xff]
    %v2805 = vld [vmem:[#allocation12 + $0x1c0] sm:$0xff]
    %v2806 = vld [vmem:[#allocation12 + $0x1c8] sm:$0xff]
    %v2807 = vld [vmem:[#allocation12 + $0x1d0] sm:$0xff]
    %v2808 = vld [vmem:[#allocation12 + $0x1d8] sm:$0xff]
    %v2809 = vld [vmem:[#allocation12 + $0x1e0] sm:$0xff]
    %v2810 = vld [vmem:[#allocation12 + $0x1e8] sm:$0xff]
    %v2811 = vld [vmem:[#allocation12 + $0x1f0] sm:$0xff]
    %v2812 = vld [vmem:[#allocation12 + $0x1f8] sm:$0xff]
    %2813 = vmatprep.subr.mxu0 %v2810
    %2814 = vmatpush1.msra.mxu0 %v2809
    %2815 = vmatprep.subr.mxu0 %v2806
    %2816 = vmatpush1.msra.mxu0 %v2805
    %2817 = vmatprep.subr.mxu0 %v2802
    %2818 = vmatpush1.msra.mxu0 %v2801
    %2819 = vmatprep.subr.mxu0 %v2798
    %2820 = vmatpush1.msra.mxu0 %v2797
    %2821 = vmatprep.subr.mxu0 %v2794
    %2822 = vmatpush1.msra.mxu0 %v2793
    %2823 = vmatprep.subr.mxu0 %v2790
    %2824 = vmatpush1.msra.mxu0 %v2789
    %2825 = vmatprep.subr.mxu0 %v2786
    %2826 = vmatpush1.msra.mxu0 %v2785
    %2827 = vmatprep.subr.mxu0 %v2782
    %2828 = vmatpush1.msra.mxu0 %v2781
    %2829 = vmatprep.subr.mxu0 %v2778
    %2830 = vmatpush1.msra.mxu0 %v2777
    %2831 = vmatprep.subr.mxu0 %v2774
    %2832 = vmatpush1.msra.mxu0 %v2773
    %2833 = vmatprep.subr.mxu0 %v2770
    %2834 = vmatpush1.msra.mxu0 %v2769
    %2835 = vmatprep.subr.mxu0 %v2766
    %2836 = vmatpush1.msra.mxu0 %v2765
    %2837 = vmatprep.subr.mxu0 %v2762
    %2838 = vmatpush1.msra.mxu0 %v2761
    %2839 = vmatprep.subr.mxu0 %v2758
    %2840 = vmatpush1.msra.mxu0 %v2757
    %2841 = vmatprep.subr.mxu0 %v2754
    %2842 = vmatpush1.msra.mxu0 %v2753
    %2843 = vmatprep.subr.mxu0 %v2750
    %2844 = vmatpush1.msra.mxu0 %v2749
    %2845 = vmatprep.subr.mxu0 0.0
    %2846 = vmatpush2.msra.mxu0 0.0
    %2847 = vmatprep.subr.mxu0 0.0
    %2848 = vmatpush2.msra.mxu0 0.0
    %2849 = vmatprep.subr.mxu0 0.0
    %2850 = vmatpush2.msra.mxu0 0.0
    %2851 = vmatprep.subr.mxu0 0.0
    %2852 = vmatpush2.msra.mxu0 0.0
    %2853 = vmatprep.subr.mxu0 0.0
    %2854 = vmatpush2.msra.mxu0 0.0
    %2855 = vmatprep.subr.mxu0 0.0
    %2856 = vmatpush2.msra.mxu0 0.0
    %2857 = vmatprep.subr.mxu0 0.0
    %2858 = vmatpush2.msra.mxu0 0.0
    %2859 = vmatprep.subr.mxu0 0.0
    %2860 = vmatpush2.msra.mxu0 0.0
    %2861 = vmatprep.subr.mxu0 0.0
    %2862 = vmatpush2.msra.mxu0 0.0
    %2863 = vmatprep.subr.mxu0 0.0
    %2864 = vmatpush2.msra.mxu0 0.0
    %2865 = vmatprep.subr.mxu0 0.0
    %2866 = vmatpush2.msra.mxu0 0.0
    %2867 = vmatprep.subr.mxu0 0.0
    %2868 = vmatpush2.msra.mxu0 0.0
    %2869 = vmatprep.subr.mxu0 0.0
    %2870 = vmatpush2.msra.mxu0 0.0
    %2871 = vmatprep.subr.mxu0 0.0
    %2872 = vmatpush2.msra.mxu0 0.0
    %2873 = vmatprep.subr.mxu0 0.0
    %2874 = vmatpush2.msra.mxu0 0.0
    %2875 = vmatprep.subr.mxu0 0.0
    %2876 = vmatpush2.msra.mxu0 0.0
    %2877 = vmatprep.mubr.f32.mxu0 0.0
    %2878 = vmatmul.mubr.f32.gmra.mxu0 0.0
    %v2879 = vpop.f32.mrf.mxu0
    %v2880 = vadd.f32 0.0, %v2879
    %v2881 = vpop.f32.mrf.mxu0
    %v2882 = vadd.f32 0.0, %v2881
    %2883 = vdwg.mxu0
    %2884 = vmatprep.subr.mxu0 %v2812
    %2885 = vmatpush1.msra.mxu0 %v2811
    %2886 = vmatprep.subr.mxu0 %v2808
    %2887 = vmatpush1.msra.mxu0 %v2807
    %2888 = vmatprep.subr.mxu0 %v2804
    %2889 = vmatpush1.msra.mxu0 %v2803
    %2890 = vmatprep.subr.mxu0 %v2800
    %2891 = vmatpush1.msra.mxu0 %v2799
    %2892 = vmatprep.subr.mxu0 %v2796
    %2893 = vmatpush1.msra.mxu0 %v2795
    %2894 = vmatprep.subr.mxu0 %v2792
    %2895 = vmatpush1.msra.mxu0 %v2791
    %2896 = vmatprep.subr.mxu0 %v2788
    %2897 = vmatpush1.msra.mxu0 %v2787
    %2898 = vmatprep.subr.mxu0 %v2784
    %2899 = vmatpush1.msra.mxu0 %v2783
    %2900 = vmatprep.subr.mxu0 %v2780
    %2901 = vmatpush1.msra.mxu0 %v2779
    %2902 = vmatprep.subr.mxu0 %v2776
    %2903 = vmatpush1.msra.mxu0 %v2775
    %2904 = vmatprep.subr.mxu0 %v2772
    %2905 = vmatpush1.msra.mxu0 %v2771
    %2906 = vmatprep.subr.mxu0 %v2768
    %2907 = vmatpush1.msra.mxu0 %v2767
    %2908 = vmatprep.subr.mxu0 %v2764
    %2909 = vmatpush1.msra.mxu0 %v2763
    %2910 = vmatprep.subr.mxu0 %v2760
    %2911 = vmatpush1.msra.mxu0 %v2759
    %2912 = vmatprep.subr.mxu0 %v2756
    %2913 = vmatpush1.msra.mxu0 %v2755
    %2914 = vmatprep.subr.mxu0 %v2752
    %2915 = vmatpush1.msra.mxu0 %v2751
    %2916 = vmatprep.subr.mxu0 0.0
    %2917 = vmatpush2.msra.mxu0 0.0
    %2918 = vmatprep.subr.mxu0 0.0
    %2919 = vmatpush2.msra.mxu0 0.0
    %2920 = vmatprep.subr.mxu0 0.0
    %2921 = vmatpush2.msra.mxu0 0.0
    %2922 = vmatprep.subr.mxu0 0.0
    %2923 = vmatpush2.msra.mxu0 0.0
    %2924 = vmatprep.subr.mxu0 0.0
    %2925 = vmatpush2.msra.mxu0 0.0
    %2926 = vmatprep.subr.mxu0 0.0
    %2927 = vmatpush2.msra.mxu0 0.0
    %2928 = vmatprep.subr.mxu0 0.0
    %2929 = vmatpush2.msra.mxu0 0.0
    %2930 = vmatprep.subr.mxu0 0.0
    %2931 = vmatpush2.msra.mxu0 0.0
    %2932 = vmatprep.subr.mxu0 0.0
    %2933 = vmatpush2.msra.mxu0 0.0
    %2934 = vmatprep.subr.mxu0 0.0
    %2935 = vmatpush2.msra.mxu0 0.0
    %2936 = vmatprep.subr.mxu0 0.0
    %2937 = vmatpush2.msra.mxu0 0.0
    %2938 = vmatprep.subr.mxu0 0.0
    %2939 = vmatpush2.msra.mxu0 0.0
    %2940 = vmatprep.subr.mxu0 0.0
    %2941 = vmatpush2.msra.mxu0 0.0
    %2942 = vmatprep.subr.mxu0 0.0
    %2943 = vmatpush2.msra.mxu0 0.0
    %2944 = vmatprep.subr.mxu0 0.0
    %2945 = vmatpush2.msra.mxu0 0.0
    %2946 = vmatprep.subr.mxu0 0.0
    %2947 = vmatpush2.msra.mxu0 0.0
    %2948 = vmatprep.mubr.f32.mxu0 0.0
    %2949 = vmatmul.mubr.f32.gmra.mxu0 0.0
    %v2950 = vpop.f32.mrf.mxu0
    %v2951 = vadd.f32 0.0, %v2950
    %v2952 = vpop.f32.mrf.mxu0
    %v2953 = vadd.f32 0.0, %v2952
    %2954 = vdwg.mxu0
    %v2955 = vadd.f32 %v2745, %v2880
    %v2956 = vadd.f32 %v2746, %v2882
    %v2957 = vadd.f32 %v2747, %v2951
    %v2958 = vadd.f32 %v2748, %v2953
    %v2959 = vxor.u32 %v2955, 2147483648
    %v2960 = vmul.f32 %v2959, 1.442695
    %v2961 = vpow.pop %v2960
    %v2962 = vadd.f32 %v2961, 1.0
    %v2963 = vrcp.pop %v2962
    %v2964 = vmul.f32 1.0, %v2963
    %v2965 = vxor.u32 %v2956, 2147483648
    %v2966 = vmul.f32 %v2965, 1.442695
    %v2967 = vpow.pop %v2966
    %v2968 = vadd.f32 %v2967, 1.0
    %v2969 = vrcp.pop %v2968
    %v2970 = vmul.f32 1.0, %v2969
    %v2971 = vtanh.pop %v2957
    %v2972 = vxor.u32 %v2958, 2147483648
    %v2973 = vmul.f32 %v2972, 1.442695
    %v2974 = vpow.pop %v2973
    %v2975 = vadd.f32 %v2974, 1.0
    %v2976 = vrcp.pop %v2975
    %v2977 = vmul.f32 1.0, %v2976
    %v2978 = vmul.f32 %v2970, 0.0
    %v2979 = vmul.f32 %v2964, %v2971
    %v2980 = vadd.f32 %v2978, %v2979
    %v2981 = vtanh.pop %v2980
    %v2982 = vmul.f32 %v2977, %v2981
    %v2983 = vld [vmem:[%s706] sm:$0xff]
    %v2984 = vld [vmem:[%s706 + $0x8] sm:$0xff]
    %v2985 = vld [vmem:[%s706 + $0x10] sm:$0xff]
    %v2986 = vld [vmem:[%s706 + $0x18] sm:$0xff]
    %2987 = vmatprep.subr.mxu0 %v2810
    %2988 = vmatpush1.msra.mxu0 %v2809
    %2989 = vmatprep.subr.mxu0 %v2806
    %2990 = vmatpush1.msra.mxu0 %v2805
    %2991 = vmatprep.subr.mxu0 %v2802
    %2992 = vmatpush1.msra.mxu0 %v2801
    %2993 = vmatprep.subr.mxu0 %v2798
    %2994 = vmatpush1.msra.mxu0 %v2797
    %2995 = vmatprep.subr.mxu0 %v2794
    %2996 = vmatpush1.msra.mxu0 %v2793
    %2997 = vmatprep.subr.mxu0 %v2790
    %2998 = vmatpush1.msra.mxu0 %v2789
    %2999 = vmatprep.subr.mxu0 %v2786
    %3000 = vmatpush1.msra.mxu0 %v2785
    %3001 = vmatprep.subr.mxu0 %v2782
    %3002 = vmatpush1.msra.mxu0 %v2781
    %3003 = vmatprep.subr.mxu0 %v2778
    %3004 = vmatpush1.msra.mxu0 %v2777
    %3005 = vmatprep.subr.mxu0 %v2774
    %3006 = vmatpush1.msra.mxu0 %v2773
    %3007 = vmatprep.subr.mxu0 %v2770
    %3008 = vmatpush1.msra.mxu0 %v2769
    %3009 = vmatprep.subr.mxu0 %v2766
    %3010 = vmatpush1.msra.mxu0 %v2765
    %3011 = vmatprep.subr.mxu0 %v2762
    %3012 = vmatpush1.msra.mxu0 %v2761
    %3013 = vmatprep.subr.mxu0 %v2758
    %3014 = vmatpush1.msra.mxu0 %v2757
    %3015 = vmatprep.subr.mxu0 %v2754
    %3016 = vmatpush1.msra.mxu0 %v2753
    %3017 = vmatprep.subr.mxu0 %v2750
    %3018 = vmatpush1.msra.mxu0 %v2749
    %3019 = vmatprep.subr.mxu0 0.0
    %3020 = vmatpush2.msra.mxu0 0.0
    %3021 = vmatprep.subr.mxu0 0.0
    %3022 = vmatpush2.msra.mxu0 0.0
    %3023 = vmatprep.subr.mxu0 0.0
    %3024 = vmatpush2.msra.mxu0 0.0
    %3025 = vmatprep.subr.mxu0 0.0
    %3026 = vmatpush2.msra.mxu0 0.0
    %3027 = vmatprep.subr.mxu0 0.0
    %3028 = vmatpush2.msra.mxu0 0.0
    %3029 = vmatprep.subr.mxu0 0.0
    %3030 = vmatpush2.msra.mxu0 0.0
    %3031 = vmatprep.subr.mxu0 0.0
    %3032 = vmatpush2.msra.mxu0 0.0
    %3033 = vmatprep.subr.mxu0 0.0
    %3034 = vmatpush2.msra.mxu0 0.0
    %3035 = vmatprep.subr.mxu0 0.0
    %3036 = vmatpush2.msra.mxu0 0.0
    %3037 = vmatprep.subr.mxu0 0.0
    %3038 = vmatpush2.msra.mxu0 0.0
    %3039 = vmatprep.subr.mxu0 0.0
    %3040 = vmatpush2.msra.mxu0 0.0
    %3041 = vmatprep.subr.mxu0 0.0
    %3042 = vmatpush2.msra.mxu0 0.0
    %3043 = vmatprep.subr.mxu0 0.0
    %3044 = vmatpush2.msra.mxu0 0.0
    %3045 = vmatprep.subr.mxu0 0.0
    %3046 = vmatpush2.msra.mxu0 0.0
    %3047 = vmatprep.subr.mxu0 0.0
    %3048 = vmatpush2.msra.mxu0 0.0
    %3049 = vmatprep.subr.mxu0 0.0
    %3050 = vmatpush2.msra.mxu0 0.0
    %3051 = vmatprep.mubr.f32.mxu0 0.0
    %3052 = vmatmul.mubr.f32.gmra.mxu0 %v2982
    %v3053 = vpop.f32.mrf.mxu0
    %v3054 = vadd.f32 0.0, %v3053
    %v3055 = vpop.f32.mrf.mxu0
    %v3056 = vadd.f32 0.0, %v3055
    %3057 = vdwg.mxu0
    %3058 = vmatprep.subr.mxu0 %v2812
    %3059 = vmatpush1.msra.mxu0 %v2811
    %3060 = vmatprep.subr.mxu0 %v2808
    %3061 = vmatpush1.msra.mxu0 %v2807
    %3062 = vmatprep.subr.mxu0 %v2804
    %3063 = vmatpush1.msra.mxu0 %v2803
    %3064 = vmatprep.subr.mxu0 %v2800
    %3065 = vmatpush1.msra.mxu0 %v2799
    %3066 = vmatprep.subr.mxu0 %v2796
    %3067 = vmatpush1.msra.mxu0 %v2795
    %3068 = vmatprep.subr.mxu0 %v2792
    %3069 = vmatpush1.msra.mxu0 %v2791
    %3070 = vmatprep.subr.mxu0 %v2788
    %3071 = vmatpush1.msra.mxu0 %v2787
    %3072 = vmatprep.subr.mxu0 %v2784
    %3073 = vmatpush1.msra.mxu0 %v2783
    %3074 = vmatprep.subr.mxu0 %v2780
    %3075 = vmatpush1.msra.mxu0 %v2779
    %3076 = vmatprep.subr.mxu0 %v2776
    %3077 = vmatpush1.msra.mxu0 %v2775
    %3078 = vmatprep.subr.mxu0 %v2772
    %3079 = vmatpush1.msra.mxu0 %v2771
    %3080 = vmatprep.subr.mxu0 %v2768
    %3081 = vmatpush1.msra.mxu0 %v2767
    %3082 = vmatprep.subr.mxu0 %v2764
    %3083 = vmatpush1.msra.mxu0 %v2763
    %3084 = vmatprep.subr.mxu0 %v2760
    %3085 = vmatpush1.msra.mxu0 %v2759
    %3086 = vmatprep.subr.mxu0 %v2756
    %3087 = vmatpush1.msra.mxu0 %v2755
    %3088 = vmatprep.subr.mxu0 %v2752
    %3089 = vmatpush1.msra.mxu0 %v2751
    %3090 = vmatprep.subr.mxu0 0.0
    %3091 = vmatpush2.msra.mxu0 0.0
    %3092 = vmatprep.subr.mxu0 0.0
    %3093 = vmatpush2.msra.mxu0 0.0
    %3094 = vmatprep.subr.mxu0 0.0
    %3095 = vmatpush2.msra.mxu0 0.0
    %3096 = vmatprep.subr.mxu0 0.0
    %3097 = vmatpush2.msra.mxu0 0.0
    %3098 = vmatprep.subr.mxu0 0.0
    %3099 = vmatpush2.msra.mxu0 0.0
    %3100 = vmatprep.subr.mxu0 0.0
    %3101 = vmatpush2.msra.mxu0 0.0
    %3102 = vmatprep.subr.mxu0 0.0
    %3103 = vmatpush2.msra.mxu0 0.0
    %3104 = vmatprep.subr.mxu0 0.0
    %3105 = vmatpush2.msra.mxu0 0.0
    %3106 = vmatprep.subr.mxu0 0.0
    %3107 = vmatpush2.msra.mxu0 0.0
    %3108 = vmatprep.subr.mxu0 0.0
    %3109 = vmatpush2.msra.mxu0 0.0
    %3110 = vmatprep.subr.mxu0 0.0
    %3111 = vmatpush2.msra.mxu0 0.0
    %3112 = vmatprep.subr.mxu0 0.0
    %3113 = vmatpush2.msra.mxu0 0.0
    %3114 = vmatprep.subr.mxu0 0.0
    %3115 = vmatpush2.msra.mxu0 0.0
    %3116 = vmatprep.subr.mxu0 0.0
    %3117 = vmatpush2.msra.mxu0 0.0
    %3118 = vmatprep.subr.mxu0 0.0
    %3119 = vmatpush2.msra.mxu0 0.0
    %3120 = vmatprep.subr.mxu0 0.0
    %3121 = vmatpush2.msra.mxu0 0.0
    %3122 = vmatprep.mubr.f32.mxu0 0.0
    %3123 = vmatmul.mubr.f32.gmra.mxu0 %v2982
    %v3124 = vpop.f32.mrf.mxu0
    %v3125 = vadd.f32 0.0, %v3124
    %v3126 = vpop.f32.mrf.mxu0
    %v3127 = vadd.f32 0.0, %v3126
    %3128 = vdwg.mxu0
    %v3129 = vadd.f32 %v2983, %v3054
    %v3130 = vadd.f32 %v2984, %v3056
    %v3131 = vadd.f32 %v2985, %v3125
    %v3132 = vadd.f32 %v2986, %v3127
    %v3133 = vxor.u32 %v3129, 2147483648
    %v3134 = vmul.f32 %v3133, 1.442695
    %v3135 = vpow.pop %v3134
    %v3136 = vadd.f32 %v3135, 1.0
    %v3137 = vrcp.pop %v3136
    %v3138 = vmul.f32 1.0, %v3137
    %v3139 = vxor.u32 %v3130, 2147483648
    %v3140 = vmul.f32 %v3139, 1.442695
    %v3141 = vpow.pop %v3140
    %v3142 = vadd.f32 %v3141, 1.0
    %v3143 = vrcp.pop %v3142
    %v3144 = vmul.f32 1.0, %v3143
    %v3145 = vtanh.pop %v3131
    %v3146 = vxor.u32 %v3132, 2147483648
    %v3147 = vmul.f32 %v3146, 1.442695
    %v3148 = vpow.pop %v3147
    %v3149 = vadd.f32 %v3148, 1.0
    %v3150 = vrcp.pop %v3149
    %v3151 = vmul.f32 1.0, %v3150
    %v3152 = vmul.f32 %v3144, %v2980
    %v3153 = vmul.f32 %v3138, %v3145
    %v3154 = vadd.f32 %v3152, %v3153
    %v3155 = vtanh.pop %v3154
    %v3156 = vmul.f32 %v3151, %v3155
    %v3157 = vld [vmem:[%s947] sm:$0xff]
    %v3158 = vld [vmem:[%s947 + $0x8] sm:$0xff]
    %v3159 = vld [vmem:[%s947 + $0x10] sm:$0xff]
    %v3160 = vld [vmem:[%s947 + $0x18] sm:$0xff]
    %3161 = vmatprep.subr.mxu0 %v2810
    %3162 = vmatpush1.msra.mxu0 %v2809
    %3163 = vmatprep.subr.mxu0 %v2806
    %3164 = vmatpush1.msra.mxu0 %v2805
    %3165 = vmatprep.subr.mxu0 %v2802
    %3166 = vmatpush1.msra.mxu0 %v2801
    %3167 = vmatprep.subr.mxu0 %v2798
    %3168 = vmatpush1.msra.mxu0 %v2797
    %3169 = vmatprep.subr.mxu0 %v2794
    %3170 = vmatpush1.msra.mxu0 %v2793
    %3171 = vmatprep.subr.mxu0 %v2790
    %3172 = vmatpush1.msra.mxu0 %v2789
    %3173 = vmatprep.subr.mxu0 %v2786
    %3174 = vmatpush1.msra.mxu0 %v2785
    %3175 = vmatprep.subr.mxu0 %v2782
    %3176 = vmatpush1.msra.mxu0 %v2781
    %3177 = vmatprep.subr.mxu0 %v2778
    %3178 = vmatpush1.msra.mxu0 %v2777
    %3179 = vmatprep.subr.mxu0 %v2774
    %3180 = vmatpush1.msra.mxu0 %v2773
    %3181 = vmatprep.subr.mxu0 %v2770
    %3182 = vmatpush1.msra.mxu0 %v2769
    %3183 = vmatprep.subr.mxu0 %v2766
    %3184 = vmatpush1.msra.mxu0 %v2765
    %3185 = vmatprep.subr.mxu0 %v2762
    %3186 = vmatpush1.msra.mxu0 %v2761
    %3187 = vmatprep.subr.mxu0 %v2758
    %3188 = vmatpush1.msra.mxu0 %v2757
    %3189 = vmatprep.subr.mxu0 %v2754
    %3190 = vmatpush1.msra.mxu0 %v2753
    %3191 = vmatprep.subr.mxu0 %v2750
    %3192 = vmatpush1.msra.mxu0 %v2749
    %3193 = vmatprep.subr.mxu0 0.0
    %3194 = vmatpush2.msra.mxu0 0.0
    %3195 = vmatprep.subr.mxu0 0.0
    %3196 = vmatpush2.msra.mxu0 0.0
    %3197 = vmatprep.subr.mxu0 0.0
    %3198 = vmatpush2.msra.mxu0 0.0
    %3199 = vmatprep.subr.mxu0 0.0
    %3200 = vmatpush2.msra.mxu0 0.0
    %3201 = vmatprep.subr.mxu0 0.0
    %3202 = vmatpush2.msra.mxu0 0.0
    %3203 = vmatprep.subr.mxu0 0.0
    %3204 = vmatpush2.msra.mxu0 0.0
    %3205 = vmatprep.subr.mxu0 0.0
    %3206 = vmatpush2.msra.mxu0 0.0
    %3207 = vmatprep.subr.mxu0 0.0
    %3208 = vmatpush2.msra.mxu0 0.0
    %3209 = vmatprep.subr.mxu0 0.0
    %3210 = vmatpush2.msra.mxu0 0.0
    %3211 = vmatprep.subr.mxu0 0.0
    %3212 = vmatpush2.msra.mxu0 0.0
    %3213 = vmatprep.subr.mxu0 0.0
    %3214 = vmatpush2.msra.mxu0 0.0
    %3215 = vmatprep.subr.mxu0 0.0
    %3216 = vmatpush2.msra.mxu0 0.0
    %3217 = vmatprep.subr.mxu0 0.0
    %3218 = vmatpush2.msra.mxu0 0.0
    %3219 = vmatprep.subr.mxu0 0.0
    %3220 = vmatpush2.msra.mxu0 0.0
    %3221 = vmatprep.subr.mxu0 0.0
    %3222 = vmatpush2.msra.mxu0 0.0
    %3223 = vmatprep.subr.mxu0 0.0
    %3224 = vmatpush2.msra.mxu0 0.0
    %3225 = vmatprep.mubr.f32.mxu0 0.0
    %3226 = vmatmul.mubr.f32.gmra.mxu0 %v3156
    %v3227 = vpop.f32.mrf.mxu0
    %v3228 = vadd.f32 0.0, %v3227
    %v3229 = vpop.f32.mrf.mxu0
    %v3230 = vadd.f32 0.0, %v3229
    %3231 = vdwg.mxu0
    %3232 = vmatprep.subr.mxu0 %v2812
    %3233 = vmatpush1.msra.mxu0 %v2811
    %3234 = vmatprep.subr.mxu0 %v2808
    %3235 = vmatpush1.msra.mxu0 %v2807
    %3236 = vmatprep.subr.mxu0 %v2804
    %3237 = vmatpush1.msra.mxu0 %v2803
    %3238 = vmatprep.subr.mxu0 %v2800
    %3239 = vmatpush1.msra.mxu0 %v2799
    %3240 = vmatprep.subr.mxu0 %v2796
    %3241 = vmatpush1.msra.mxu0 %v2795
    %3242 = vmatprep.subr.mxu0 %v2792
    %3243 = vmatpush1.msra.mxu0 %v2791
    %3244 = vmatprep.subr.mxu0 %v2788
    %3245 = vmatpush1.msra.mxu0 %v2787
    %3246 = vmatprep.subr.mxu0 %v2784
    %3247 = vmatpush1.msra.mxu0 %v2783
    %3248 = vmatprep.subr.mxu0 %v2780
    %3249 = vmatpush1.msra.mxu0 %v2779
    %3250 = vmatprep.subr.mxu0 %v2776
    %3251 = vmatpush1.msra.mxu0 %v2775
    %3252 = vmatprep.subr.mxu0 %v2772
    %3253 = vmatpush1.msra.mxu0 %v2771
    %3254 = vmatprep.subr.mxu0 %v2768
    %3255 = vmatpush1.msra.mxu0 %v2767
    %3256 = vmatprep.subr.mxu0 %v2764
    %3257 = vmatpush1.msra.mxu0 %v2763
    %3258 = vmatprep.subr.mxu0 %v2760
    %3259 = vmatpush1.msra.mxu0 %v2759
    %3260 = vmatprep.subr.mxu0 %v2756
    %3261 = vmatpush1.msra.mxu0 %v2755
    %3262 = vmatprep.subr.mxu0 %v2752
    %3263 = vmatpush1.msra.mxu0 %v2751
    %3264 = vmatprep.subr.mxu0 0.0
    %3265 = vmatpush2.msra.mxu0 0.0
    %3266 = vmatprep.subr.mxu0 0.0
    %3267 = vmatpush2.msra.mxu0 0.0
    %3268 = vmatprep.subr.mxu0 0.0
    %3269 = vmatpush2.msra.mxu0 0.0
    %3270 = vmatprep.subr.mxu0 0.0
    %3271 = vmatpush2.msra.mxu0 0.0
    %3272 = vmatprep.subr.mxu0 0.0
    %3273 = vmatpush2.msra.mxu0 0.0
    %3274 = vmatprep.subr.mxu0 0.0
    %3275 = vmatpush2.msra.mxu0 0.0
    %3276 = vmatprep.subr.mxu0 0.0
    %3277 = vmatpush2.msra.mxu0 0.0
    %3278 = vmatprep.subr.mxu0 0.0
    %3279 = vmatpush2.msra.mxu0 0.0
    %3280 = vmatprep.subr.mxu0 0.0
    %3281 = vmatpush2.msra.mxu0 0.0
    %3282 = vmatprep.subr.mxu0 0.0
    %3283 = vmatpush2.msra.mxu0 0.0
    %3284 = vmatprep.subr.mxu0 0.0
    %3285 = vmatpush2.msra.mxu0 0.0
    %3286 = vmatprep.subr.mxu0 0.0
    %3287 = vmatpush2.msra.mxu0 0.0
    %3288 = vmatprep.subr.mxu0 0.0
    %3289 = vmatpush2.msra.mxu0 0.0
    %3290 = vmatprep.subr.mxu0 0.0
    %3291 = vmatpush2.msra.mxu0 0.0
    %3292 = vmatprep.subr.mxu0 0.0
    %3293 = vmatpush2.msra.mxu0 0.0
    %3294 = vmatprep.subr.mxu0 0.0
    %3295 = vmatpush2.msra.mxu0 0.0
    %3296 = vmatprep.mubr.f32.mxu0 0.0
    %3297 = vmatmul.mubr.f32.gmra.mxu0 %v3156
    %v3298 = vpop.f32.mrf.mxu0
    %v3299 = vadd.f32 0.0, %v3298
    %v3300 = vpop.f32.mrf.mxu0
    %v3301 = vadd.f32 0.0, %v3300
    %3302 = vdwg.mxu0
    %v3303 = vadd.f32 %v3157, %v3228
    %v3304 = vadd.f32 %v3158, %v3230
    %v3305 = vadd.f32 %v3159, %v3299
    %v3306 = vadd.f32 %v3160, %v3301
    %v3307 = vxor.u32 %v3303, 2147483648
    %v3308 = vmul.f32 %v3307, 1.442695
    %v3309 = vpow.pop %v3308
    %v3310 = vadd.f32 %v3309, 1.0
    %v3311 = vrcp.pop %v3310
    %v3312 = vmul.f32 1.0, %v3311
    %v3313 = vxor.u32 %v3304, 2147483648
    %v3314 = vmul.f32 %v3313, 1.442695
    %v3315 = vpow.pop %v3314
    %v3316 = vadd.f32 %v3315, 1.0
    %v3317 = vrcp.pop %v3316
    %v3318 = vmul.f32 1.0, %v3317
    %v3319 = vtanh.pop %v3305
    %v3320 = vxor.u32 %v3306, 2147483648
    %v3321 = vmul.f32 %v3320, 1.442695
    %v3322 = vpow.pop %v3321
    %v3323 = vadd.f32 %v3322, 1.0
    %v3324 = vrcp.pop %v3323
    %v3325 = vmul.f32 1.0, %v3324
    %v3326 = vmul.f32 %v3318, %v3154
    %v3327 = vmul.f32 %v3312, %v3319
    %v3328 = vadd.f32 %v3326, %v3327
    %v3329 = vtanh.pop %v3328
    %v3330 = vmul.f32 %v3325, %v3329
    %v3331 = vld [vmem:[%s1188] sm:$0xff]
    %v3332 = vld [vmem:[%s1188 + $0x8] sm:$0xff]
    %v3333 = vld [vmem:[%s1188 + $0x10] sm:$0xff]
    %v3334 = vld [vmem:[%s1188 + $0x18] sm:$0xff]
    %3335 = vmatprep.subr.mxu0 %v2810
    %3336 = vmatpush1.msra.mxu0 %v2809
    %3337 = vmatprep.subr.mxu0 %v2806
    %3338 = vmatpush1.msra.mxu0 %v2805
    %3339 = vmatprep.subr.mxu0 %v2802
    %3340 = vmatpush1.msra.mxu0 %v2801
    %3341 = vmatprep.subr.mxu0 %v2798
    %3342 = vmatpush1.msra.mxu0 %v2797
    %3343 = vmatprep.subr.mxu0 %v2794
    %3344 = vmatpush1.msra.mxu0 %v2793
    %3345 = vmatprep.subr.mxu0 %v2790
    %3346 = vmatpush1.msra.mxu0 %v2789
    %3347 = vmatprep.subr.mxu0 %v2786
    %3348 = vmatpush1.msra.mxu0 %v2785
    %3349 = vmatprep.subr.mxu0 %v2782
    %3350 = vmatpush1.msra.mxu0 %v2781
    %3351 = vmatprep.subr.mxu0 %v2778
    %3352 = vmatpush1.msra.mxu0 %v2777
    %3353 = vmatprep.subr.mxu0 %v2774
    %3354 = vmatpush1.msra.mxu0 %v2773
    %3355 = vmatprep.subr.mxu0 %v2770
    %3356 = vmatpush1.msra.mxu0 %v2769
    %3357 = vmatprep.subr.mxu0 %v2766
    %3358 = vmatpush1.msra.mxu0 %v2765
    %3359 = vmatprep.subr.mxu0 %v2762
    %3360 = vmatpush1.msra.mxu0 %v2761
    %3361 = vmatprep.subr.mxu0 %v2758
    %3362 = vmatpush1.msra.mxu0 %v2757
    %3363 = vmatprep.subr.mxu0 %v2754
    %3364 = vmatpush1.msra.mxu0 %v2753
    %3365 = vmatprep.subr.mxu0 %v2750
    %3366 = vmatpush1.msra.mxu0 %v2749
    %3367 = vmatprep.subr.mxu0 0.0
    %3368 = vmatpush2.msra.mxu0 0.0
    %3369 = vmatprep.subr.mxu0 0.0
    %3370 = vmatpush2.msra.mxu0 0.0
    %3371 = vmatprep.subr.mxu0 0.0
    %3372 = vmatpush2.msra.mxu0 0.0
    %3373 = vmatprep.subr.mxu0 0.0
    %3374 = vmatpush2.msra.mxu0 0.0
    %3375 = vmatprep.subr.mxu0 0.0
    %3376 = vmatpush2.msra.mxu0 0.0
    %3377 = vmatprep.subr.mxu0 0.0
    %3378 = vmatpush2.msra.mxu0 0.0
    %3379 = vmatprep.subr.mxu0 0.0
    %3380 = vmatpush2.msra.mxu0 0.0
    %3381 = vmatprep.subr.mxu0 0.0
    %3382 = vmatpush2.msra.mxu0 0.0
    %3383 = vmatprep.subr.mxu0 0.0
    %3384 = vmatpush2.msra.mxu0 0.0
    %3385 = vmatprep.subr.mxu0 0.0
    %3386 = vmatpush2.msra.mxu0 0.0
    %3387 = vmatprep.subr.mxu0 0.0
    %3388 = vmatpush2.msra.mxu0 0.0
    %3389 = vmatprep.subr.mxu0 0.0
    %3390 = vmatpush2.msra.mxu0 0.0
    %3391 = vmatprep.subr.mxu0 0.0
    %3392 = vmatpush2.msra.mxu0 0.0
    %3393 = vmatprep.subr.mxu0 0.0
    %3394 = vmatpush2.msra.mxu0 0.0
    %3395 = vmatprep.subr.mxu0 0.0
    %3396 = vmatpush2.msra.mxu0 0.0
    %3397 = vmatprep.subr.mxu0 0.0
    %3398 = vmatpush2.msra.mxu0 0.0
    %3399 = vmatprep.mubr.f32.mxu0 0.0
    %3400 = vmatmul.mubr.f32.gmra.mxu0 %v3330
    %v3401 = vpop.f32.mrf.mxu0
    %v3402 = vadd.f32 0.0, %v3401
    %v3403 = vpop.f32.mrf.mxu0
    %v3404 = vadd.f32 0.0, %v3403
    %3405 = vdwg.mxu0
    %3406 = vmatprep.subr.mxu0 %v2812
    %3407 = vmatpush1.msra.mxu0 %v2811
    %3408 = vmatprep.subr.mxu0 %v2808
    %3409 = vmatpush1.msra.mxu0 %v2807
    %3410 = vmatprep.subr.mxu0 %v2804
    %3411 = vmatpush1.msra.mxu0 %v2803
    %3412 = vmatprep.subr.mxu0 %v2800
    %3413 = vmatpush1.msra.mxu0 %v2799
    %3414 = vmatprep.subr.mxu0 %v2796
    %3415 = vmatpush1.msra.mxu0 %v2795
    %3416 = vmatprep.subr.mxu0 %v2792
    %3417 = vmatpush1.msra.mxu0 %v2791
    %3418 = vmatprep.subr.mxu0 %v2788
    %3419 = vmatpush1.msra.mxu0 %v2787
    %3420 = vmatprep.subr.mxu0 %v2784
    %3421 = vmatpush1.msra.mxu0 %v2783
    %3422 = vmatprep.subr.mxu0 %v2780
    %3423 = vmatpush1.msra.mxu0 %v2779
    %3424 = vmatprep.subr.mxu0 %v2776
    %3425 = vmatpush1.msra.mxu0 %v2775
    %3426 = vmatprep.subr.mxu0 %v2772
    %3427 = vmatpush1.msra.mxu0 %v2771
    %3428 = vmatprep.subr.mxu0 %v2768
    %3429 = vmatpush1.msra.mxu0 %v2767
    %3430 = vmatprep.subr.mxu0 %v2764
    %3431 = vmatpush1.msra.mxu0 %v2763
    %3432 = vmatprep.subr.mxu0 %v2760
    %3433 = vmatpush1.msra.mxu0 %v2759
    %3434 = vmatprep.subr.mxu0 %v2756
    %3435 = vmatpush1.msra.mxu0 %v2755
    %3436 = vmatprep.subr.mxu0 %v2752
    %3437 = vmatpush1.msra.mxu0 %v2751
    %3438 = vmatprep.subr.mxu0 0.0
    %3439 = vmatpush2.msra.mxu0 0.0
    %3440 = vmatprep.subr.mxu0 0.0
    %3441 = vmatpush2.msra.mxu0 0.0
    %3442 = vmatprep.subr.mxu0 0.0
    %3443 = vmatpush2.msra.mxu0 0.0
    %3444 = vmatprep.subr.mxu0 0.0
    %3445 = vmatpush2.msra.mxu0 0.0
    %3446 = vmatprep.subr.mxu0 0.0
    %3447 = vmatpush2.msra.mxu0 0.0
    %3448 = vmatprep.subr.mxu0 0.0
    %3449 = vmatpush2.msra.mxu0 0.0
    %3450 = vmatprep.subr.mxu0 0.0
    %3451 = vmatpush2.msra.mxu0 0.0
    %3452 = vmatprep.subr.mxu0 0.0
    %3453 = vmatpush2.msra.mxu0 0.0
    %3454 = vmatprep.subr.mxu0 0.0
    %3455 = vmatpush2.msra.mxu0 0.0
    %3456 = vmatprep.subr.mxu0 0.0
    %3457 = vmatpush2.msra.mxu0 0.0
    %3458 = vmatprep.subr.mxu0 0.0
    %3459 = vmatpush2.msra.mxu0 0.0
    %3460 = vmatprep.subr.mxu0 0.0
    %3461 = vmatpush2.msra.mxu0 0.0
    %3462 = vmatprep.subr.mxu0 0.0
    %3463 = vmatpush2.msra.mxu0 0.0
    %3464 = vmatprep.subr.mxu0 0.0
    %3465 = vmatpush2.msra.mxu0 0.0
    %3466 = vmatprep.subr.mxu0 0.0
    %3467 = vmatpush2.msra.mxu0 0.0
    %3468 = vmatprep.subr.mxu0 0.0
    %3469 = vmatpush2.msra.mxu0 0.0
    %3470 = vmatprep.mubr.f32.mxu0 0.0
    %3471 = vmatmul.mubr.f32.gmra.mxu0 %v3330
    %v3472 = vpop.f32.mrf.mxu0
    %v3473 = vadd.f32 0.0, %v3472
    %v3474 = vpop.f32.mrf.mxu0
    %v3475 = vadd.f32 0.0, %v3474
    %3476 = vdwg.mxu0
    %v3477 = vadd.f32 %v3331, %v3402
    %v3478 = vadd.f32 %v3332, %v3404
    %v3479 = vadd.f32 %v3333, %v3473
    %v3480 = vadd.f32 %v3334, %v3475
    %v3481 = vxor.u32 %v3477, 2147483648
    %v3482 = vmul.f32 %v3481, 1.442695
    %v3483 = vpow.pop %v3482
    %v3484 = vadd.f32 %v3483, 1.0
    %v3485 = vrcp.pop %v3484
    %v3486 = vmul.f32 1.0, %v3485
    %v3487 = vxor.u32 %v3478, 2147483648
    %v3488 = vmul.f32 %v3487, 1.442695
    %v3489 = vpow.pop %v3488
    %v3490 = vadd.f32 %v3489, 1.0
    %v3491 = vrcp.pop %v3490
    %v3492 = vmul.f32 1.0, %v3491
    %v3493 = vtanh.pop %v3479
    %v3494 = vxor.u32 %v3480, 2147483648
    %v3495 = vmul.f32 %v3494, 1.442695
    %v3496 = vpow.pop %v3495
    %v3497 = vadd.f32 %v3496, 1.0
    %v3498 = vrcp.pop %v3497
    %v3499 = vmul.f32 1.0, %v3498
    %v3500 = vmul.f32 %v3492, %v3328
    %v3501 = vmul.f32 %v3486, %v3493
    %v3502 = vadd.f32 %v3500, %v3501
    %v3503 = vtanh.pop %v3502
    %v3504 = vmul.f32 %v3499, %v3503
    %v3505 = vld [vmem:[%s1429] sm:$0xff]
    %v3506 = vld [vmem:[%s1429 + $0x8] sm:$0xff]
    %v3507 = vld [vmem:[%s1429 + $0x10] sm:$0xff]
    %v3508 = vld [vmem:[%s1429 + $0x18] sm:$0xff]
    %3509 = vmatprep.subr.mxu0 %v2810
    %3510 = vmatpush1.msra.mxu0 %v2809
    %3511 = vmatprep.subr.mxu0 %v2806
    %3512 = vmatpush1.msra.mxu0 %v2805
    %3513 = vmatprep.subr.mxu0 %v2802
    %3514 = vmatpush1.msra.mxu0 %v2801
    %3515 = vmatprep.subr.mxu0 %v2798
    %3516 = vmatpush1.msra.mxu0 %v2797
    %3517 = vmatprep.subr.mxu0 %v2794
    %3518 = vmatpush1.msra.mxu0 %v2793
    %3519 = vmatprep.subr.mxu0 %v2790
    %3520 = vmatpush1.msra.mxu0 %v2789
    %3521 = vmatprep.subr.mxu0 %v2786
    %3522 = vmatpush1.msra.mxu0 %v2785
    %3523 = vmatprep.subr.mxu0 %v2782
    %3524 = vmatpush1.msra.mxu0 %v2781
    %3525 = vmatprep.subr.mxu0 %v2778
    %3526 = vmatpush1.msra.mxu0 %v2777
    %3527 = vmatprep.subr.mxu0 %v2774
    %3528 = vmatpush1.msra.mxu0 %v2773
    %3529 = vmatprep.subr.mxu0 %v2770
    %3530 = vmatpush1.msra.mxu0 %v2769
    %3531 = vmatprep.subr.mxu0 %v2766
    %3532 = vmatpush1.msra.mxu0 %v2765
    %3533 = vmatprep.subr.mxu0 %v2762
    %3534 = vmatpush1.msra.mxu0 %v2761
    %3535 = vmatprep.subr.mxu0 %v2758
    %3536 = vmatpush1.msra.mxu0 %v2757
    %3537 = vmatprep.subr.mxu0 %v2754
    %3538 = vmatpush1.msra.mxu0 %v2753
    %3539 = vmatprep.subr.mxu0 %v2750
    %3540 = vmatpush1.msra.mxu0 %v2749
    %3541 = vmatprep.subr.mxu0 0.0
    %3542 = vmatpush2.msra.mxu0 0.0
    %3543 = vmatprep.subr.mxu0 0.0
    %3544 = vmatpush2.msra.mxu0 0.0
    %3545 = vmatprep.subr.mxu0 0.0
    %3546 = vmatpush2.msra.mxu0 0.0
    %3547 = vmatprep.subr.mxu0 0.0
    %3548 = vmatpush2.msra.mxu0 0.0
    %3549 = vmatprep.subr.mxu0 0.0
    %3550 = vmatpush2.msra.mxu0 0.0
    %3551 = vmatprep.subr.mxu0 0.0
    %3552 = vmatpush2.msra.mxu0 0.0
    %3553 = vmatprep.subr.mxu0 0.0
    %3554 = vmatpush2.msra.mxu0 0.0
    %3555 = vmatprep.subr.mxu0 0.0
    %3556 = vmatpush2.msra.mxu0 0.0
    %3557 = vmatprep.subr.mxu0 0.0
    %3558 = vmatpush2.msra.mxu0 0.0
    %3559 = vmatprep.subr.mxu0 0.0
    %3560 = vmatpush2.msra.mxu0 0.0
    %3561 = vmatprep.subr.mxu0 0.0
    %3562 = vmatpush2.msra.mxu0 0.0
    %3563 = vmatprep.subr.mxu0 0.0
    %3564 = vmatpush2.msra.mxu0 0.0
    %3565 = vmatprep.subr.mxu0 0.0
    %3566 = vmatpush2.msra.mxu0 0.0
    %3567 = vmatprep.subr.mxu0 0.0
    %3568 = vmatpush2.msra.mxu0 0.0
    %3569 = vmatprep.subr.mxu0 0.0
    %3570 = vmatpush2.msra.mxu0 0.0
    %3571 = vmatprep.subr.mxu0 0.0
    %3572 = vmatpush2.msra.mxu0 0.0
    %3573 = vmatprep.mubr.f32.mxu0 0.0
    %3574 = vmatmul.mubr.f32.gmra.mxu0 %v3504
    %v3575 = vpop.f32.mrf.mxu0
    %v3576 = vadd.f32 0.0, %v3575
    %v3577 = vpop.f32.mrf.mxu0
    %v3578 = vadd.f32 0.0, %v3577
    %3579 = vdwg.mxu0
    %3580 = vmatprep.subr.mxu0 %v2812
    %3581 = vmatpush1.msra.mxu0 %v2811
    %3582 = vmatprep.subr.mxu0 %v2808
    %3583 = vmatpush1.msra.mxu0 %v2807
    %3584 = vmatprep.subr.mxu0 %v2804
    %3585 = vmatpush1.msra.mxu0 %v2803
    %3586 = vmatprep.subr.mxu0 %v2800
    %3587 = vmatpush1.msra.mxu0 %v2799
    %3588 = vmatprep.subr.mxu0 %v2796
    %3589 = vmatpush1.msra.mxu0 %v2795
    %3590 = vmatprep.subr.mxu0 %v2792
    %3591 = vmatpush1.msra.mxu0 %v2791
    %3592 = vmatprep.subr.mxu0 %v2788
    %3593 = vmatpush1.msra.mxu0 %v2787
    %3594 = vmatprep.subr.mxu0 %v2784
    %3595 = vmatpush1.msra.mxu0 %v2783
    %3596 = vmatprep.subr.mxu0 %v2780
    %3597 = vmatpush1.msra.mxu0 %v2779
    %3598 = vmatprep.subr.mxu0 %v2776
    %3599 = vmatpush1.msra.mxu0 %v2775
    %3600 = vmatprep.subr.mxu0 %v2772
    %3601 = vmatpush1.msra.mxu0 %v2771
    %3602 = vmatprep.subr.mxu0 %v2768
    %3603 = vmatpush1.msra.mxu0 %v2767
    %3604 = vmatprep.subr.mxu0 %v2764
    %3605 = vmatpush1.msra.mxu0 %v2763
    %3606 = vmatprep.subr.mxu0 %v2760
    %3607 = vmatpush1.msra.mxu0 %v2759
    %3608 = vmatprep.subr.mxu0 %v2756
    %3609 = vmatpush1.msra.mxu0 %v2755
    %3610 = vmatprep.subr.mxu0 %v2752
    %3611 = vmatpush1.msra.mxu0 %v2751
    %3612 = vmatprep.subr.mxu0 0.0
    %3613 = vmatpush2.msra.mxu0 0.0
    %3614 = vmatprep.subr.mxu0 0.0
    %3615 = vmatpush2.msra.mxu0 0.0
    %3616 = vmatprep.subr.mxu0 0.0
    %3617 = vmatpush2.msra.mxu0 0.0
    %3618 = vmatprep.subr.mxu0 0.0
    %3619 = vmatpush2.msra.mxu0 0.0
    %3620 = vmatprep.subr.mxu0 0.0
    %3621 = vmatpush2.msra.mxu0 0.0
    %3622 = vmatprep.subr.mxu0 0.0
    %3623 = vmatpush2.msra.mxu0 0.0
    %3624 = vmatprep.subr.mxu0 0.0
    %3625 = vmatpush2.msra.mxu0 0.0
    %3626 = vmatprep.subr.mxu0 0.0
    %3627 = vmatpush2.msra.mxu0 0.0
    %3628 = vmatprep.subr.mxu0 0.0
    %3629 = vmatpush2.msra.mxu0 0.0
    %3630 = vmatprep.subr.mxu0 0.0
    %3631 = vmatpush2.msra.mxu0 0.0
    %3632 = vmatprep.subr.mxu0 0.0
    %3633 = vmatpush2.msra.mxu0 0.0
    %3634 = vmatprep.subr.mxu0 0.0
    %3635 = vmatpush2.msra.mxu0 0.0
    %3636 = vmatprep.subr.mxu0 0.0
    %3637 = vmatpush2.msra.mxu0 0.0
    %3638 = vmatprep.subr.mxu0 0.0
    %3639 = vmatpush2.msra.mxu0 0.0
    %3640 = vmatprep.subr.mxu0 0.0
    %3641 = vmatpush2.msra.mxu0 0.0
    %3642 = vmatprep.subr.mxu0 0.0
    %3643 = vmatpush2.msra.mxu0 0.0
    %3644 = vmatprep.mubr.f32.mxu0 0.0
    %3645 = vmatmul.mubr.f32.gmra.mxu0 %v3504
    %v3646 = vpop.f32.mrf.mxu0
    %v3647 = vadd.f32 0.0, %v3646
    %v3648 = vpop.f32.mrf.mxu0
    %v3649 = vadd.f32 0.0, %v3648
    %3650 = vdwg.mxu0
    %v3651 = vadd.f32 %v3505, %v3576
    %v3652 = vadd.f32 %v3506, %v3578
    %v3653 = vadd.f32 %v3507, %v3647
    %v3654 = vadd.f32 %v3508, %v3649
    %v3655 = vxor.u32 %v3651, 2147483648
    %v3656 = vmul.f32 %v3655, 1.442695
    %v3657 = vpow.pop %v3656
    %v3658 = vadd.f32 %v3657, 1.0
    %v3659 = vrcp.pop %v3658
    %v3660 = vmul.f32 1.0, %v3659
    %v3661 = vxor.u32 %v3652, 2147483648
    %v3662 = vmul.f32 %v3661, 1.442695
    %v3663 = vpow.pop %v3662
    %v3664 = vadd.f32 %v3663, 1.0
    %v3665 = vrcp.pop %v3664
    %v3666 = vmul.f32 1.0, %v3665
    %v3667 = vtanh.pop %v3653
    %v3668 = vxor.u32 %v3654, 2147483648
    %v3669 = vmul.f32 %v3668, 1.442695
    %v3670 = vpow.pop %v3669
    %v3671 = vadd.f32 %v3670, 1.0
    %v3672 = vrcp.pop %v3671
    %v3673 = vmul.f32 1.0, %v3672
    %v3674 = vmul.f32 %v3666, %v3502
    %v3675 = vmul.f32 %v3660, %v3667
    %v3676 = vadd.f32 %v3674, %v3675
    %v3677 = vtanh.pop %v3676
    %v3678 = vmul.f32 %v3673, %v3677
    %v3679 = vld [vmem:[%s1670] sm:$0xff]
    %v3680 = vld [vmem:[%s1670 + $0x8] sm:$0xff]
    %v3681 = vld [vmem:[%s1670 + $0x10] sm:$0xff]
    %v3682 = vld [vmem:[%s1670 + $0x18] sm:$0xff]
    %3683 = vmatprep.subr.mxu0 %v2810
    %3684 = vmatpush1.msra.mxu0 %v2809
    %3685 = vmatprep.subr.mxu0 %v2806
    %3686 = vmatpush1.msra.mxu0 %v2805
    %3687 = vmatprep.subr.mxu0 %v2802
    %3688 = vmatpush1.msra.mxu0 %v2801
    %3689 = vmatprep.subr.mxu0 %v2798
    %3690 = vmatpush1.msra.mxu0 %v2797
    %3691 = vmatprep.subr.mxu0 %v2794
    %3692 = vmatpush1.msra.mxu0 %v2793
    %3693 = vmatprep.subr.mxu0 %v2790
    %3694 = vmatpush1.msra.mxu0 %v2789
    %3695 = vmatprep.subr.mxu0 %v2786
    %3696 = vmatpush1.msra.mxu0 %v2785
    %3697 = vmatprep.subr.mxu0 %v2782
    %3698 = vmatpush1.msra.mxu0 %v2781
    %3699 = vmatprep.subr.mxu0 %v2778
    %3700 = vmatpush1.msra.mxu0 %v2777
    %3701 = vmatprep.subr.mxu0 %v2774
    %3702 = vmatpush1.msra.mxu0 %v2773
    %3703 = vmatprep.subr.mxu0 %v2770
    %3704 = vmatpush1.msra.mxu0 %v2769
    %3705 = vmatprep.subr.mxu0 %v2766
    %3706 = vmatpush1.msra.mxu0 %v2765
    %3707 = vmatprep.subr.mxu0 %v2762
    %3708 = vmatpush1.msra.mxu0 %v2761
    %3709 = vmatprep.subr.mxu0 %v2758
    %3710 = vmatpush1.msra.mxu0 %v2757
    %3711 = vmatprep.subr.mxu0 %v2754
    %3712 = vmatpush1.msra.mxu0 %v2753
    %3713 = vmatprep.subr.mxu0 %v2750
    %3714 = vmatpush1.msra.mxu0 %v2749
    %3715 = vmatprep.subr.mxu0 0.0
    %3716 = vmatpush2.msra.mxu0 0.0
    %3717 = vmatprep.subr.mxu0 0.0
    %3718 = vmatpush2.msra.mxu0 0.0
    %3719 = vmatprep.subr.mxu0 0.0
    %3720 = vmatpush2.msra.mxu0 0.0
    %3721 = vmatprep.subr.mxu0 0.0
    %3722 = vmatpush2.msra.mxu0 0.0
    %3723 = vmatprep.subr.mxu0 0.0
    %3724 = vmatpush2.msra.mxu0 0.0
    %3725 = vmatprep.subr.mxu0 0.0
    %3726 = vmatpush2.msra.mxu0 0.0
    %3727 = vmatprep.subr.mxu0 0.0
    %3728 = vmatpush2.msra.mxu0 0.0
    %3729 = vmatprep.subr.mxu0 0.0
    %3730 = vmatpush2.msra.mxu0 0.0
    %3731 = vmatprep.subr.mxu0 0.0
    %3732 = vmatpush2.msra.mxu0 0.0
    %3733 = vmatprep.subr.mxu0 0.0
    %3734 = vmatpush2.msra.mxu0 0.0
    %3735 = vmatprep.subr.mxu0 0.0
    %3736 = vmatpush2.msra.mxu0 0.0
    %3737 = vmatprep.subr.mxu0 0.0
    %3738 = vmatpush2.msra.mxu0 0.0
    %3739 = vmatprep.subr.mxu0 0.0
    %3740 = vmatpush2.msra.mxu0 0.0
    %3741 = vmatprep.subr.mxu0 0.0
    %3742 = vmatpush2.msra.mxu0 0.0
    %3743 = vmatprep.subr.mxu0 0.0
    %3744 = vmatpush2.msra.mxu0 0.0
    %3745 = vmatprep.subr.mxu0 0.0
    %3746 = vmatpush2.msra.mxu0 0.0
    %3747 = vmatprep.mubr.f32.mxu0 0.0
    %3748 = vmatmul.mubr.f32.gmra.mxu0 %v3678
    %v3749 = vpop.f32.mrf.mxu0
    %v3750 = vadd.f32 0.0, %v3749
    %v3751 = vpop.f32.mrf.mxu0
    %v3752 = vadd.f32 0.0, %v3751
    %3753 = vdwg.mxu0
    %3754 = vmatprep.subr.mxu0 %v2812
    %3755 = vmatpush1.msra.mxu0 %v2811
    %3756 = vmatprep.subr.mxu0 %v2808
    %3757 = vmatpush1.msra.mxu0 %v2807
    %3758 = vmatprep.subr.mxu0 %v2804
    %3759 = vmatpush1.msra.mxu0 %v2803
    %3760 = vmatprep.subr.mxu0 %v2800
    %3761 = vmatpush1.msra.mxu0 %v2799
    %3762 = vmatprep.subr.mxu0 %v2796
    %3763 = vmatpush1.msra.mxu0 %v2795
    %3764 = vmatprep.subr.mxu0 %v2792
    %3765 = vmatpush1.msra.mxu0 %v2791
    %3766 = vmatprep.subr.mxu0 %v2788
    %3767 = vmatpush1.msra.mxu0 %v2787
    %3768 = vmatprep.subr.mxu0 %v2784
    %3769 = vmatpush1.msra.mxu0 %v2783
    %3770 = vmatprep.subr.mxu0 %v2780
    %3771 = vmatpush1.msra.mxu0 %v2779
    %3772 = vmatprep.subr.mxu0 %v2776
    %3773 = vmatpush1.msra.mxu0 %v2775
    %3774 = vmatprep.subr.mxu0 %v2772
    %3775 = vmatpush1.msra.mxu0 %v2771
    %3776 = vmatprep.subr.mxu0 %v2768
    %3777 = vmatpush1.msra.mxu0 %v2767
    %3778 = vmatprep.subr.mxu0 %v2764
    %3779 = vmatpush1.msra.mxu0 %v2763
    %3780 = vmatprep.subr.mxu0 %v2760
    %3781 = vmatpush1.msra.mxu0 %v2759
    %3782 = vmatprep.subr.mxu0 %v2756
    %3783 = vmatpush1.msra.mxu0 %v2755
    %3784 = vmatprep.subr.mxu0 %v2752
    %3785 = vmatpush1.msra.mxu0 %v2751
    %3786 = vmatprep.subr.mxu0 0.0
    %3787 = vmatpush2.msra.mxu0 0.0
    %3788 = vmatprep.subr.mxu0 0.0
    %3789 = vmatpush2.msra.mxu0 0.0
    %3790 = vmatprep.subr.mxu0 0.0
    %3791 = vmatpush2.msra.mxu0 0.0
    %3792 = vmatprep.subr.mxu0 0.0
    %3793 = vmatpush2.msra.mxu0 0.0
    %3794 = vmatprep.subr.mxu0 0.0
    %3795 = vmatpush2.msra.mxu0 0.0
    %3796 = vmatprep.subr.mxu0 0.0
    %3797 = vmatpush2.msra.mxu0 0.0
    %3798 = vmatprep.subr.mxu0 0.0
    %3799 = vmatpush2.msra.mxu0 0.0
    %3800 = vmatprep.subr.mxu0 0.0
    %3801 = vmatpush2.msra.mxu0 0.0
    %3802 = vmatprep.subr.mxu0 0.0
    %3803 = vmatpush2.msra.mxu0 0.0
    %3804 = vmatprep.subr.mxu0 0.0
    %3805 = vmatpush2.msra.mxu0 0.0
    %3806 = vmatprep.subr.mxu0 0.0
    %3807 = vmatpush2.msra.mxu0 0.0
    %3808 = vmatprep.subr.mxu0 0.0
    %3809 = vmatpush2.msra.mxu0 0.0
    %3810 = vmatprep.subr.mxu0 0.0
    %3811 = vmatpush2.msra.mxu0 0.0
    %3812 = vmatprep.subr.mxu0 0.0
    %3813 = vmatpush2.msra.mxu0 0.0
    %3814 = vmatprep.subr.mxu0 0.0
    %3815 = vmatpush2.msra.mxu0 0.0
    %3816 = vmatprep.subr.mxu0 0.0
    %3817 = vmatpush2.msra.mxu0 0.0
    %3818 = vmatprep.mubr.f32.mxu0 0.0
    %3819 = vmatmul.mubr.f32.gmra.mxu0 %v3678
    %v3820 = vpop.f32.mrf.mxu0
    %v3821 = vadd.f32 0.0, %v3820
    %v3822 = vpop.f32.mrf.mxu0
    %v3823 = vadd.f32 0.0, %v3822
    %3824 = vdwg.mxu0
    %v3825 = vadd.f32 %v3679, %v3750
    %v3826 = vadd.f32 %v3680, %v3752
    %v3827 = vadd.f32 %v3681, %v3821
    %v3828 = vadd.f32 %v3682, %v3823
    %v3829 = vxor.u32 %v3825, 2147483648
    %v3830 = vmul.f32 %v3829, 1.442695
    %v3831 = vpow.pop %v3830
    %v3832 = vadd.f32 %v3831, 1.0
    %v3833 = vrcp.pop %v3832
    %v3834 = vmul.f32 1.0, %v3833
    %v3835 = vxor.u32 %v3826, 2147483648
    %v3836 = vmul.f32 %v3835, 1.442695
    %v3837 = vpow.pop %v3836
    %v3838 = vadd.f32 %v3837, 1.0
    %v3839 = vrcp.pop %v3838
    %v3840 = vmul.f32 1.0, %v3839
    %v3841 = vtanh.pop %v3827
    %v3842 = vxor.u32 %v3828, 2147483648
    %v3843 = vmul.f32 %v3842, 1.442695
    %v3844 = vpow.pop %v3843
    %v3845 = vadd.f32 %v3844, 1.0
    %v3846 = vrcp.pop %v3845
    %v3847 = vmul.f32 1.0, %v3846
    %v3848 = vmul.f32 %v3840, %v3676
    %v3849 = vmul.f32 %v3834, %v3841
    %v3850 = vadd.f32 %v3848, %v3849
    %v3851 = vtanh.pop %v3850
    %v3852 = vmul.f32 %v3847, %v3851
    %v3853 = vld [vmem:[%s1911] sm:$0xff]
    %v3854 = vld [vmem:[%s1911 + $0x8] sm:$0xff]
    %v3855 = vld [vmem:[%s1911 + $0x10] sm:$0xff]
    %v3856 = vld [vmem:[%s1911 + $0x18] sm:$0xff]
    %3857 = vmatprep.subr.mxu0 %v2810
    %3858 = vmatpush1.msra.mxu0 %v2809
    %3859 = vmatprep.subr.mxu0 %v2806
    %3860 = vmatpush1.msra.mxu0 %v2805
    %3861 = vmatprep.subr.mxu0 %v2802
    %3862 = vmatpush1.msra.mxu0 %v2801
    %3863 = vmatprep.subr.mxu0 %v2798
    %3864 = vmatpush1.msra.mxu0 %v2797
    %3865 = vmatprep.subr.mxu0 %v2794
    %3866 = vmatpush1.msra.mxu0 %v2793
    %3867 = vmatprep.subr.mxu0 %v2790
    %3868 = vmatpush1.msra.mxu0 %v2789
    %3869 = vmatprep.subr.mxu0 %v2786
    %3870 = vmatpush1.msra.mxu0 %v2785
    %3871 = vmatprep.subr.mxu0 %v2782
    %3872 = vmatpush1.msra.mxu0 %v2781
    %3873 = vmatprep.subr.mxu0 %v2778
    %3874 = vmatpush1.msra.mxu0 %v2777
    %3875 = vmatprep.subr.mxu0 %v2774
    %3876 = vmatpush1.msra.mxu0 %v2773
    %3877 = vmatprep.subr.mxu0 %v2770
    %3878 = vmatpush1.msra.mxu0 %v2769
    %3879 = vmatprep.subr.mxu0 %v2766
    %3880 = vmatpush1.msra.mxu0 %v2765
    %3881 = vmatprep.subr.mxu0 %v2762
    %3882 = vmatpush1.msra.mxu0 %v2761
    %3883 = vmatprep.subr.mxu0 %v2758
    %3884 = vmatpush1.msra.mxu0 %v2757
    %3885 = vmatprep.subr.mxu0 %v2754
    %3886 = vmatpush1.msra.mxu0 %v2753
    %3887 = vmatprep.subr.mxu0 %v2750
    %3888 = vmatpush1.msra.mxu0 %v2749
    %3889 = vmatprep.subr.mxu0 0.0
    %3890 = vmatpush2.msra.mxu0 0.0
    %3891 = vmatprep.subr.mxu0 0.0
    %3892 = vmatpush2.msra.mxu0 0.0
    %3893 = vmatprep.subr.mxu0 0.0
    %3894 = vmatpush2.msra.mxu0 0.0
    %3895 = vmatprep.subr.mxu0 0.0
    %3896 = vmatpush2.msra.mxu0 0.0
    %3897 = vmatprep.subr.mxu0 0.0
    %3898 = vmatpush2.msra.mxu0 0.0
    %3899 = vmatprep.subr.mxu0 0.0
    %3900 = vmatpush2.msra.mxu0 0.0
    %3901 = vmatprep.subr.mxu0 0.0
    %3902 = vmatpush2.msra.mxu0 0.0
    %3903 = vmatprep.subr.mxu0 0.0
    %3904 = vmatpush2.msra.mxu0 0.0
    %3905 = vmatprep.subr.mxu0 0.0
    %3906 = vmatpush2.msra.mxu0 0.0
    %3907 = vmatprep.subr.mxu0 0.0
    %3908 = vmatpush2.msra.mxu0 0.0
    %3909 = vmatprep.subr.mxu0 0.0
    %3910 = vmatpush2.msra.mxu0 0.0
    %3911 = vmatprep.subr.mxu0 0.0
    %3912 = vmatpush2.msra.mxu0 0.0
    %3913 = vmatprep.subr.mxu0 0.0
    %3914 = vmatpush2.msra.mxu0 0.0
    %3915 = vmatprep.subr.mxu0 0.0
    %3916 = vmatpush2.msra.mxu0 0.0
    %3917 = vmatprep.subr.mxu0 0.0
    %3918 = vmatpush2.msra.mxu0 0.0
    %3919 = vmatprep.subr.mxu0 0.0
    %3920 = vmatpush2.msra.mxu0 0.0
    %3921 = vmatprep.mubr.f32.mxu0 0.0
    %3922 = vmatmul.mubr.f32.gmra.mxu0 %v3852
    %v3923 = vpop.f32.mrf.mxu0
    %v3924 = vadd.f32 0.0, %v3923
    %v3925 = vpop.f32.mrf.mxu0
    %v3926 = vadd.f32 0.0, %v3925
    %3927 = vdwg.mxu0
    %3928 = vmatprep.subr.mxu0 %v2812
    %3929 = vmatpush1.msra.mxu0 %v2811
    %3930 = vmatprep.subr.mxu0 %v2808
    %3931 = vmatpush1.msra.mxu0 %v2807
    %3932 = vmatprep.subr.mxu0 %v2804
    %3933 = vmatpush1.msra.mxu0 %v2803
    %3934 = vmatprep.subr.mxu0 %v2800
    %3935 = vmatpush1.msra.mxu0 %v2799
    %3936 = vmatprep.subr.mxu0 %v2796
    %3937 = vmatpush1.msra.mxu0 %v2795
    %3938 = vmatprep.subr.mxu0 %v2792
    %3939 = vmatpush1.msra.mxu0 %v2791
    %3940 = vmatprep.subr.mxu0 %v2788
    %3941 = vmatpush1.msra.mxu0 %v2787
    %3942 = vmatprep.subr.mxu0 %v2784
    %3943 = vmatpush1.msra.mxu0 %v2783
    %3944 = vmatprep.subr.mxu0 %v2780
    %3945 = vmatpush1.msra.mxu0 %v2779
    %3946 = vmatprep.subr.mxu0 %v2776
    %3947 = vmatpush1.msra.mxu0 %v2775
    %3948 = vmatprep.subr.mxu0 %v2772
    %3949 = vmatpush1.msra.mxu0 %v2771
    %3950 = vmatprep.subr.mxu0 %v2768
    %3951 = vmatpush1.msra.mxu0 %v2767
    %3952 = vmatprep.subr.mxu0 %v2764
    %3953 = vmatpush1.msra.mxu0 %v2763
    %3954 = vmatprep.subr.mxu0 %v2760
    %3955 = vmatpush1.msra.mxu0 %v2759
    %3956 = vmatprep.subr.mxu0 %v2756
    %3957 = vmatpush1.msra.mxu0 %v2755
    %3958 = vmatprep.subr.mxu0 %v2752
    %3959 = vmatpush1.msra.mxu0 %v2751
    %3960 = vmatprep.subr.mxu0 0.0
    %3961 = vmatpush2.msra.mxu0 0.0
    %3962 = vmatprep.subr.mxu0 0.0
    %3963 = vmatpush2.msra.mxu0 0.0
    %3964 = vmatprep.subr.mxu0 0.0
    %3965 = vmatpush2.msra.mxu0 0.0
    %3966 = vmatprep.subr.mxu0 0.0
    %3967 = vmatpush2.msra.mxu0 0.0
    %3968 = vmatprep.subr.mxu0 0.0
    %3969 = vmatpush2.msra.mxu0 0.0
    %3970 = vmatprep.subr.mxu0 0.0
    %3971 = vmatpush2.msra.mxu0 0.0
    %3972 = vmatprep.subr.mxu0 0.0
    %3973 = vmatpush2.msra.mxu0 0.0
    %3974 = vmatprep.subr.mxu0 0.0
    %3975 = vmatpush2.msra.mxu0 0.0
    %3976 = vmatprep.subr.mxu0 0.0
    %3977 = vmatpush2.msra.mxu0 0.0
    %3978 = vmatprep.subr.mxu0 0.0
    %3979 = vmatpush2.msra.mxu0 0.0
    %3980 = vmatprep.subr.mxu0 0.0
    %3981 = vmatpush2.msra.mxu0 0.0
    %3982 = vmatprep.subr.mxu0 0.0
    %3983 = vmatpush2.msra.mxu0 0.0
    %3984 = vmatprep.subr.mxu0 0.0
    %3985 = vmatpush2.msra.mxu0 0.0
    %3986 = vmatprep.subr.mxu0 0.0
    %3987 = vmatpush2.msra.mxu0 0.0
    %3988 = vmatprep.subr.mxu0 0.0
    %3989 = vmatpush2.msra.mxu0 0.0
    %3990 = vmatprep.subr.mxu0 0.0
    %3991 = vmatpush2.msra.mxu0 0.0
    %3992 = vmatprep.mubr.f32.mxu0 0.0
    %3993 = vmatmul.mubr.f32.gmra.mxu0 %v3852
    %v3994 = vpop.f32.mrf.mxu0
    %v3995 = vadd.f32 0.0, %v3994
    %v3996 = vpop.f32.mrf.mxu0
    %v3997 = vadd.f32 0.0, %v3996
    %3998 = vdwg.mxu0
    %v3999 = vadd.f32 %v3853, %v3924
    %v4000 = vadd.f32 %v3854, %v3926
    %v4001 = vadd.f32 %v3855, %v3995
    %v4002 = vadd.f32 %v3856, %v3997
    %v4003 = vxor.u32 %v3999, 2147483648
    %v4004 = vmul.f32 %v4003, 1.442695
    %v4005 = vpow.pop %v4004
    %v4006 = vadd.f32 %v4005, 1.0
    %v4007 = vrcp.pop %v4006
    %v4008 = vmul.f32 1.0, %v4007
    %v4009 = vxor.u32 %v4000, 2147483648
    %v4010 = vmul.f32 %v4009, 1.442695
    %v4011 = vpow.pop %v4010
    %v4012 = vadd.f32 %v4011, 1.0
    %v4013 = vrcp.pop %v4012
    %v4014 = vmul.f32 1.0, %v4013
    %v4015 = vtanh.pop %v4001
    %v4016 = vxor.u32 %v4002, 2147483648
    %v4017 = vmul.f32 %v4016, 1.442695
    %v4018 = vpow.pop %v4017
    %v4019 = vadd.f32 %v4018, 1.0
    %v4020 = vrcp.pop %v4019
    %v4021 = vmul.f32 1.0, %v4020
    %v4022 = vmul.f32 %v4014, %v3850
    %v4023 = vmul.f32 %v4008, %v4015
    %v4024 = vadd.f32 %v4022, %v4023
    %v4025 = vtanh.pop %v4024
    %v4026 = vmul.f32 %v4021, %v4025
    %v4027 = vld [vmem:[%s2152] sm:$0xff]
    %v4028 = vld [vmem:[%s2152 + $0x8] sm:$0xff]
    %v4029 = vld [vmem:[%s2152 + $0x10] sm:$0xff]
    %v4030 = vld [vmem:[%s2152 + $0x18] sm:$0xff]
    %4031 = vmatprep.subr.mxu0 %v2810
    %4032 = vmatpush1.msra.mxu0 %v2809
    %4033 = vmatprep.subr.mxu0 %v2806
    %4034 = vmatpush1.msra.mxu0 %v2805
    %4035 = vmatprep.subr.mxu0 %v2802
    %4036 = vmatpush1.msra.mxu0 %v2801
    %4037 = vmatprep.subr.mxu0 %v2798
    %4038 = vmatpush1.msra.mxu0 %v2797
    %4039 = vmatprep.subr.mxu0 %v2794
    %4040 = vmatpush1.msra.mxu0 %v2793
    %4041 = vmatprep.subr.mxu0 %v2790
    %4042 = vmatpush1.msra.mxu0 %v2789
    %4043 = vmatprep.subr.mxu0 %v2786
    %4044 = vmatpush1.msra.mxu0 %v2785
    %4045 = vmatprep.subr.mxu0 %v2782
    %4046 = vmatpush1.msra.mxu0 %v2781
    %4047 = vmatprep.subr.mxu0 %v2778
    %4048 = vmatpush1.msra.mxu0 %v2777
    %4049 = vmatprep.subr.mxu0 %v2774
    %4050 = vmatpush1.msra.mxu0 %v2773
    %4051 = vmatprep.subr.mxu0 %v2770
    %4052 = vmatpush1.msra.mxu0 %v2769
    %4053 = vmatprep.subr.mxu0 %v2766
    %4054 = vmatpush1.msra.mxu0 %v2765
    %4055 = vmatprep.subr.mxu0 %v2762
    %4056 = vmatpush1.msra.mxu0 %v2761
    %4057 = vmatprep.subr.mxu0 %v2758
    %4058 = vmatpush1.msra.mxu0 %v2757
    %4059 = vmatprep.subr.mxu0 %v2754
    %4060 = vmatpush1.msra.mxu0 %v2753
    %4061 = vmatprep.subr.mxu0 %v2750
    %4062 = vmatpush1.msra.mxu0 %v2749
    %4063 = vmatprep.subr.mxu0 0.0
    %4064 = vmatpush2.msra.mxu0 0.0
    %4065 = vmatprep.subr.mxu0 0.0
    %4066 = vmatpush2.msra.mxu0 0.0
    %4067 = vmatprep.subr.mxu0 0.0
    %4068 = vmatpush2.msra.mxu0 0.0
    %4069 = vmatprep.subr.mxu0 0.0
    %4070 = vmatpush2.msra.mxu0 0.0
    %4071 = vmatprep.subr.mxu0 0.0
    %4072 = vmatpush2.msra.mxu0 0.0
    %4073 = vmatprep.subr.mxu0 0.0
    %4074 = vmatpush2.msra.mxu0 0.0
    %4075 = vmatprep.subr.mxu0 0.0
    %4076 = vmatpush2.msra.mxu0 0.0
    %4077 = vmatprep.subr.mxu0 0.0
    %4078 = vmatpush2.msra.mxu0 0.0
    %4079 = vmatprep.subr.mxu0 0.0
    %4080 = vmatpush2.msra.mxu0 0.0
    %4081 = vmatprep.subr.mxu0 0.0
    %4082 = vmatpush2.msra.mxu0 0.0
    %4083 = vmatprep.subr.mxu0 0.0
    %4084 = vmatpush2.msra.mxu0 0.0
    %4085 = vmatprep.subr.mxu0 0.0
    %4086 = vmatpush2.msra.mxu0 0.0
    %4087 = vmatprep.subr.mxu0 0.0
    %4088 = vmatpush2.msra.mxu0 0.0
    %4089 = vmatprep.subr.mxu0 0.0
    %4090 = vmatpush2.msra.mxu0 0.0
    %4091 = vmatprep.subr.mxu0 0.0
    %4092 = vmatpush2.msra.mxu0 0.0
    %4093 = vmatprep.subr.mxu0 0.0
    %4094 = vmatpush2.msra.mxu0 0.0
    %4095 = vmatprep.mubr.f32.mxu0 0.0
    %4096 = vmatmul.mubr.f32.gmra.mxu0 %v4026
    %v4097 = vpop.f32.mrf.mxu0
    %v4098 = vadd.f32 0.0, %v4097
    %v4099 = vpop.f32.mrf.mxu0
    %v4100 = vadd.f32 0.0, %v4099
    %4101 = vdwg.mxu0
    %4102 = vmatprep.subr.mxu0 %v2812
    %4103 = vmatpush1.msra.mxu0 %v2811
    %4104 = vmatprep.subr.mxu0 %v2808
    %4105 = vmatpush1.msra.mxu0 %v2807
    %4106 = vmatprep.subr.mxu0 %v2804
    %4107 = vmatpush1.msra.mxu0 %v2803
    %4108 = vmatprep.subr.mxu0 %v2800
    %4109 = vmatpush1.msra.mxu0 %v2799
    %4110 = vmatprep.subr.mxu0 %v2796
    %4111 = vmatpush1.msra.mxu0 %v2795
    %4112 = vmatprep.subr.mxu0 %v2792
    %4113 = vmatpush1.msra.mxu0 %v2791
    %4114 = vmatprep.subr.mxu0 %v2788
    %4115 = vmatpush1.msra.mxu0 %v2787
    %4116 = vmatprep.subr.mxu0 %v2784
    %4117 = vmatpush1.msra.mxu0 %v2783
    %4118 = vmatprep.subr.mxu0 %v2780
    %4119 = vmatpush1.msra.mxu0 %v2779
    %4120 = vmatprep.subr.mxu0 %v2776
    %4121 = vmatpush1.msra.mxu0 %v2775
    %4122 = vmatprep.subr.mxu0 %v2772
    %4123 = vmatpush1.msra.mxu0 %v2771
    %4124 = vmatprep.subr.mxu0 %v2768
    %4125 = vmatpush1.msra.mxu0 %v2767
    %4126 = vmatprep.subr.mxu0 %v2764
    %4127 = vmatpush1.msra.mxu0 %v2763
    %4128 = vmatprep.subr.mxu0 %v2760
    %4129 = vmatpush1.msra.mxu0 %v2759
    %4130 = vmatprep.subr.mxu0 %v2756
    %4131 = vmatpush1.msra.mxu0 %v2755
    %4132 = vmatprep.subr.mxu0 %v2752
    %4133 = vmatpush1.msra.mxu0 %v2751
    %4134 = vmatprep.subr.mxu0 0.0
    %4135 = vmatpush2.msra.mxu0 0.0
    %4136 = vmatprep.subr.mxu0 0.0
    %4137 = vmatpush2.msra.mxu0 0.0
    %4138 = vmatprep.subr.mxu0 0.0
    %4139 = vmatpush2.msra.mxu0 0.0
    %4140 = vmatprep.subr.mxu0 0.0
    %4141 = vmatpush2.msra.mxu0 0.0
    %4142 = vmatprep.subr.mxu0 0.0
    %4143 = vmatpush2.msra.mxu0 0.0
    %4144 = vmatprep.subr.mxu0 0.0
    %4145 = vmatpush2.msra.mxu0 0.0
    %4146 = vmatprep.subr.mxu0 0.0
    %4147 = vmatpush2.msra.mxu0 0.0
    %4148 = vmatprep.subr.mxu0 0.0
    %4149 = vmatpush2.msra.mxu0 0.0
    %4150 = vmatprep.subr.mxu0 0.0
    %4151 = vmatpush2.msra.mxu0 0.0
    %4152 = vmatprep.subr.mxu0 0.0
    %4153 = vmatpush2.msra.mxu0 0.0
    %4154 = vmatprep.subr.mxu0 0.0
    %4155 = vmatpush2.msra.mxu0 0.0
    %4156 = vmatprep.subr.mxu0 0.0
    %4157 = vmatpush2.msra.mxu0 0.0
    %4158 = vmatprep.subr.mxu0 0.0
    %4159 = vmatpush2.msra.mxu0 0.0
    %4160 = vmatprep.subr.mxu0 0.0
    %4161 = vmatpush2.msra.mxu0 0.0
    %4162 = vmatprep.subr.mxu0 0.0
    %4163 = vmatpush2.msra.mxu0 0.0
    %4164 = vmatprep.subr.mxu0 0.0
    %4165 = vmatpush2.msra.mxu0 0.0
    %4166 = vmatprep.mubr.f32.mxu0 0.0
    %4167 = vmatmul.mubr.f32.gmra.mxu0 %v4026
    %v4168 = vpop.f32.mrf.mxu0
    %v4169 = vadd.f32 0.0, %v4168
    %v4170 = vpop.f32.mrf.mxu0
    %v4171 = vadd.f32 0.0, %v4170
    %4172 = vdwg.mxu0
    %v4173 = vadd.f32 %v4027, %v4098
    %v4174 = vadd.f32 %v4028, %v4100
    %v4175 = vadd.f32 %v4029, %v4169
    %v4176 = vadd.f32 %v4030, %v4171
    %v4177 = vxor.u32 %v4173, 2147483648
    %v4178 = vmul.f32 %v4177, 1.442695
    %v4179 = vpow.pop %v4178
    %v4180 = vadd.f32 %v4179, 1.0
    %v4181 = vrcp.pop %v4180
    %v4182 = vmul.f32 1.0, %v4181
    %v4183 = vxor.u32 %v4174, 2147483648
    %v4184 = vmul.f32 %v4183, 1.442695
    %v4185 = vpow.pop %v4184
    %v4186 = vadd.f32 %v4185, 1.0
    %v4187 = vrcp.pop %v4186
    %v4188 = vmul.f32 1.0, %v4187
    %v4189 = vtanh.pop %v4175
    %v4190 = vxor.u32 %v4176, 2147483648
    %v4191 = vmul.f32 %v4190, 1.442695
    %v4192 = vpow.pop %v4191
    %v4193 = vadd.f32 %v4192, 1.0
    %v4194 = vrcp.pop %v4193
    %v4195 = vmul.f32 1.0, %v4194
    %v4196 = vmul.f32 %v4188, %v4024
    %v4197 = vmul.f32 %v4182, %v4189
    %v4198 = vadd.f32 %v4196, %v4197
    %v4199 = vtanh.pop %v4198
    %v4200 = vmul.f32 %v4195, %v4199
    %v4201 = vld [vmem:[#allocation13] sm:$0xff]
    %v4202 = vld [vmem:[#allocation13 + $0x8] sm:$0xff]
    %v4203 = vld [vmem:[#allocation13 + $0x10] sm:$0xff]
    %v4204 = vld [vmem:[#allocation13 + $0x18] sm:$0xff]
    %v4205 = vld [vmem:[#allocation13 + $0x20] sm:$0xff]
    %v4206 = vld [vmem:[#allocation13 + $0x28] sm:$0xff]
    %v4207 = vld [vmem:[#allocation13 + $0x30] sm:$0xff]
    %v4208 = vld [vmem:[#allocation13 + $0x38] sm:$0xff]
    %v4209 = vld [vmem:[#allocation13 + $0x40] sm:$0xff]
    %v4210 = vld [vmem:[#allocation13 + $0x48] sm:$0xff]
    %v4211 = vld [vmem:[#allocation13 + $0x50] sm:$0xff]
    %v4212 = vld [vmem:[#allocation13 + $0x58] sm:$0xff]
    %v4213 = vld [vmem:[#allocation13 + $0x60] sm:$0xff]
    %v4214 = vld [vmem:[#allocation13 + $0x68] sm:$0xff]
    %v4215 = vld [vmem:[#allocation13 + $0x70] sm:$0xff]
    %v4216 = vld [vmem:[#allocation13 + $0x78] sm:$0xff]
    %v4217 = vld [vmem:[%s8] sm:$0x1]
    %v4219 = vlaneseq
    %v4220 = vshrl.u32 %v4219, 7
    %v4221 = vsub.s32 0, %v4220
    %v4222 = vrot.slane %v4217, %v4221
    %4224 = vmatprep.subr.mxu0 0.0
    %4225 = vmatpush1.msra.mxu0 %v4216
    %4226 = vmatprep.subr.mxu0 0.0
    %4227 = vmatpush1.msra.mxu0 %v4215
    %4228 = vmatprep.subr.mxu0 0.0
    %4229 = vmatpush1.msra.mxu0 %v4214
    %4230 = vmatprep.subr.mxu0 0.0
    %4231 = vmatpush1.msra.mxu0 %v4213
    %4232 = vmatprep.subr.mxu0 0.0
    %4233 = vmatpush1.msra.mxu0 %v4212
    %4234 = vmatprep.subr.mxu0 0.0
    %4235 = vmatpush1.msra.mxu0 %v4211
    %4236 = vmatprep.subr.mxu0 0.0
    %4237 = vmatpush1.msra.mxu0 %v4210
    %4238 = vmatprep.subr.mxu0 0.0
    %4239 = vmatpush1.msra.mxu0 %v4209
    %4240 = vmatprep.subr.mxu0 0.0
    %4241 = vmatpush1.msra.mxu0 %v4208
    %4242 = vmatprep.subr.mxu0 0.0
    %4243 = vmatpush1.msra.mxu0 %v4207
    %4244 = vmatprep.subr.mxu0 0.0
    %4245 = vmatpush1.msra.mxu0 %v4206
    %4246 = vmatprep.subr.mxu0 0.0
    %4247 = vmatpush1.msra.mxu0 %v4205
    %4248 = vmatprep.subr.mxu0 0.0
    %4249 = vmatpush1.msra.mxu0 %v4204
    %4250 = vmatprep.subr.mxu0 0.0
    %4251 = vmatpush1.msra.mxu0 %v4203
    %4252 = vmatprep.subr.mxu0 0.0
    %4253 = vmatpush1.msra.mxu0 %v4202
    %4254 = vmatprep.subr.mxu0 0.0
    %4255 = vmatpush1.msra.mxu0 %v4201
    %4256 = vmatprep.subr.mxu0 0.0
    %4257 = vmatpush2.msra.mxu0 0.0
    %4258 = vmatprep.subr.mxu0 0.0
    %4259 = vmatpush2.msra.mxu0 0.0
    %4260 = vmatprep.subr.mxu0 0.0
    %4261 = vmatpush2.msra.mxu0 0.0
    %4262 = vmatprep.subr.mxu0 0.0
    %4263 = vmatpush2.msra.mxu0 0.0
    %4264 = vmatprep.subr.mxu0 0.0
    %4265 = vmatpush2.msra.mxu0 0.0
    %4266 = vmatprep.subr.mxu0 0.0
    %4267 = vmatpush2.msra.mxu0 0.0
    %4268 = vmatprep.subr.mxu0 0.0
    %4269 = vmatpush2.msra.mxu0 0.0
    %4270 = vmatprep.subr.mxu0 0.0
    %4271 = vmatpush2.msra.mxu0 0.0
    %4272 = vmatprep.subr.mxu0 0.0
    %4273 = vmatpush2.msra.mxu0 0.0
    %4274 = vmatprep.subr.mxu0 0.0
    %4275 = vmatpush2.msra.mxu0 0.0
    %4276 = vmatprep.subr.mxu0 0.0
    %4277 = vmatpush2.msra.mxu0 0.0
    %4278 = vmatprep.subr.mxu0 0.0
    %4279 = vmatpush2.msra.mxu0 0.0
    %4280 = vmatprep.subr.mxu0 0.0
    %4281 = vmatpush2.msra.mxu0 0.0
    %4282 = vmatprep.subr.mxu0 0.0
    %4283 = vmatpush2.msra.mxu0 0.0
    %4284 = vmatprep.subr.mxu0 0.0
    %4285 = vmatpush2.msra.mxu0 0.0
    %4286 = vmatprep.subr.mxu0 0.0
    %4287 = vmatpush2.msra.mxu0 0.0
    %4288 = vmatprep.mubr.f32.mxu0 0.0
    %4289 = vmatmul.mubr.f32.gmra.mxu0 %v4200
    %v4290 = vpop.f32.mrf.mxu0
    %v4291 = vadd.f32 %v4222, %v4290
    %v4292 = vpop.f32.mrf.mxu0
    %4293 = vdwg.mxu0
    %4294 = vst [vmem:[#allocation15] sm:$0xff] %v4291
    // Predicated region
    $region62: #{tpu_custom_call.1} parent=1 // pred_check
      _
    $region63: #{tpu_custom_call.1} parent=1 // pred_check_branch
      %4296 = sbr.rel (0) target = $region65
    $region64: #{tpu_custom_call.1} parent=1 // pred_region
      %s4298 = ssub.s32 128, 128
      %4299 = vsyncadd [#allocation6], %s4298
      %s4301 = sshll.u32 [#allocation15], 4
      %s4302 = int_to_ptr.vmem [resolvable:$true] %s4301
      %4304 = dma.vmem_to_hbm [thread:$0]  %s4302, 128, %s9, [#allocation6]
    $region65: #{tpu_custom_call.1} parent=1 // pred_fallthru
      _
    // Predicated region
    $region66: #{tpu_custom_call.1} parent=1 // pred_check
      _
    $region67: #{tpu_custom_call.1} parent=1 // pred_check_branch
      %4306 = sbr.rel (0) target = $region69
    $region68: #{tpu_custom_call.1} parent=1 // pred_region
      %4307 = dma.done [#allocation6], 128
    $region69: #{tpu_custom_call.1} parent=1 // pred_fallthru
      _
    %4308 = vsyncpa [#allocation5], 1
    %4309 = vsyncpa [#allocation8], 1
    %4310 = vsyncpa [#allocation11], 1
    %4311 = vsyncpa [#allocation14], 1
    %4312 = vsyncpa [#allocation6], 1

</llo_original>
